<compile_context>
chip_gen: v6e
topology: v6e:2x2x1
jax: 0.10.0
libtpu: 0.0.40
codegen_flags: <defaults>
</compile_context>

<pallas_src>
import jax
import jax.numpy as jnp
from jax.experimental import pallas as pl
from jax.experimental.pallas import tpu as pltpu

EPS = 1e-5


def _fused_bn_add_conv_bn_kernel(x1_ref, x2_ref, gb1_ref, w_ref, gb2_ref, o_ref):
    # x1_ref, x2_ref : (HW, Cin)  f32   full blocks (resident every grid step)
    # gb1_ref        : (2, Cin)   f32   row 0 = gamma1, row 1 = beta1
    # w_ref          : (Cin, TN)  f32   Cout-tile of the 1x1 conv weight
    # gb2_ref        : (2, TN)    f32   row 0 = gamma2, row 1 = beta2 (tile)
    # o_ref          : (HW, TN)   f32   Cout-tile of the output (lane-dense)
    x1 = x1_ref[...]
    x2 = x2_ref[...]

    # BatchNorm2d #1: biased batch stats per input channel (reduce over pixels,
    # i.e. the sublane axis).  Two-pass variance for numerical robustness.
    mean1 = jnp.mean(x1, axis=0, keepdims=True)            # (1, Cin)
    xc = x1 - mean1
    var1 = jnp.mean(xc * xc, axis=0, keepdims=True)
    y = gb1_ref[0:1, :] * xc * jax.lax.rsqrt(var1 + EPS) + gb1_ref[1:2, :]

    # residual add
    y = y + x2

    # 1x1 conv (no bias) == (HW, Cin) @ (Cin, TN) matmul: Cout on MXU columns.
    z = jnp.dot(y, w_ref[...], preferred_element_type=jnp.float32)

    # BatchNorm2d #2: biased batch stats per output channel (sublane reduce).
    mean2 = jnp.mean(z, axis=0, keepdims=True)              # (1, TN)
    zc = z - mean2
    var2 = jnp.mean(zc * zc, axis=0, keepdims=True)
    o_ref[...] = gb2_ref[0:1, :] * zc * jax.lax.rsqrt(var2 + EPS) + gb2_ref[1:2, :]


def _pick_cout_tile(cout):
    # Cout lives on the lane axis: the block width must be a multiple of 128
    # or equal the full dim.  1024 -> 3 steps for Cout=2064 (1024/1024/16),
    # which balances per-step overhead (v6e/v7x) against weight-DMA overlap
    # (v5e) and splits cleanly across the two v7x TensorCores.
    if cout <= 1024:
        return cout
    return 1024


@jax.jit
def model_forward(x619, x606, gamma1, beta1, conv_w, gamma2, beta2):
    """x619, x606: NCHW f32.  conv_w: (Cout, Cin, 1, 1).  Returns NCHW."""
    N, C, H, W = x619.shape
    Cout = conv_w.shape[0]
    HW = N * H * W

    # NCHW -> (N*H*W, Cin): channels on the lane axis (lane-dense vregs).
    x1 = jnp.transpose(x619, (0, 2, 3, 1)).reshape(HW, C)
    x2 = jnp.transpose(x606, (0, 2, 3, 1)).reshape(HW, C)

    # (Cout, Cin, 1, 1) -> (Cin, Cout): one wrapper transpose of the weight.
    w = jnp.transpose(conv_w.reshape(Cout, C), (1, 0))

    # Pack per-channel BN params: 2 operands instead of 4 tiny DMAs per step.
    gb1 = jnp.stack([gamma1, beta1], axis=0)     # (2, Cin)
    gb2 = jnp.stack([gamma2, beta2], axis=0)     # (2, Cout)

    tn = _pick_cout_tile(Cout)
    grid = (pl.cdiv(Cout, tn),)

    out = pl.pallas_call(
        _fused_bn_add_conv_bn_kernel,
        out_shape=jax.ShapeDtypeStruct((HW, Cout), jnp.float32),
        grid=grid,
        in_specs=[
            pl.BlockSpec((HW, C), lambda j: (0, 0)),   # x1 (full, resident)
            pl.BlockSpec((HW, C), lambda j: (0, 0)),   # x2 (full, resident)
            pl.BlockSpec((2, C), lambda j: (0, 0)),    # gamma1/beta1
            pl.BlockSpec((C, tn), lambda j: (0, j)),   # weight tile (pipelined)
            pl.BlockSpec((2, tn), lambda j: (0, j)),   # gamma2/beta2 tile
        ],
        out_specs=pl.BlockSpec((HW, tn), lambda j: (0, j)),
        compiler_params=pltpu.CompilerParams(
            dimension_semantics=("parallel",)),
    )(x1, x2, gb1, w, gb2)

    # (N*H*W, Cout) -> NCHW (cheap: 404 KB for the test shape).
    return jnp.transpose(out.reshape(N, H, W, Cout), (0, 3, 1, 2))


def _reference(x619, x606, gamma1, beta1, conv_w, gamma2, beta2):
    # pure-JAX reference with identical semantics (training-mode batch stats)
    def bn(x, g, b):
        mean = jnp.mean(x, axis=(0, 2, 3), keepdims=True)
        var = jnp.mean((x - mean) ** 2, axis=(0, 2, 3), keepdims=True)
        return g[None, :, None, None] * (x - mean) * jax.lax.rsqrt(var + EPS) \
            + b[None, :, None, None]

    y = bn(x619, gamma1, beta1) + x606
    z = jax.lax.conv_general_dilated(
        y, conv_w, window_strides=(1, 1), padding="VALID",
        dimension_numbers=("NCHW", "OIHW", "NCHW"))
    return bn(z, gamma2, beta2)


if __name__ == "__main__":
    key = jax.random.PRNGKey(0)
    k1, k2, k3, k4, k5, k6, k7 = jax.random.split(key, 7)

    N, Cin, H, W = 1, 344, 7, 7
    Cout = 2064

    x619 = jax.random.normal(k1, (N, Cin, H, W), dtype=jnp.float32)
    x606 = jax.random.normal(k2, (N, Cin, H, W), dtype=jnp.float32)

    # deterministic parameter init (shapes from the module __init__)
    gamma1 = 1.0 + 0.1 * jax.random.normal(k3, (Cin,), dtype=jnp.float32)
    beta1 = 0.1 * jax.random.normal(k4, (Cin,), dtype=jnp.float32)
    conv_w = 0.05 * jax.random.normal(k5, (Cout, Cin, 1, 1), dtype=jnp.float32)
    gamma2 = 1.0 + 0.1 * jax.random.normal(k6, (Cout,), dtype=jnp.float32)
    beta2 = 0.1 * jax.random.normal(k7, (Cout,), dtype=jnp.float32)

    out = model_forward(x619, x606, gamma1, beta1, conv_w, gamma2, beta2)
    out = jax.block_until_ready(out)

    ref = _reference(x619, x606, gamma1, beta1, conv_w, gamma2, beta2)
    ref = jax.block_until_ready(ref)

    assert out.shape == (N, Cout, H, W), out.shape
    assert jnp.allclose(out, ref, atol=1e-3, rtol=1e-3), \
        float(jnp.max(jnp.abs(out - ref)))

    print("KERNEL_OK")
</pallas_src>

<mosaic_0001>
module attributes {stable_mosaic.version = 11 : i64} {
  func.func @_fused_bn_add_conv_bn_kernel(%arg0: i32, %arg1: memref<49x344xf32, #tpu.memory_space<vmem>>, %arg2: memref<49x344xf32, #tpu.memory_space<vmem>>, %arg3: memref<2x344xf32, #tpu.memory_space<vmem>>, %arg4: memref<344x1024xf32, #tpu.memory_space<vmem>>, %arg5: memref<2x1024xf32, #tpu.memory_space<vmem>>, %arg6: memref<49x1024xf32, #tpu.memory_space<vmem>>) attributes {dimension_semantics = [#tpu.dimension_semantics<parallel>], iteration_bounds = array<i64: 3>, scalar_prefetch = 0 : i64, scratch_operands = 0 : i64, tpu.core_type = #tpu.core_type<tc>, window_params = [{pipeline_mode = #tpu.pipeline_mode<synchronous>, transform_indices = @transform_0, window_bounds = array<i64: 49, 344>}, {pipeline_mode = #tpu.pipeline_mode<synchronous>, transform_indices = @transform_1, window_bounds = array<i64: 49, 344>}, {pipeline_mode = #tpu.pipeline_mode<synchronous>, transform_indices = @transform_2, window_bounds = array<i64: 2, 344>}, {transform_indices = @transform_3, window_bounds = array<i64: 344, 1024>}, {transform_indices = @transform_4, window_bounds = array<i64: 2, 1024>}, {transform_indices = @transform_5, window_bounds = array<i64: 49, 1024>}]} {
    %c0 = arith.constant 0 : index
    %c0_0 = arith.constant 0 : index
    %0 = vector.load %arg1[%c0, %c0_0] : memref<49x344xf32, #tpu.memory_space<vmem>>, vector<49x344xf32>
    %c0_1 = arith.constant 0 : index
    %c0_2 = arith.constant 0 : index
    %1 = vector.load %arg2[%c0_1, %c0_2] : memref<49x344xf32, #tpu.memory_space<vmem>>, vector<49x344xf32>
    %cst = arith.constant dense<0.000000e+00> : vector<344xf32>
    %2 = vector.multi_reduction <add>, %0, %cst [0] : vector<49x344xf32> to vector<344xf32>
    %3 = vector.shape_cast %2 : vector<344xf32> to vector<1x344xf32>
    %cst_3 = arith.constant 4.900000e+01 : f32
    %4 = vector.broadcast %cst_3 : f32 to vector<1x344xf32>
    %5 = arith.divf %3, %4 : vector<1x344xf32>
    %6 = vector.broadcast %5 : vector<1x344xf32> to vector<49x344xf32>
    %7 = arith.subf %0, %6 : vector<49x344xf32>
    %8 = arith.mulf %7, %7 : vector<49x344xf32>
    %cst_4 = arith.constant dense<0.000000e+00> : vector<344xf32>
    %9 = vector.multi_reduction <add>, %8, %cst_4 [0] : vector<49x344xf32> to vector<344xf32>
    %10 = vector.shape_cast %9 : vector<344xf32> to vector<1x344xf32>
    %cst_5 = arith.constant 4.900000e+01 : f32
    %11 = vector.broadcast %cst_5 : f32 to vector<1x344xf32>
    %12 = arith.divf %10, %11 : vector<1x344xf32>
    %c0_6 = arith.constant 0 : index
    %c0_7 = arith.constant 0 : index
    %13 = vector.load %arg3[%c0_6, %c0_7] : memref<2x344xf32, #tpu.memory_space<vmem>>, vector<1x344xf32>
    %14 = vector.broadcast %13 : vector<1x344xf32> to vector<49x344xf32>
    %15 = arith.mulf %14, %7 : vector<49x344xf32>
    %cst_8 = arith.constant 9.99999974E-6 : f32
    %16 = vector.broadcast %cst_8 : f32 to vector<1x344xf32>
    %17 = arith.addf %12, %16 : vector<1x344xf32>
    %18 = math.rsqrt %17 : vector<1x344xf32>
    %19 = vector.broadcast %18 : vector<1x344xf32> to vector<49x344xf32>
    %20 = arith.mulf %15, %19 : vector<49x344xf32>
    %c1 = arith.constant 1 : index
    %c0_9 = arith.constant 0 : index
    %21 = vector.load %arg3[%c1, %c0_9] : memref<2x344xf32, #tpu.memory_space<vmem>>, vector<1x344xf32>
    %22 = vector.broadcast %21 : vector<1x344xf32> to vector<49x344xf32>
    %23 = arith.addf %20, %22 : vector<49x344xf32>
    %24 = arith.addf %23, %1 : vector<49x344xf32>
    %c0_10 = arith.constant 0 : index
    %c0_11 = arith.constant 0 : index
    %25 = vector.load %arg4[%c0_10, %c0_11] : memref<344x1024xf32, #tpu.memory_space<vmem>>, vector<344x1024xf32>
    %cst_12 = arith.constant dense<0.000000e+00> : vector<49x1024xf32>
    %26 = tpu.matmul %24, %25, %cst_12 {dimension_numbers = #tpu.dot_dimension_numbers<[1], [0], [0], [1], [0, 0, 1, 1], [], []>} : vector<49x344xf32>, vector<344x1024xf32>, vector<49x1024xf32> -> vector<49x1024xf32>
    %cst_13 = arith.constant dense<0.000000e+00> : vector<1024xf32>
    %27 = vector.multi_reduction <add>, %26, %cst_13 [0] : vector<49x1024xf32> to vector<1024xf32>
    %28 = vector.shape_cast %27 : vector<1024xf32> to vector<1x1024xf32>
    %cst_14 = arith.constant 4.900000e+01 : f32
    %29 = vector.broadcast %cst_14 : f32 to vector<1x1024xf32>
    %30 = arith.divf %28, %29 : vector<1x1024xf32>
    %31 = vector.broadcast %30 : vector<1x1024xf32> to vector<49x1024xf32>
    %32 = arith.subf %26, %31 : vector<49x1024xf32>
    %33 = arith.mulf %32, %32 : vector<49x1024xf32>
    %cst_15 = arith.constant dense<0.000000e+00> : vector<1024xf32>
    %34 = vector.multi_reduction <add>, %33, %cst_15 [0] : vector<49x1024xf32> to vector<1024xf32>
    %35 = vector.shape_cast %34 : vector<1024xf32> to vector<1x1024xf32>
    %cst_16 = arith.constant 4.900000e+01 : f32
    %36 = vector.broadcast %cst_16 : f32 to vector<1x1024xf32>
    %37 = arith.divf %35, %36 : vector<1x1024xf32>
    %c0_17 = arith.constant 0 : index
    %c0_18 = arith.constant 0 : index
    %38 = vector.load %arg5[%c0_17, %c0_18] : memref<2x1024xf32, #tpu.memory_space<vmem>>, vector<1x1024xf32>
    %39 = vector.broadcast %38 : vector<1x1024xf32> to vector<49x1024xf32>
    %40 = arith.mulf %39, %32 : vector<49x1024xf32>
    %cst_19 = arith.constant 9.99999974E-6 : f32
    %41 = vector.broadcast %cst_19 : f32 to vector<1x1024xf32>
    %42 = arith.addf %37, %41 : vector<1x1024xf32>
    %43 = math.rsqrt %42 : vector<1x1024xf32>
    %44 = vector.broadcast %43 : vector<1x1024xf32> to vector<49x1024xf32>
    %45 = arith.mulf %40, %44 : vector<49x1024xf32>
    %c1_20 = arith.constant 1 : index
    %c0_21 = arith.constant 0 : index
    %46 = vector.load %arg5[%c1_20, %c0_21] : memref<2x1024xf32, #tpu.memory_space<vmem>>, vector<1x1024xf32>
    %47 = vector.broadcast %46 : vector<1x1024xf32> to vector<49x1024xf32>
    %48 = arith.addf %45, %47 : vector<49x1024xf32>
    %c0_22 = arith.constant 0 : index
    %c0_23 = arith.constant 0 : index
    %49 = vector.load %arg6[%c0_22, %c0_23] : memref<49x1024xf32, #tpu.memory_space<vmem>>, vector<49x1024xf32>
    tpu.vector_store %arg6[%c0_22, %c0_23], %48 {strides = array<i32>} : memref<49x1024xf32, #tpu.memory_space<vmem>>, vector<49x1024xf32>,
    return
  }
  func.func @transform_0(%arg0: i32) -> (i32, i32) {
    %c0_i32 = arith.constant 0 : i32
    %c0_i32_0 = arith.constant 0 : i32
    %c0_i32_1 = arith.constant 0 : i32
    return %c0_i32, %c0_i32_0 : i32, i32
  }
  func.func @transform_1(%arg0: i32) -> (i32, i32) {
    %c0_i32 = arith.constant 0 : i32
    %c0_i32_0 = arith.constant 0 : i32
    %c0_i32_1 = arith.constant 0 : i32
    return %c0_i32, %c0_i32_0 : i32, i32
  }
  func.func @transform_2(%arg0: i32) -> (i32, i32) {
    %c0_i32 = arith.constant 0 : i32
    %c0_i32_0 = arith.constant 0 : i32
    %c0_i32_1 = arith.constant 0 : i32
    return %c0_i32, %c0_i32_0 : i32, i32
  }
  func.func @transform_3(%arg0: i32) -> (i32, i32) {
    %c0_i32 = arith.constant 0 : i32
    %c0_i32_0 = arith.constant 0 : i32
    return %c0_i32, %arg0 : i32, i32
  }
  func.func @transform_4(%arg0: i32) -> (i32, i32) {
    %c0_i32 = arith.constant 0 : i32
    %c0_i32_0 = arith.constant 0 : i32
    return %c0_i32, %arg0 : i32, i32
  }
  func.func @transform_5(%arg0: i32) -> (i32, i32) {
    %c0_i32 = arith.constant 0 : i32
    %c0_i32_0 = arith.constant 0 : i32
    return %c0_i32, %arg0 : i32, i32
  }
}

</mosaic_0001>

<llo_original>
// kernel: model_forward.1
$region0: #{model_forward.1}
  #allocation0 [shape = 'u32[]', space=smem, size = 0x4, offset = 0x4, fixed_abs, tag = 'smem constant byte address 0x4 - core index']
  #allocation1 [shape = 'u32[144,128]{1,0:T(1,128)}', space=vmem, size = 0x12000, scoped, tag = 'internal scratch']
  %s0 = inlined_call_operand.vmem [shape: f32[49,344], index: 0, kind: input, shape index: {}]
  %s1 = inlined_call_operand.vmem [shape: f32[49,344], index: 1, kind: input, shape index: {}]
  %s2 = inlined_call_operand.vmem [shape: f32[2,344], index: 2, kind: input, shape index: {}]
  %s3 = inlined_call_operand.vmem [shape: f32[344,2064], index: 3, kind: input, shape index: {}]
  %s4 = inlined_call_operand.vmem [shape: f32[2,2064], index: 4, kind: input, shape index: {}]
  %s5 = inlined_call_operand.vmem [shape: f32[49,2064], index: 5, kind: output, shape index: {}]
  %s6 = sld [smem:[#allocation0]]
  $region181: #{model_forward.1} parent=0
    _
  %s8 = ssub.s32 1, %s6
  %s9 = scalar_select 0, %s8, %s6
  $region1: #{model_forward.1} parent=0
    #allocation2 [shape = 'u8[2818048]{0}', space=vmem, size = 0x2b0000, scoped, tag = 'input window, operand 3']
    #allocation3 [shape = 'u8[458752]{0}', space=vmem, size = 0x70000, scoped, tag = 'output window, operand 0']
    loop: start=0, step=1, limit=5
    $region2: #{model_forward.1} parent=1 // loop_pre_header
      _
    $region3: #{model_forward.1} parent=1 // loop_header
      %s11 = sphi 0, %s15
      %p12 = scmp.ge.s32.totalorder %s11, 5
      %s19 = sphi 0, %s19
      %s21 = sphi 0, %s19
      %s22 = sphi 0, %s21
      %s36 = sphi 0, %s22
      %s40 = sphi 0, %s40
      %s42 = sphi 0, %s40
      %s43 = sphi 0, %s42
      %s57 = sphi 0, %s43
      %s61 = sphi 0, %s61
      %s63 = sphi 0, %s61
      %s64 = sphi 0, %s63
      %s78 = sphi 0, %s64
      %s84 = sphi 0, %s86
      %s87 = sphi 0, %s84
      %s88 = sphi 0, %s87
      %s104 = sphi 0, %s88
      %s110 = sphi 0, %s112
      %s113 = sphi 0, %s110
      %s114 = sphi 0, %s113
      %s130 = sphi 0, %s114
      %s136 = sphi 0, %s138
      %s139 = sphi 0, %s136
      %s140 = sphi 0, %s139
      %s156 = sphi 0, %s140
    $region4: #{model_forward.1} parent=1 // loop_header_branch
      %14 = sbr.rel (%p12) target = $region8
    $region5: #{model_forward.1} parent=1 // loop_body
      %s16 = ssub.s32 %s11, 1
      %s17 = ssub.s32 %s11, 2
      %s18 = sadd.s32 %s11, 1
      %s20 = sadd.s32 %s19, 1
      %p23 = scmp.eq.s32.totalorder %s11, 2
      %p24 = scmp.ne.s32.totalorder %s19, %s21
      %p25 = scmp.eq.s32.totalorder %s11, 0
      %p26 = por %p24, %p25
      %p27 = scmp.ne.s32.totalorder %s19, %s21
      %p28 = scmp.eq.s32.totalorder %s16, 2
      %p29 = por %p27, %p28
      %p30 = scmp.ne.s32.totalorder %s21, %s22
      %p31 = scmp.eq.s32.totalorder %s16, 0
      %p32 = por %p30, %p31
      %p33 = scmp.ne.s32.totalorder %s21, %s22
      %p34 = scmp.eq.s32.totalorder %s17, 2
      %p35 = por %p33, %p34
      %p37 = scmp.ne.s32.totalorder %s22, %s36
      %p38 = scmp.eq.s32.totalorder %s17, 0
      %p39 = por %p37, %p38
      %s41 = sadd.s32 %s40, 1
      %p44 = scmp.eq.s32.totalorder %s11, 2
      %p45 = scmp.ne.s32.totalorder %s40, %s42
      %p46 = scmp.eq.s32.totalorder %s11, 0
      %p47 = por %p45, %p46
      %p48 = scmp.ne.s32.totalorder %s40, %s42
      %p49 = scmp.eq.s32.totalorder %s16, 2
      %p50 = por %p48, %p49
      %p51 = scmp.ne.s32.totalorder %s42, %s43
      %p52 = scmp.eq.s32.totalorder %s16, 0
      %p53 = por %p51, %p52
      %p54 = scmp.ne.s32.totalorder %s42, %s43
      %p55 = scmp.eq.s32.totalorder %s17, 2
      %p56 = por %p54, %p55
      %p58 = scmp.ne.s32.totalorder %s43, %s57
      %p59 = scmp.eq.s32.totalorder %s17, 0
      %p60 = por %p58, %p59
      %s62 = sadd.s32 %s61, 1
      %p65 = scmp.eq.s32.totalorder %s11, 2
      %p66 = scmp.ne.s32.totalorder %s61, %s63
      %p67 = scmp.eq.s32.totalorder %s11, 0
      %p68 = por %p66, %p67
      %p69 = scmp.ne.s32.totalorder %s61, %s63
      %p70 = scmp.eq.s32.totalorder %s16, 2
      %p71 = por %p69, %p70
      %p72 = scmp.ne.s32.totalorder %s63, %s64
      %p73 = scmp.eq.s32.totalorder %s16, 0
      %p74 = por %p72, %p73
      %p75 = scmp.ne.s32.totalorder %s63, %s64
      %p76 = scmp.eq.s32.totalorder %s17, 2
      %p77 = por %p75, %p76
      %p79 = scmp.ne.s32.totalorder %s64, %s78
      %p80 = scmp.eq.s32.totalorder %s17, 0
      %p81 = por %p79, %p80
      %s82 = ssub.s32 %s11, %s18
      %p83 = scmp.eq.s32.totalorder %s82, 0
      %s85 = sadd.s32 %s84, 1
      %s86 = scalar_select %p83, %s84, %s85
      %p89 = pneg %p83
      %p90 = scmp.eq.s32.totalorder %s11, 2
      %p91 = por %p89, %p90
      %p92 = scmp.ne.s32.totalorder %s84, %s87
      %p93 = scmp.eq.s32.totalorder %s11, 0
      %p94 = por %p92, %p93
      %p95 = scmp.ne.s32.totalorder %s84, %s87
      %p96 = scmp.eq.s32.totalorder %s16, 2
      %p97 = por %p95, %p96
      %p98 = scmp.ne.s32.totalorder %s87, %s88
      %p99 = scmp.eq.s32.totalorder %s16, 0
      %p100 = por %p98, %p99
      %p101 = scmp.ne.s32.totalorder %s87, %s88
      %p102 = scmp.eq.s32.totalorder %s17, 2
      %p103 = por %p101, %p102
      %p105 = scmp.ne.s32.totalorder %s88, %s104
      %p106 = scmp.eq.s32.totalorder %s17, 0
      %p107 = por %p105, %p106
      %s108 = ssub.s32 %s11, %s18
      %p109 = scmp.eq.s32.totalorder %s108, 0
      %s111 = sadd.s32 %s110, 1
      %s112 = scalar_select %p109, %s110, %s111
      %p115 = pneg %p109
      %p116 = scmp.eq.s32.totalorder %s11, 2
      %p117 = por %p115, %p116
      %p118 = scmp.ne.s32.totalorder %s110, %s113
      %p119 = scmp.eq.s32.totalorder %s11, 0
      %p120 = por %p118, %p119
      %p121 = scmp.ne.s32.totalorder %s110, %s113
      %p122 = scmp.eq.s32.totalorder %s16, 2
      %p123 = por %p121, %p122
      %p124 = scmp.ne.s32.totalorder %s113, %s114
      %p125 = scmp.eq.s32.totalorder %s16, 0
      %p126 = por %p124, %p125
      %p127 = scmp.ne.s32.totalorder %s113, %s114
      %p128 = scmp.eq.s32.totalorder %s17, 2
      %p129 = por %p127, %p128
      %p131 = scmp.ne.s32.totalorder %s114, %s130
      %p132 = scmp.eq.s32.totalorder %s17, 0
      %p133 = por %p131, %p132
      %s134 = ssub.s32 %s11, %s18
      %p135 = scmp.eq.s32.totalorder %s134, 0
      %s137 = sadd.s32 %s136, 1
      %s138 = scalar_select %p135, %s136, %s137
      %p141 = pneg %p135
      %p142 = scmp.eq.s32.totalorder %s11, 2
      %p143 = por %p141, %p142
      %p144 = scmp.ne.s32.totalorder %s136, %s139
      %p145 = scmp.eq.s32.totalorder %s11, 0
      %p146 = por %p144, %p145
      %p147 = scmp.ne.s32.totalorder %s136, %s139
      %p148 = scmp.eq.s32.totalorder %s16, 2
      %p149 = por %p147, %p148
      %p150 = scmp.ne.s32.totalorder %s139, %s140
      %p151 = scmp.eq.s32.totalorder %s16, 0
      %p152 = por %p150, %p151
      %p153 = scmp.ne.s32.totalorder %s139, %s140
      %p154 = scmp.eq.s32.totalorder %s17, 2
      %p155 = por %p153, %p154
      %p157 = scmp.ne.s32.totalorder %s140, %s156
      %p158 = scmp.eq.s32.totalorder %s17, 0
      %p159 = por %p157, %p158
      %p160 = scmp.le.s32.totalorder 1, %s11
      %p161 = scmp.lt.s32.totalorder %s11, 4
      %p162 = pnand %p160, %p161
      %p163 = pneg %p162
      // Predicated region
      $region9: #{model_forward.1} parent=5 // pred_check
        _
      $region10: #{model_forward.1} parent=5 // pred_check_branch
        %165 = sbr.rel (%p162) target = $region12
      $region11: #{model_forward.1} parent=5 // pred_region
        %s166 = ssub.s32 %s11, 1
        // Predicated region
        $region13: #{model_forward.1} parent=11 // pred_check
          %p167 = pneg %p32
        $region14: #{model_forward.1} parent=11 // pred_check_branch
          %169 = sbr.rel (%p167) target = $region16
        $region15: #{model_forward.1} parent=11 // pred_region
          _
        $region16: #{model_forward.1} parent=11 // pred_fallthru
          _
        // Predicated region
        $region17: #{model_forward.1} parent=11 // pred_check
          %p170 = pneg %p53
        $region18: #{model_forward.1} parent=11 // pred_check_branch
          %172 = sbr.rel (%p170) target = $region20
        $region19: #{model_forward.1} parent=11 // pred_region
          _
        $region20: #{model_forward.1} parent=11 // pred_fallthru
          _
        // Predicated region
        $region21: #{model_forward.1} parent=11 // pred_check
          %p173 = pneg %p74
        $region22: #{model_forward.1} parent=11 // pred_check_branch
          %175 = sbr.rel (%p173) target = $region24
        $region23: #{model_forward.1} parent=11 // pred_region
          _
        $region24: #{model_forward.1} parent=11 // pred_fallthru
          _
      $region12: #{model_forward.1} parent=5 // pred_fallthru
        _
      %p176 = scmp.lt.s32.totalorder %s11, 3
      // Predicated region
      $region25: #{model_forward.1} parent=5 // pred_check
        %p177 = pneg %p176
      $region26: #{model_forward.1} parent=5 // pred_check_branch
        %179 = sbr.rel (%p177) target = $region28
      $region27: #{model_forward.1} parent=5 // pred_region
        // Predicated region
        $region29: #{model_forward.1} parent=27 // pred_check
          %p180 = pneg %p94
        $region30: #{model_forward.1} parent=27 // pred_check_branch
          %182 = sbr.rel (%p180) target = $region32
        $region31: #{model_forward.1} parent=27 // pred_region
          %s183 = sand.u32 %s84, 1
          %s184 = sand.u32 %s84, 1
          %s185 = smul.addr %s184, 2752
          %s186 = scalar_lea.vmem [#allocation2], %s185
          %s187 = smul.u32 8, %s11
          %s188 = ssub.s32 17, %s187
          %p189 = scmp.lt.s32.totalorder %s188, 8
          %s190 = scalar_select %p189, %s188, 8
          %s191 = smul.u32 5504, %s190
          %p192 = scmp.ne.s32.totalorder 0, %s191
          %s193 = smul.addr %s187, 8
          %s194 = scalar_lea.vmem %s3, %s193
          %s195 = smul.u32 %s190, 8
          // Predicated region
          $region33: #{model_forward.1} parent=31 // pred_check
            %p196 = pneg %p192
          $region34: #{model_forward.1} parent=31 // pred_check_branch
            %198 = sbr.rel (%p196) target = $region36
          $region35: #{model_forward.1} parent=31 // pred_region
            %p199 = scmp.lt.u32.totalorder %s195, 8
            %p200 = pneg %p199
            // Predicated region
            $region37: #{model_forward.1} parent=35 // pred_check
              _
            $region38: #{model_forward.1} parent=35 // pred_check_branch
              %202 = sbr.rel (%p199) target = $region40
            $region39: #{model_forward.1} parent=35 // pred_region
              %s302 = sand.u32 %s195, 7
              %p303 = scmp.eq.s32.totalorder %s302, 0
              // Predicated region
              $region52: #{model_forward.1} parent=39 // pred_check
                %p304 = pneg %p303
              $region53: #{model_forward.1} parent=39 // pred_check_branch
                %306 = sbr.rel (%p304) target = $region55
              $region54: #{model_forward.1} parent=39 // pred_region
                %s307 = sshrl.u32 %s195, 3
                %s308 = sshrl.u32 %s307, 1
                // While loop
                $region56: #{model_forward.1} parent=54 // loop_pre_header
                  _
                $region57: #{model_forward.1} parent=54 // loop_header
                  %s312 = sphi 0, %s314
                  %p313 = scmp.ge.s32.totalorder %s312, %s308
                  %s317 = sphi 0, %s494
                  %s318 = sphi %s194, %s497
                  %s319 = sphi %s186, %s498
                $region58: #{model_forward.1} parent=54 // loop_header_branch
                  %316 = sbr.rel (%p313) target = $region62
                $region59: #{model_forward.1} parent=54 // loop_body
                  %v320 = vld [vmem:[%s318] sm:$0xff]
                  %321 = vst [vmem:[%s319] sm:$0xff] %v320
                  %v322 = vld [vmem:[%s318 + $0x8] sm:$0xff]
                  %323 = vst [vmem:[%s319 + $0x8] sm:$0xff] %v322
                  %v324 = vld [vmem:[%s318 + $0x88] sm:$0xff]
                  %325 = vst [vmem:[%s319 + $0x40] sm:$0xff] %v324
                  %v326 = vld [vmem:[%s318 + $0x90] sm:$0xff]
                  %327 = vst [vmem:[%s319 + $0x48] sm:$0xff] %v326
                  %v328 = vld [vmem:[%s318 + $0x110] sm:$0xff]
                  %329 = vst [vmem:[%s319 + $0x80] sm:$0xff] %v328
                  %v330 = vld [vmem:[%s318 + $0x118] sm:$0xff]
                  %331 = vst [vmem:[%s319 + $0x88] sm:$0xff] %v330
                  %v332 = vld [vmem:[%s318 + $0x198] sm:$0xff]
                  %333 = vst [vmem:[%s319 + $0xc0] sm:$0xff] %v332
                  %v334 = vld [vmem:[%s318 + $0x1a0] sm:$0xff]
                  %335 = vst [vmem:[%s319 + $0xc8] sm:$0xff] %v334
                  %v336 = vld [vmem:[%s318 + $0x220] sm:$0xff]
                  %337 = vst [vmem:[%s319 + $0x100] sm:$0xff] %v336
                  %v338 = vld [vmem:[%s318 + $0x228] sm:$0xff]
                  %339 = vst [vmem:[%s319 + $0x108] sm:$0xff] %v338
                  %v340 = vld [vmem:[%s318 + $0x2a8] sm:$0xff]
                  %341 = vst [vmem:[%s319 + $0x140] sm:$0xff] %v340
                  %v342 = vld [vmem:[%s318 + $0x2b0] sm:$0xff]
                  %343 = vst [vmem:[%s319 + $0x148] sm:$0xff] %v342
                  %v344 = vld [vmem:[%s318 + $0x330] sm:$0xff]
                  %345 = vst [vmem:[%s319 + $0x180] sm:$0xff] %v344
                  %v346 = vld [vmem:[%s318 + $0x338] sm:$0xff]
                  %347 = vst [vmem:[%s319 + $0x188] sm:$0xff] %v346
                  %v348 = vld [vmem:[%s318 + $0x3b8] sm:$0xff]
                  %349 = vst [vmem:[%s319 + $0x1c0] sm:$0xff] %v348
                  %v350 = vld [vmem:[%s318 + $0x3c0] sm:$0xff]
                  %351 = vst [vmem:[%s319 + $0x1c8] sm:$0xff] %v350
                  %v352 = vld [vmem:[%s318 + $0x440] sm:$0xff]
                  %353 = vst [vmem:[%s319 + $0x200] sm:$0xff] %v352
                  %v354 = vld [vmem:[%s318 + $0x448] sm:$0xff]
                  %355 = vst [vmem:[%s319 + $0x208] sm:$0xff] %v354
                  %v356 = vld [vmem:[%s318 + $0x4c8] sm:$0xff]
                  %357 = vst [vmem:[%s319 + $0x240] sm:$0xff] %v356
                  %v358 = vld [vmem:[%s318 + $0x4d0] sm:$0xff]
                  %359 = vst [vmem:[%s319 + $0x248] sm:$0xff] %v358
                  %v360 = vld [vmem:[%s318 + $0x550] sm:$0xff]
                  %361 = vst [vmem:[%s319 + $0x280] sm:$0xff] %v360
                  %v362 = vld [vmem:[%s318 + $0x558] sm:$0xff]
                  %363 = vst [vmem:[%s319 + $0x288] sm:$0xff] %v362
                  %v364 = vld [vmem:[%s318 + $0x5d8] sm:$0xff]
                  %365 = vst [vmem:[%s319 + $0x2c0] sm:$0xff] %v364
                  %v366 = vld [vmem:[%s318 + $0x5e0] sm:$0xff]
                  %367 = vst [vmem:[%s319 + $0x2c8] sm:$0xff] %v366
                  %v368 = vld [vmem:[%s318 + $0x660] sm:$0xff]
                  %369 = vst [vmem:[%s319 + $0x300] sm:$0xff] %v368
                  %v370 = vld [vmem:[%s318 + $0x668] sm:$0xff]
                  %371 = vst [vmem:[%s319 + $0x308] sm:$0xff] %v370
                  %v372 = vld [vmem:[%s318 + $0x6e8] sm:$0xff]
                  %373 = vst [vmem:[%s319 + $0x340] sm:$0xff] %v372
                  %v374 = vld [vmem:[%s318 + $0x6f0] sm:$0xff]
                  %375 = vst [vmem:[%s319 + $0x348] sm:$0xff] %v374
                  %v376 = vld [vmem:[%s318 + $0x770] sm:$0xff]
                  %377 = vst [vmem:[%s319 + $0x380] sm:$0xff] %v376
                  %v378 = vld [vmem:[%s318 + $0x778] sm:$0xff]
                  %379 = vst [vmem:[%s319 + $0x388] sm:$0xff] %v378
                  %v380 = vld [vmem:[%s318 + $0x7f8] sm:$0xff]
                  %381 = vst [vmem:[%s319 + $0x3c0] sm:$0xff] %v380
                  %v382 = vld [vmem:[%s318 + $0x800] sm:$0xff]
                  %383 = vst [vmem:[%s319 + $0x3c8] sm:$0xff] %v382
                  %v384 = vld [vmem:[%s318 + $0x880] sm:$0xff]
                  %385 = vst [vmem:[%s319 + $0x400] sm:$0xff] %v384
                  %v386 = vld [vmem:[%s318 + $0x888] sm:$0xff]
                  %387 = vst [vmem:[%s319 + $0x408] sm:$0xff] %v386
                  %v388 = vld [vmem:[%s318 + $0x908] sm:$0xff]
                  %389 = vst [vmem:[%s319 + $0x440] sm:$0xff] %v388
                  %v390 = vld [vmem:[%s318 + $0x910] sm:$0xff]
                  %391 = vst [vmem:[%s319 + $0x448] sm:$0xff] %v390
                  %v392 = vld [vmem:[%s318 + $0x990] sm:$0xff]
                  %393 = vst [vmem:[%s319 + $0x480] sm:$0xff] %v392
                  %v394 = vld [vmem:[%s318 + $0x998] sm:$0xff]
                  %395 = vst [vmem:[%s319 + $0x488] sm:$0xff] %v394
                  %v396 = vld [vmem:[%s318 + $0xa18] sm:$0xff]
                  %397 = vst [vmem:[%s319 + $0x4c0] sm:$0xff] %v396
                  %v398 = vld [vmem:[%s318 + $0xa20] sm:$0xff]
                  %399 = vst [vmem:[%s319 + $0x4c8] sm:$0xff] %v398
                  %v400 = vld [vmem:[%s318 + $0xaa0] sm:$0xff]
                  %401 = vst [vmem:[%s319 + $0x500] sm:$0xff] %v400
                  %v402 = vld [vmem:[%s318 + $0xaa8] sm:$0xff]
                  %403 = vst [vmem:[%s319 + $0x508] sm:$0xff] %v402
                  %v404 = vld [vmem:[%s318 + $0xb28] sm:$0xff]
                  %405 = vst [vmem:[%s319 + $0x540] sm:$0xff] %v404
                  %v406 = vld [vmem:[%s318 + $0xb30] sm:$0xff]
                  %407 = vst [vmem:[%s319 + $0x548] sm:$0xff] %v406
                  %v408 = vld [vmem:[%s318 + $0xbb0] sm:$0xff]
                  %409 = vst [vmem:[%s319 + $0x580] sm:$0xff] %v408
                  %v410 = vld [vmem:[%s318 + $0xbb8] sm:$0xff]
                  %411 = vst [vmem:[%s319 + $0x588] sm:$0xff] %v410
                  %v412 = vld [vmem:[%s318 + $0xc38] sm:$0xff]
                  %413 = vst [vmem:[%s319 + $0x5c0] sm:$0xff] %v412
                  %v414 = vld [vmem:[%s318 + $0xc40] sm:$0xff]
                  %415 = vst [vmem:[%s319 + $0x5c8] sm:$0xff] %v414
                  %v416 = vld [vmem:[%s318 + $0xcc0] sm:$0xff]
                  %417 = vst [vmem:[%s319 + $0x600] sm:$0xff] %v416
                  %v418 = vld [vmem:[%s318 + $0xcc8] sm:$0xff]
                  %419 = vst [vmem:[%s319 + $0x608] sm:$0xff] %v418
                  %v420 = vld [vmem:[%s318 + $0xd48] sm:$0xff]
                  %421 = vst [vmem:[%s319 + $0x640] sm:$0xff] %v420
                  %v422 = vld [vmem:[%s318 + $0xd50] sm:$0xff]
                  %423 = vst [vmem:[%s319 + $0x648] sm:$0xff] %v422
                  %v424 = vld [vmem:[%s318 + $0xdd0] sm:$0xff]
                  %425 = vst [vmem:[%s319 + $0x680] sm:$0xff] %v424
                  %v426 = vld [vmem:[%s318 + $0xdd8] sm:$0xff]
                  %427 = vst [vmem:[%s319 + $0x688] sm:$0xff] %v426
                  %v428 = vld [vmem:[%s318 + $0xe58] sm:$0xff]
                  %429 = vst [vmem:[%s319 + $0x6c0] sm:$0xff] %v428
                  %v430 = vld [vmem:[%s318 + $0xe60] sm:$0xff]
                  %431 = vst [vmem:[%s319 + $0x6c8] sm:$0xff] %v430
                  %v432 = vld [vmem:[%s318 + $0xee0] sm:$0xff]
                  %433 = vst [vmem:[%s319 + $0x700] sm:$0xff] %v432
                  %v434 = vld [vmem:[%s318 + $0xee8] sm:$0xff]
                  %435 = vst [vmem:[%s319 + $0x708] sm:$0xff] %v434
                  %v436 = vld [vmem:[%s318 + $0xf68] sm:$0xff]
                  %437 = vst [vmem:[%s319 + $0x740] sm:$0xff] %v436
                  %v438 = vld [vmem:[%s318 + $0xf70] sm:$0xff]
                  %439 = vst [vmem:[%s319 + $0x748] sm:$0xff] %v438
                  %v440 = vld [vmem:[%s318 + $0xff0] sm:$0xff]
                  %441 = vst [vmem:[%s319 + $0x780] sm:$0xff] %v440
                  %v442 = vld [vmem:[%s318 + $0xff8] sm:$0xff]
                  %443 = vst [vmem:[%s319 + $0x788] sm:$0xff] %v442
                  %v444 = vld [vmem:[%s318 + $0x1078] sm:$0xff]
                  %445 = vst [vmem:[%s319 + $0x7c0] sm:$0xff] %v444
                  %v446 = vld [vmem:[%s318 + $0x1080] sm:$0xff]
                  %447 = vst [vmem:[%s319 + $0x7c8] sm:$0xff] %v446
                  %v448 = vld [vmem:[%s318 + $0x1100] sm:$0xff]
                  %449 = vst [vmem:[%s319 + $0x800] sm:$0xff] %v448
                  %v450 = vld [vmem:[%s318 + $0x1108] sm:$0xff]
                  %451 = vst [vmem:[%s319 + $0x808] sm:$0xff] %v450
                  %v452 = vld [vmem:[%s318 + $0x1188] sm:$0xff]
                  %453 = vst [vmem:[%s319 + $0x840] sm:$0xff] %v452
                  %v454 = vld [vmem:[%s318 + $0x1190] sm:$0xff]
                  %455 = vst [vmem:[%s319 + $0x848] sm:$0xff] %v454
                  %v456 = vld [vmem:[%s318 + $0x1210] sm:$0xff]
                  %457 = vst [vmem:[%s319 + $0x880] sm:$0xff] %v456
                  %v458 = vld [vmem:[%s318 + $0x1218] sm:$0xff]
                  %459 = vst [vmem:[%s319 + $0x888] sm:$0xff] %v458
                  %v460 = vld [vmem:[%s318 + $0x1298] sm:$0xff]
                  %461 = vst [vmem:[%s319 + $0x8c0] sm:$0xff] %v460
                  %v462 = vld [vmem:[%s318 + $0x12a0] sm:$0xff]
                  %463 = vst [vmem:[%s319 + $0x8c8] sm:$0xff] %v462
                  %v464 = vld [vmem:[%s318 + $0x1320] sm:$0xff]
                  %465 = vst [vmem:[%s319 + $0x900] sm:$0xff] %v464
                  %v466 = vld [vmem:[%s318 + $0x1328] sm:$0xff]
                  %467 = vst [vmem:[%s319 + $0x908] sm:$0xff] %v466
                  %v468 = vld [vmem:[%s318 + $0x13a8] sm:$0xff]
                  %469 = vst [vmem:[%s319 + $0x940] sm:$0xff] %v468
                  %v470 = vld [vmem:[%s318 + $0x13b0] sm:$0xff]
                  %471 = vst [vmem:[%s319 + $0x948] sm:$0xff] %v470
                  %v472 = vld [vmem:[%s318 + $0x1430] sm:$0xff]
                  %473 = vst [vmem:[%s319 + $0x980] sm:$0xff] %v472
                  %v474 = vld [vmem:[%s318 + $0x1438] sm:$0xff]
                  %475 = vst [vmem:[%s319 + $0x988] sm:$0xff] %v474
                  %v476 = vld [vmem:[%s318 + $0x14b8] sm:$0xff]
                  %477 = vst [vmem:[%s319 + $0x9c0] sm:$0xff] %v476
                  %v478 = vld [vmem:[%s318 + $0x14c0] sm:$0xff]
                  %479 = vst [vmem:[%s319 + $0x9c8] sm:$0xff] %v478
                  %v480 = vld [vmem:[%s318 + $0x1540] sm:$0xff]
                  %481 = vst [vmem:[%s319 + $0xa00] sm:$0xff] %v480
                  %v482 = vld [vmem:[%s318 + $0x1548] sm:$0xff]
                  %483 = vst [vmem:[%s319 + $0xa08] sm:$0xff] %v482
                  %v484 = vld [vmem:[%s318 + $0x15c8] sm:$0xff]
                  %485 = vst [vmem:[%s319 + $0xa40] sm:$0xff] %v484
                  %v486 = vld [vmem:[%s318 + $0x15d0] sm:$0xff]
                  %487 = vst [vmem:[%s319 + $0xa48] sm:$0xff] %v486
                  %v488 = vld [vmem:[%s318 + $0x1650] sm:$0xff]
                  %489 = vst [vmem:[%s319 + $0xa80] sm:$0xff] %v488
                  %v490 = vld [vmem:[%s318 + $0x1658] sm:$0xff]
                  %491 = vst [vmem:[%s319 + $0xa88] sm:$0xff] %v490
                  %s492 = sadd.s32 1, %s317
                  %p493 = scmp.ge.s32.totalorder %s492, %s308
                  %s494 = scalar_select %p493, 0, %s492
                  %s495 = smul.u32 %s494, 16
                  %s496 = smul.u32 %s494, 16
                  %s497 = scalar_lea.vmem %s194, %s495
                  %s498 = scalar_lea.vmem %s186, %s496 [#allocation2]
                $region60: #{model_forward.1} parent=54 // loop_footer
                  %s314 = sadd.s32 %s312, 1
                $region61: #{model_forward.1} parent=54 // loop_footer_branch
                  %311 = sbr.rel target = $region57
                $region62: #{model_forward.1} parent=54 // loop_exit
                  _
                %s499 = sshrl.u32 %s307, 1
                %s500 = sand.u32 %s307, 1
                %s501 = smul.u32 %s499, 2
                %s502 = smul.u32 128, %s501
                %s503 = sshra.s32 %s502, 4
                %s504 = scalar_lea.vmem %s194, %s503
                %s505 = smul.u32 128, %s501
                %s506 = sshra.s32 %s505, 4
                %s507 = scalar_lea.vmem %s186, %s506 [#allocation2]
                // While loop
                $region63: #{model_forward.1} parent=54 // loop_pre_header
                  _
                $region64: #{model_forward.1} parent=54 // loop_header
                  %s511 = sphi 0, %s513
                  %p512 = scmp.ge.s32.totalorder %s511, %s500
                  %s516 = sphi 0, %s607
                  %s517 = sphi %s504, %s610
                  %s518 = sphi %s507, %s611
                $region65: #{model_forward.1} parent=54 // loop_header_branch
                  %515 = sbr.rel (%p512) target = $region69
                $region66: #{model_forward.1} parent=54 // loop_body
                  %v519 = vld [vmem:[%s517] sm:$0xff]
                  %520 = vst [vmem:[%s518] sm:$0xff] %v519
                  %v521 = vld [vmem:[%s517 + $0x88] sm:$0xff]
                  %522 = vst [vmem:[%s518 + $0x40] sm:$0xff] %v521
                  %v523 = vld [vmem:[%s517 + $0x110] sm:$0xff]
                  %524 = vst [vmem:[%s518 + $0x80] sm:$0xff] %v523
                  %v525 = vld [vmem:[%s517 + $0x198] sm:$0xff]
                  %526 = vst [vmem:[%s518 + $0xc0] sm:$0xff] %v525
                  %v527 = vld [vmem:[%s517 + $0x220] sm:$0xff]
                  %528 = vst [vmem:[%s518 + $0x100] sm:$0xff] %v527
                  %v529 = vld [vmem:[%s517 + $0x2a8] sm:$0xff]
                  %530 = vst [vmem:[%s518 + $0x140] sm:$0xff] %v529
                  %v531 = vld [vmem:[%s517 + $0x330] sm:$0xff]
                  %532 = vst [vmem:[%s518 + $0x180] sm:$0xff] %v531
                  %v533 = vld [vmem:[%s517 + $0x3b8] sm:$0xff]
                  %534 = vst [vmem:[%s518 + $0x1c0] sm:$0xff] %v533
                  %v535 = vld [vmem:[%s517 + $0x440] sm:$0xff]
                  %536 = vst [vmem:[%s518 + $0x200] sm:$0xff] %v535
                  %v537 = vld [vmem:[%s517 + $0x4c8] sm:$0xff]
                  %538 = vst [vmem:[%s518 + $0x240] sm:$0xff] %v537
                  %v539 = vld [vmem:[%s517 + $0x550] sm:$0xff]
                  %540 = vst [vmem:[%s518 + $0x280] sm:$0xff] %v539
                  %v541 = vld [vmem:[%s517 + $0x5d8] sm:$0xff]
                  %542 = vst [vmem:[%s518 + $0x2c0] sm:$0xff] %v541
                  %v543 = vld [vmem:[%s517 + $0x660] sm:$0xff]
                  %544 = vst [vmem:[%s518 + $0x300] sm:$0xff] %v543
                  %v545 = vld [vmem:[%s517 + $0x6e8] sm:$0xff]
                  %546 = vst [vmem:[%s518 + $0x340] sm:$0xff] %v545
                  %v547 = vld [vmem:[%s517 + $0x770] sm:$0xff]
                  %548 = vst [vmem:[%s518 + $0x380] sm:$0xff] %v547
                  %v549 = vld [vmem:[%s517 + $0x7f8] sm:$0xff]
                  %550 = vst [vmem:[%s518 + $0x3c0] sm:$0xff] %v549
                  %v551 = vld [vmem:[%s517 + $0x880] sm:$0xff]
                  %552 = vst [vmem:[%s518 + $0x400] sm:$0xff] %v551
                  %v553 = vld [vmem:[%s517 + $0x908] sm:$0xff]
                  %554 = vst [vmem:[%s518 + $0x440] sm:$0xff] %v553
                  %v555 = vld [vmem:[%s517 + $0x990] sm:$0xff]
                  %556 = vst [vmem:[%s518 + $0x480] sm:$0xff] %v555
                  %v557 = vld [vmem:[%s517 + $0xa18] sm:$0xff]
                  %558 = vst [vmem:[%s518 + $0x4c0] sm:$0xff] %v557
                  %v559 = vld [vmem:[%s517 + $0xaa0] sm:$0xff]
                  %560 = vst [vmem:[%s518 + $0x500] sm:$0xff] %v559
                  %v561 = vld [vmem:[%s517 + $0xb28] sm:$0xff]
                  %562 = vst [vmem:[%s518 + $0x540] sm:$0xff] %v561
                  %v563 = vld [vmem:[%s517 + $0xbb0] sm:$0xff]
                  %564 = vst [vmem:[%s518 + $0x580] sm:$0xff] %v563
                  %v565 = vld [vmem:[%s517 + $0xc38] sm:$0xff]
                  %566 = vst [vmem:[%s518 + $0x5c0] sm:$0xff] %v565
                  %v567 = vld [vmem:[%s517 + $0xcc0] sm:$0xff]
                  %568 = vst [vmem:[%s518 + $0x600] sm:$0xff] %v567
                  %v569 = vld [vmem:[%s517 + $0xd48] sm:$0xff]
                  %570 = vst [vmem:[%s518 + $0x640] sm:$0xff] %v569
                  %v571 = vld [vmem:[%s517 + $0xdd0] sm:$0xff]
                  %572 = vst [vmem:[%s518 + $0x680] sm:$0xff] %v571
                  %v573 = vld [vmem:[%s517 + $0xe58] sm:$0xff]
                  %574 = vst [vmem:[%s518 + $0x6c0] sm:$0xff] %v573
                  %v575 = vld [vmem:[%s517 + $0xee0] sm:$0xff]
                  %576 = vst [vmem:[%s518 + $0x700] sm:$0xff] %v575
                  %v577 = vld [vmem:[%s517 + $0xf68] sm:$0xff]
                  %578 = vst [vmem:[%s518 + $0x740] sm:$0xff] %v577
                  %v579 = vld [vmem:[%s517 + $0xff0] sm:$0xff]
                  %580 = vst [vmem:[%s518 + $0x780] sm:$0xff] %v579
                  %v581 = vld [vmem:[%s517 + $0x1078] sm:$0xff]
                  %582 = vst [vmem:[%s518 + $0x7c0] sm:$0xff] %v581
                  %v583 = vld [vmem:[%s517 + $0x1100] sm:$0xff]
                  %584 = vst [vmem:[%s518 + $0x800] sm:$0xff] %v583
                  %v585 = vld [vmem:[%s517 + $0x1188] sm:$0xff]
                  %586 = vst [vmem:[%s518 + $0x840] sm:$0xff] %v585
                  %v587 = vld [vmem:[%s517 + $0x1210] sm:$0xff]
                  %588 = vst [vmem:[%s518 + $0x880] sm:$0xff] %v587
                  %v589 = vld [vmem:[%s517 + $0x1298] sm:$0xff]
                  %590 = vst [vmem:[%s518 + $0x8c0] sm:$0xff] %v589
                  %v591 = vld [vmem:[%s517 + $0x1320] sm:$0xff]
                  %592 = vst [vmem:[%s518 + $0x900] sm:$0xff] %v591
                  %v593 = vld [vmem:[%s517 + $0x13a8] sm:$0xff]
                  %594 = vst [vmem:[%s518 + $0x940] sm:$0xff] %v593
                  %v595 = vld [vmem:[%s517 + $0x1430] sm:$0xff]
                  %596 = vst [vmem:[%s518 + $0x980] sm:$0xff] %v595
                  %v597 = vld [vmem:[%s517 + $0x14b8] sm:$0xff]
                  %598 = vst [vmem:[%s518 + $0x9c0] sm:$0xff] %v597
                  %v599 = vld [vmem:[%s517 + $0x1540] sm:$0xff]
                  %600 = vst [vmem:[%s518 + $0xa00] sm:$0xff] %v599
                  %v601 = vld [vmem:[%s517 + $0x15c8] sm:$0xff]
                  %602 = vst [vmem:[%s518 + $0xa40] sm:$0xff] %v601
                  %v603 = vld [vmem:[%s517 + $0x1650] sm:$0xff]
                  %604 = vst [vmem:[%s518 + $0xa80] sm:$0xff] %v603
                  %s605 = sadd.s32 1, %s516
                  %p606 = scmp.ge.s32.totalorder %s605, %s500
                  %s607 = scalar_select %p606, 0, %s605
                  %s608 = smul.u32 %s607, 8
                  %s609 = smul.u32 %s607, 8
                  %s610 = scalar_lea.vmem %s504, %s608
                  %s611 = scalar_lea.vmem %s507, %s609 [#allocation2]
                $region67: #{model_forward.1} parent=54 // loop_footer
                  %s513 = sadd.s32 %s511, 1
                $region68: #{model_forward.1} parent=54 // loop_footer_branch
                  %510 = sbr.rel target = $region64
                $region69: #{model_forward.1} parent=54 // loop_exit
                  _
              $region55: #{model_forward.1} parent=39 // pred_fallthru
                _
              %p612 = pneg %p303
              // Predicated region
              $region70: #{model_forward.1} parent=39 // pred_check
                _
              $region71: #{model_forward.1} parent=39 // pred_check_branch
                %614 = sbr.rel (%p303) target = $region73
              $region72: #{model_forward.1} parent=39 // pred_region
                %s615 = sand.u32 %s195, 7
                %s616 = ssub.s32 %s195, %s615
                %s617 = scalar_lea.vmem %s194, %s616
                %s618 = ssub.s32 %s195, %s615
                %s619 = scalar_lea.vmem %s186, %s618 [#allocation2]
                %s620 = sshrl.u32 %s195, 3
                %s621 = sshrl.u32 %s620, 1
                // While loop
                $region74: #{model_forward.1} parent=72 // loop_pre_header
                  _
                $region75: #{model_forward.1} parent=72 // loop_header
                  %s625 = sphi 0, %s627
                  %p626 = scmp.ge.s32.totalorder %s625, %s621
                  %s630 = sphi 0, %s807
                  %s631 = sphi %s194, %s810
                  %s632 = sphi %s186, %s811
                $region76: #{model_forward.1} parent=72 // loop_header_branch
                  %629 = sbr.rel (%p626) target = $region80
                $region77: #{model_forward.1} parent=72 // loop_body
                  %v633 = vld [vmem:[%s631] sm:$0xff]
                  %634 = vst [vmem:[%s632] sm:$0xff] %v633
                  %v635 = vld [vmem:[%s631 + $0x8] sm:$0xff]
                  %636 = vst [vmem:[%s632 + $0x8] sm:$0xff] %v635
                  %v637 = vld [vmem:[%s631 + $0x88] sm:$0xff]
                  %638 = vst [vmem:[%s632 + $0x40] sm:$0xff] %v637
                  %v639 = vld [vmem:[%s631 + $0x90] sm:$0xff]
                  %640 = vst [vmem:[%s632 + $0x48] sm:$0xff] %v639
                  %v641 = vld [vmem:[%s631 + $0x110] sm:$0xff]
                  %642 = vst [vmem:[%s632 + $0x80] sm:$0xff] %v641
                  %v643 = vld [vmem:[%s631 + $0x118] sm:$0xff]
                  %644 = vst [vmem:[%s632 + $0x88] sm:$0xff] %v643
                  %v645 = vld [vmem:[%s631 + $0x198] sm:$0xff]
                  %646 = vst [vmem:[%s632 + $0xc0] sm:$0xff] %v645
                  %v647 = vld [vmem:[%s631 + $0x1a0] sm:$0xff]
                  %648 = vst [vmem:[%s632 + $0xc8] sm:$0xff] %v647
                  %v649 = vld [vmem:[%s631 + $0x220] sm:$0xff]
                  %650 = vst [vmem:[%s632 + $0x100] sm:$0xff] %v649
                  %v651 = vld [vmem:[%s631 + $0x228] sm:$0xff]
                  %652 = vst [vmem:[%s632 + $0x108] sm:$0xff] %v651
                  %v653 = vld [vmem:[%s631 + $0x2a8] sm:$0xff]
                  %654 = vst [vmem:[%s632 + $0x140] sm:$0xff] %v653
                  %v655 = vld [vmem:[%s631 + $0x2b0] sm:$0xff]
                  %656 = vst [vmem:[%s632 + $0x148] sm:$0xff] %v655
                  %v657 = vld [vmem:[%s631 + $0x330] sm:$0xff]
                  %658 = vst [vmem:[%s632 + $0x180] sm:$0xff] %v657
                  %v659 = vld [vmem:[%s631 + $0x338] sm:$0xff]
                  %660 = vst [vmem:[%s632 + $0x188] sm:$0xff] %v659
                  %v661 = vld [vmem:[%s631 + $0x3b8] sm:$0xff]
                  %662 = vst [vmem:[%s632 + $0x1c0] sm:$0xff] %v661
                  %v663 = vld [vmem:[%s631 + $0x3c0] sm:$0xff]
                  %664 = vst [vmem:[%s632 + $0x1c8] sm:$0xff] %v663
                  %v665 = vld [vmem:[%s631 + $0x440] sm:$0xff]
                  %666 = vst [vmem:[%s632 + $0x200] sm:$0xff] %v665
                  %v667 = vld [vmem:[%s631 + $0x448] sm:$0xff]
                  %668 = vst [vmem:[%s632 + $0x208] sm:$0xff] %v667
                  %v669 = vld [vmem:[%s631 + $0x4c8] sm:$0xff]
                  %670 = vst [vmem:[%s632 + $0x240] sm:$0xff] %v669
                  %v671 = vld [vmem:[%s631 + $0x4d0] sm:$0xff]
                  %672 = vst [vmem:[%s632 + $0x248] sm:$0xff] %v671
                  %v673 = vld [vmem:[%s631 + $0x550] sm:$0xff]
                  %674 = vst [vmem:[%s632 + $0x280] sm:$0xff] %v673
                  %v675 = vld [vmem:[%s631 + $0x558] sm:$0xff]
                  %676 = vst [vmem:[%s632 + $0x288] sm:$0xff] %v675
                  %v677 = vld [vmem:[%s631 + $0x5d8] sm:$0xff]
                  %678 = vst [vmem:[%s632 + $0x2c0] sm:$0xff] %v677
                  %v679 = vld [vmem:[%s631 + $0x5e0] sm:$0xff]
                  %680 = vst [vmem:[%s632 + $0x2c8] sm:$0xff] %v679
                  %v681 = vld [vmem:[%s631 + $0x660] sm:$0xff]
                  %682 = vst [vmem:[%s632 + $0x300] sm:$0xff] %v681
                  %v683 = vld [vmem:[%s631 + $0x668] sm:$0xff]
                  %684 = vst [vmem:[%s632 + $0x308] sm:$0xff] %v683
                  %v685 = vld [vmem:[%s631 + $0x6e8] sm:$0xff]
                  %686 = vst [vmem:[%s632 + $0x340] sm:$0xff] %v685
                  %v687 = vld [vmem:[%s631 + $0x6f0] sm:$0xff]
                  %688 = vst [vmem:[%s632 + $0x348] sm:$0xff] %v687
                  %v689 = vld [vmem:[%s631 + $0x770] sm:$0xff]
                  %690 = vst [vmem:[%s632 + $0x380] sm:$0xff] %v689
                  %v691 = vld [vmem:[%s631 + $0x778] sm:$0xff]
                  %692 = vst [vmem:[%s632 + $0x388] sm:$0xff] %v691
                  %v693 = vld [vmem:[%s631 + $0x7f8] sm:$0xff]
                  %694 = vst [vmem:[%s632 + $0x3c0] sm:$0xff] %v693
                  %v695 = vld [vmem:[%s631 + $0x800] sm:$0xff]
                  %696 = vst [vmem:[%s632 + $0x3c8] sm:$0xff] %v695
                  %v697 = vld [vmem:[%s631 + $0x880] sm:$0xff]
                  %698 = vst [vmem:[%s632 + $0x400] sm:$0xff] %v697
                  %v699 = vld [vmem:[%s631 + $0x888] sm:$0xff]
                  %700 = vst [vmem:[%s632 + $0x408] sm:$0xff] %v699
                  %v701 = vld [vmem:[%s631 + $0x908] sm:$0xff]
                  %702 = vst [vmem:[%s632 + $0x440] sm:$0xff] %v701
                  %v703 = vld [vmem:[%s631 + $0x910] sm:$0xff]
                  %704 = vst [vmem:[%s632 + $0x448] sm:$0xff] %v703
                  %v705 = vld [vmem:[%s631 + $0x990] sm:$0xff]
                  %706 = vst [vmem:[%s632 + $0x480] sm:$0xff] %v705
                  %v707 = vld [vmem:[%s631 + $0x998] sm:$0xff]
                  %708 = vst [vmem:[%s632 + $0x488] sm:$0xff] %v707
                  %v709 = vld [vmem:[%s631 + $0xa18] sm:$0xff]
                  %710 = vst [vmem:[%s632 + $0x4c0] sm:$0xff] %v709
                  %v711 = vld [vmem:[%s631 + $0xa20] sm:$0xff]
                  %712 = vst [vmem:[%s632 + $0x4c8] sm:$0xff] %v711
                  %v713 = vld [vmem:[%s631 + $0xaa0] sm:$0xff]
                  %714 = vst [vmem:[%s632 + $0x500] sm:$0xff] %v713
                  %v715 = vld [vmem:[%s631 + $0xaa8] sm:$0xff]
                  %716 = vst [vmem:[%s632 + $0x508] sm:$0xff] %v715
                  %v717 = vld [vmem:[%s631 + $0xb28] sm:$0xff]
                  %718 = vst [vmem:[%s632 + $0x540] sm:$0xff] %v717
                  %v719 = vld [vmem:[%s631 + $0xb30] sm:$0xff]
                  %720 = vst [vmem:[%s632 + $0x548] sm:$0xff] %v719
                  %v721 = vld [vmem:[%s631 + $0xbb0] sm:$0xff]
                  %722 = vst [vmem:[%s632 + $0x580] sm:$0xff] %v721
                  %v723 = vld [vmem:[%s631 + $0xbb8] sm:$0xff]
                  %724 = vst [vmem:[%s632 + $0x588] sm:$0xff] %v723
                  %v725 = vld [vmem:[%s631 + $0xc38] sm:$0xff]
                  %726 = vst [vmem:[%s632 + $0x5c0] sm:$0xff] %v725
                  %v727 = vld [vmem:[%s631 + $0xc40] sm:$0xff]
                  %728 = vst [vmem:[%s632 + $0x5c8] sm:$0xff] %v727
                  %v729 = vld [vmem:[%s631 + $0xcc0] sm:$0xff]
                  %730 = vst [vmem:[%s632 + $0x600] sm:$0xff] %v729
                  %v731 = vld [vmem:[%s631 + $0xcc8] sm:$0xff]
                  %732 = vst [vmem:[%s632 + $0x608] sm:$0xff] %v731
                  %v733 = vld [vmem:[%s631 + $0xd48] sm:$0xff]
                  %734 = vst [vmem:[%s632 + $0x640] sm:$0xff] %v733
                  %v735 = vld [vmem:[%s631 + $0xd50] sm:$0xff]
                  %736 = vst [vmem:[%s632 + $0x648] sm:$0xff] %v735
                  %v737 = vld [vmem:[%s631 + $0xdd0] sm:$0xff]
                  %738 = vst [vmem:[%s632 + $0x680] sm:$0xff] %v737
                  %v739 = vld [vmem:[%s631 + $0xdd8] sm:$0xff]
                  %740 = vst [vmem:[%s632 + $0x688] sm:$0xff] %v739
                  %v741 = vld [vmem:[%s631 + $0xe58] sm:$0xff]
                  %742 = vst [vmem:[%s632 + $0x6c0] sm:$0xff] %v741
                  %v743 = vld [vmem:[%s631 + $0xe60] sm:$0xff]
                  %744 = vst [vmem:[%s632 + $0x6c8] sm:$0xff] %v743
                  %v745 = vld [vmem:[%s631 + $0xee0] sm:$0xff]
                  %746 = vst [vmem:[%s632 + $0x700] sm:$0xff] %v745
                  %v747 = vld [vmem:[%s631 + $0xee8] sm:$0xff]
                  %748 = vst [vmem:[%s632 + $0x708] sm:$0xff] %v747
                  %v749 = vld [vmem:[%s631 + $0xf68] sm:$0xff]
                  %750 = vst [vmem:[%s632 + $0x740] sm:$0xff] %v749
                  %v751 = vld [vmem:[%s631 + $0xf70] sm:$0xff]
                  %752 = vst [vmem:[%s632 + $0x748] sm:$0xff] %v751
                  %v753 = vld [vmem:[%s631 + $0xff0] sm:$0xff]
                  %754 = vst [vmem:[%s632 + $0x780] sm:$0xff] %v753
                  %v755 = vld [vmem:[%s631 + $0xff8] sm:$0xff]
                  %756 = vst [vmem:[%s632 + $0x788] sm:$0xff] %v755
                  %v757 = vld [vmem:[%s631 + $0x1078] sm:$0xff]
                  %758 = vst [vmem:[%s632 + $0x7c0] sm:$0xff] %v757
                  %v759 = vld [vmem:[%s631 + $0x1080] sm:$0xff]
                  %760 = vst [vmem:[%s632 + $0x7c8] sm:$0xff] %v759
                  %v761 = vld [vmem:[%s631 + $0x1100] sm:$0xff]
                  %762 = vst [vmem:[%s632 + $0x800] sm:$0xff] %v761
                  %v763 = vld [vmem:[%s631 + $0x1108] sm:$0xff]
                  %764 = vst [vmem:[%s632 + $0x808] sm:$0xff] %v763
                  %v765 = vld [vmem:[%s631 + $0x1188] sm:$0xff]
                  %766 = vst [vmem:[%s632 + $0x840] sm:$0xff] %v765
                  %v767 = vld [vmem:[%s631 + $0x1190] sm:$0xff]
                  %768 = vst [vmem:[%s632 + $0x848] sm:$0xff] %v767
                  %v769 = vld [vmem:[%s631 + $0x1210] sm:$0xff]
                  %770 = vst [vmem:[%s632 + $0x880] sm:$0xff] %v769
                  %v771 = vld [vmem:[%s631 + $0x1218] sm:$0xff]
                  %772 = vst [vmem:[%s632 + $0x888] sm:$0xff] %v771
                  %v773 = vld [vmem:[%s631 + $0x1298] sm:$0xff]
                  %774 = vst [vmem:[%s632 + $0x8c0] sm:$0xff] %v773
                  %v775 = vld [vmem:[%s631 + $0x12a0] sm:$0xff]
                  %776 = vst [vmem:[%s632 + $0x8c8] sm:$0xff] %v775
                  %v777 = vld [vmem:[%s631 + $0x1320] sm:$0xff]
                  %778 = vst [vmem:[%s632 + $0x900] sm:$0xff] %v777
                  %v779 = vld [vmem:[%s631 + $0x1328] sm:$0xff]
                  %780 = vst [vmem:[%s632 + $0x908] sm:$0xff] %v779
                  %v781 = vld [vmem:[%s631 + $0x13a8] sm:$0xff]
                  %782 = vst [vmem:[%s632 + $0x940] sm:$0xff] %v781
                  %v783 = vld [vmem:[%s631 + $0x13b0] sm:$0xff]
                  %784 = vst [vmem:[%s632 + $0x948] sm:$0xff] %v783
                  %v785 = vld [vmem:[%s631 + $0x1430] sm:$0xff]
                  %786 = vst [vmem:[%s632 + $0x980] sm:$0xff] %v785
                  %v787 = vld [vmem:[%s631 + $0x1438] sm:$0xff]
                  %788 = vst [vmem:[%s632 + $0x988] sm:$0xff] %v787
                  %v789 = vld [vmem:[%s631 + $0x14b8] sm:$0xff]
                  %790 = vst [vmem:[%s632 + $0x9c0] sm:$0xff] %v789
                  %v791 = vld [vmem:[%s631 + $0x14c0] sm:$0xff]
                  %792 = vst [vmem:[%s632 + $0x9c8] sm:$0xff] %v791
                  %v793 = vld [vmem:[%s631 + $0x1540] sm:$0xff]
                  %794 = vst [vmem:[%s632 + $0xa00] sm:$0xff] %v793
                  %v795 = vld [vmem:[%s631 + $0x1548] sm:$0xff]
                  %796 = vst [vmem:[%s632 + $0xa08] sm:$0xff] %v795
                  %v797 = vld [vmem:[%s631 + $0x15c8] sm:$0xff]
                  %798 = vst [vmem:[%s632 + $0xa40] sm:$0xff] %v797
                  %v799 = vld [vmem:[%s631 + $0x15d0] sm:$0xff]
                  %800 = vst [vmem:[%s632 + $0xa48] sm:$0xff] %v799
                  %v801 = vld [vmem:[%s631 + $0x1650] sm:$0xff]
                  %802 = vst [vmem:[%s632 + $0xa80] sm:$0xff] %v801
                  %v803 = vld [vmem:[%s631 + $0x1658] sm:$0xff]
                  %804 = vst [vmem:[%s632 + $0xa88] sm:$0xff] %v803
                  %s805 = sadd.s32 1, %s630
                  %p806 = scmp.ge.s32.totalorder %s805, %s621
                  %s807 = scalar_select %p806, 0, %s805
                  %s808 = smul.u32 %s807, 16
                  %s809 = smul.u32 %s807, 16
                  %s810 = scalar_lea.vmem %s194, %s808
                  %s811 = scalar_lea.vmem %s186, %s809 [#allocation2]
                $region78: #{model_forward.1} parent=72 // loop_footer
                  %s627 = sadd.s32 %s625, 1
                $region79: #{model_forward.1} parent=72 // loop_footer_branch
                  %624 = sbr.rel target = $region75
                $region80: #{model_forward.1} parent=72 // loop_exit
                  _
                %s812 = sshrl.u32 %s620, 1
                %s813 = sand.u32 %s620, 1
                %s814 = smul.u32 %s812, 2
                %s815 = smul.u32 128, %s814
                %s816 = sshra.s32 %s815, 4
                %s817 = scalar_lea.vmem %s194, %s816
                %s818 = smul.u32 128, %s814
                %s819 = sshra.s32 %s818, 4
                %s820 = scalar_lea.vmem %s186, %s819 [#allocation2]
                // While loop
                $region81: #{model_forward.1} parent=72 // loop_pre_header
                  _
                $region82: #{model_forward.1} parent=72 // loop_header
                  %s824 = sphi 0, %s826
                  %p825 = scmp.ge.s32.totalorder %s824, %s813
                  %s829 = sphi 0, %s920
                  %s830 = sphi %s817, %s923
                  %s831 = sphi %s820, %s924
                $region83: #{model_forward.1} parent=72 // loop_header_branch
                  %828 = sbr.rel (%p825) target = $region87
                $region84: #{model_forward.1} parent=72 // loop_body
                  %v832 = vld [vmem:[%s830] sm:$0xff]
                  %833 = vst [vmem:[%s831] sm:$0xff] %v832
                  %v834 = vld [vmem:[%s830 + $0x88] sm:$0xff]
                  %835 = vst [vmem:[%s831 + $0x40] sm:$0xff] %v834
                  %v836 = vld [vmem:[%s830 + $0x110] sm:$0xff]
                  %837 = vst [vmem:[%s831 + $0x80] sm:$0xff] %v836
                  %v838 = vld [vmem:[%s830 + $0x198] sm:$0xff]
                  %839 = vst [vmem:[%s831 + $0xc0] sm:$0xff] %v838
                  %v840 = vld [vmem:[%s830 + $0x220] sm:$0xff]
                  %841 = vst [vmem:[%s831 + $0x100] sm:$0xff] %v840
                  %v842 = vld [vmem:[%s830 + $0x2a8] sm:$0xff]
                  %843 = vst [vmem:[%s831 + $0x140] sm:$0xff] %v842
                  %v844 = vld [vmem:[%s830 + $0x330] sm:$0xff]
                  %845 = vst [vmem:[%s831 + $0x180] sm:$0xff] %v844
                  %v846 = vld [vmem:[%s830 + $0x3b8] sm:$0xff]
                  %847 = vst [vmem:[%s831 + $0x1c0] sm:$0xff] %v846
                  %v848 = vld [vmem:[%s830 + $0x440] sm:$0xff]
                  %849 = vst [vmem:[%s831 + $0x200] sm:$0xff] %v848
                  %v850 = vld [vmem:[%s830 + $0x4c8] sm:$0xff]
                  %851 = vst [vmem:[%s831 + $0x240] sm:$0xff] %v850
                  %v852 = vld [vmem:[%s830 + $0x550] sm:$0xff]
                  %853 = vst [vmem:[%s831 + $0x280] sm:$0xff] %v852
                  %v854 = vld [vmem:[%s830 + $0x5d8] sm:$0xff]
                  %855 = vst [vmem:[%s831 + $0x2c0] sm:$0xff] %v854
                  %v856 = vld [vmem:[%s830 + $0x660] sm:$0xff]
                  %857 = vst [vmem:[%s831 + $0x300] sm:$0xff] %v856
                  %v858 = vld [vmem:[%s830 + $0x6e8] sm:$0xff]
                  %859 = vst [vmem:[%s831 + $0x340] sm:$0xff] %v858
                  %v860 = vld [vmem:[%s830 + $0x770] sm:$0xff]
                  %861 = vst [vmem:[%s831 + $0x380] sm:$0xff] %v860
                  %v862 = vld [vmem:[%s830 + $0x7f8] sm:$0xff]
                  %863 = vst [vmem:[%s831 + $0x3c0] sm:$0xff] %v862
                  %v864 = vld [vmem:[%s830 + $0x880] sm:$0xff]
                  %865 = vst [vmem:[%s831 + $0x400] sm:$0xff] %v864
                  %v866 = vld [vmem:[%s830 + $0x908] sm:$0xff]
                  %867 = vst [vmem:[%s831 + $0x440] sm:$0xff] %v866
                  %v868 = vld [vmem:[%s830 + $0x990] sm:$0xff]
                  %869 = vst [vmem:[%s831 + $0x480] sm:$0xff] %v868
                  %v870 = vld [vmem:[%s830 + $0xa18] sm:$0xff]
                  %871 = vst [vmem:[%s831 + $0x4c0] sm:$0xff] %v870
                  %v872 = vld [vmem:[%s830 + $0xaa0] sm:$0xff]
                  %873 = vst [vmem:[%s831 + $0x500] sm:$0xff] %v872
                  %v874 = vld [vmem:[%s830 + $0xb28] sm:$0xff]
                  %875 = vst [vmem:[%s831 + $0x540] sm:$0xff] %v874
                  %v876 = vld [vmem:[%s830 + $0xbb0] sm:$0xff]
                  %877 = vst [vmem:[%s831 + $0x580] sm:$0xff] %v876
                  %v878 = vld [vmem:[%s830 + $0xc38] sm:$0xff]
                  %879 = vst [vmem:[%s831 + $0x5c0] sm:$0xff] %v878
                  %v880 = vld [vmem:[%s830 + $0xcc0] sm:$0xff]
                  %881 = vst [vmem:[%s831 + $0x600] sm:$0xff] %v880
                  %v882 = vld [vmem:[%s830 + $0xd48] sm:$0xff]
                  %883 = vst [vmem:[%s831 + $0x640] sm:$0xff] %v882
                  %v884 = vld [vmem:[%s830 + $0xdd0] sm:$0xff]
                  %885 = vst [vmem:[%s831 + $0x680] sm:$0xff] %v884
                  %v886 = vld [vmem:[%s830 + $0xe58] sm:$0xff]
                  %887 = vst [vmem:[%s831 + $0x6c0] sm:$0xff] %v886
                  %v888 = vld [vmem:[%s830 + $0xee0] sm:$0xff]
                  %889 = vst [vmem:[%s831 + $0x700] sm:$0xff] %v888
                  %v890 = vld [vmem:[%s830 + $0xf68] sm:$0xff]
                  %891 = vst [vmem:[%s831 + $0x740] sm:$0xff] %v890
                  %v892 = vld [vmem:[%s830 + $0xff0] sm:$0xff]
                  %893 = vst [vmem:[%s831 + $0x780] sm:$0xff] %v892
                  %v894 = vld [vmem:[%s830 + $0x1078] sm:$0xff]
                  %895 = vst [vmem:[%s831 + $0x7c0] sm:$0xff] %v894
                  %v896 = vld [vmem:[%s830 + $0x1100] sm:$0xff]
                  %897 = vst [vmem:[%s831 + $0x800] sm:$0xff] %v896
                  %v898 = vld [vmem:[%s830 + $0x1188] sm:$0xff]
                  %899 = vst [vmem:[%s831 + $0x840] sm:$0xff] %v898
                  %v900 = vld [vmem:[%s830 + $0x1210] sm:$0xff]
                  %901 = vst [vmem:[%s831 + $0x880] sm:$0xff] %v900
                  %v902 = vld [vmem:[%s830 + $0x1298] sm:$0xff]
                  %903 = vst [vmem:[%s831 + $0x8c0] sm:$0xff] %v902
                  %v904 = vld [vmem:[%s830 + $0x1320] sm:$0xff]
                  %905 = vst [vmem:[%s831 + $0x900] sm:$0xff] %v904
                  %v906 = vld [vmem:[%s830 + $0x13a8] sm:$0xff]
                  %907 = vst [vmem:[%s831 + $0x940] sm:$0xff] %v906
                  %v908 = vld [vmem:[%s830 + $0x1430] sm:$0xff]
                  %909 = vst [vmem:[%s831 + $0x980] sm:$0xff] %v908
                  %v910 = vld [vmem:[%s830 + $0x14b8] sm:$0xff]
                  %911 = vst [vmem:[%s831 + $0x9c0] sm:$0xff] %v910
                  %v912 = vld [vmem:[%s830 + $0x1540] sm:$0xff]
                  %913 = vst [vmem:[%s831 + $0xa00] sm:$0xff] %v912
                  %v914 = vld [vmem:[%s830 + $0x15c8] sm:$0xff]
                  %915 = vst [vmem:[%s831 + $0xa40] sm:$0xff] %v914
                  %v916 = vld [vmem:[%s830 + $0x1650] sm:$0xff]
                  %917 = vst [vmem:[%s831 + $0xa80] sm:$0xff] %v916
                  %s918 = sadd.s32 1, %s829
                  %p919 = scmp.ge.s32.totalorder %s918, %s813
                  %s920 = scalar_select %p919, 0, %s918
                  %s921 = smul.u32 %s920, 8
                  %s922 = smul.u32 %s920, 8
                  %s923 = scalar_lea.vmem %s817, %s921
                  %s924 = scalar_lea.vmem %s820, %s922 [#allocation2]
                $region85: #{model_forward.1} parent=72 // loop_footer
                  %s826 = sadd.s32 %s824, 1
                $region86: #{model_forward.1} parent=72 // loop_footer_branch
                  %823 = sbr.rel target = $region82
                $region87: #{model_forward.1} parent=72 // loop_exit
                  _
                %s925 = sshll.u32 1, %s615
                %s926 = ssub.s32 %s925, 1
                loop: start=0, step=1, limit=1
                $region88: #{model_forward.1} parent=72 // loop_pre_header
                  _
                $region89: #{model_forward.1} parent=72 // loop_header
                  %s928 = sphi 0, %s932
                  %p929 = scmp.ge.s32.totalorder %s928, 1
                  %s933 = sphi %s617, %s617
                  %s934 = sphi %s619, %s619
                $region90: #{model_forward.1} parent=72 // loop_header_branch
                  %931 = sbr.rel (%p929) target = $region94
                $region91: #{model_forward.1} parent=72 // loop_body
                  %v935 = vld [vmem:[%s933] sm:%s926]
                  %936 = vst [vmem:[%s934] sm:%s926] %v935
                  %v937 = vld [vmem:[%s933 + $0x88] sm:%s926]
                  %938 = vst [vmem:[%s934 + $0x40] sm:%s926] %v937
                  %v939 = vld [vmem:[%s933 + $0x110] sm:%s926]
                  %940 = vst [vmem:[%s934 + $0x80] sm:%s926] %v939
                  %v941 = vld [vmem:[%s933 + $0x198] sm:%s926]
                  %942 = vst [vmem:[%s934 + $0xc0] sm:%s926] %v941
                  %v943 = vld [vmem:[%s933 + $0x220] sm:%s926]
                  %944 = vst [vmem:[%s934 + $0x100] sm:%s926] %v943
                  %v945 = vld [vmem:[%s933 + $0x2a8] sm:%s926]
                  %946 = vst [vmem:[%s934 + $0x140] sm:%s926] %v945
                  %v947 = vld [vmem:[%s933 + $0x330] sm:%s926]
                  %948 = vst [vmem:[%s934 + $0x180] sm:%s926] %v947
                  %v949 = vld [vmem:[%s933 + $0x3b8] sm:%s926]
                  %950 = vst [vmem:[%s934 + $0x1c0] sm:%s926] %v949
                  %v951 = vld [vmem:[%s933 + $0x440] sm:%s926]
                  %952 = vst [vmem:[%s934 + $0x200] sm:%s926] %v951
                  %v953 = vld [vmem:[%s933 + $0x4c8] sm:%s926]
                  %954 = vst [vmem:[%s934 + $0x240] sm:%s926] %v953
                  %v955 = vld [vmem:[%s933 + $0x550] sm:%s926]
                  %956 = vst [vmem:[%s934 + $0x280] sm:%s926] %v955
                  %v957 = vld [vmem:[%s933 + $0x5d8] sm:%s926]
                  %958 = vst [vmem:[%s934 + $0x2c0] sm:%s926] %v957
                  %v959 = vld [vmem:[%s933 + $0x660] sm:%s926]
                  %960 = vst [vmem:[%s934 + $0x300] sm:%s926] %v959
                  %v961 = vld [vmem:[%s933 + $0x6e8] sm:%s926]
                  %962 = vst [vmem:[%s934 + $0x340] sm:%s926] %v961
                  %v963 = vld [vmem:[%s933 + $0x770] sm:%s926]
                  %964 = vst [vmem:[%s934 + $0x380] sm:%s926] %v963
                  %v965 = vld [vmem:[%s933 + $0x7f8] sm:%s926]
                  %966 = vst [vmem:[%s934 + $0x3c0] sm:%s926] %v965
                  %v967 = vld [vmem:[%s933 + $0x880] sm:%s926]
                  %968 = vst [vmem:[%s934 + $0x400] sm:%s926] %v967
                  %v969 = vld [vmem:[%s933 + $0x908] sm:%s926]
                  %970 = vst [vmem:[%s934 + $0x440] sm:%s926] %v969
                  %v971 = vld [vmem:[%s933 + $0x990] sm:%s926]
                  %972 = vst [vmem:[%s934 + $0x480] sm:%s926] %v971
                  %v973 = vld [vmem:[%s933 + $0xa18] sm:%s926]
                  %974 = vst [vmem:[%s934 + $0x4c0] sm:%s926] %v973
                  %v975 = vld [vmem:[%s933 + $0xaa0] sm:%s926]
                  %976 = vst [vmem:[%s934 + $0x500] sm:%s926] %v975
                  %v977 = vld [vmem:[%s933 + $0xb28] sm:%s926]
                  %978 = vst [vmem:[%s934 + $0x540] sm:%s926] %v977
                  %v979 = vld [vmem:[%s933 + $0xbb0] sm:%s926]
                  %980 = vst [vmem:[%s934 + $0x580] sm:%s926] %v979
                  %v981 = vld [vmem:[%s933 + $0xc38] sm:%s926]
                  %982 = vst [vmem:[%s934 + $0x5c0] sm:%s926] %v981
                  %v983 = vld [vmem:[%s933 + $0xcc0] sm:%s926]
                  %984 = vst [vmem:[%s934 + $0x600] sm:%s926] %v983
                  %v985 = vld [vmem:[%s933 + $0xd48] sm:%s926]
                  %986 = vst [vmem:[%s934 + $0x640] sm:%s926] %v985
                  %v987 = vld [vmem:[%s933 + $0xdd0] sm:%s926]
                  %988 = vst [vmem:[%s934 + $0x680] sm:%s926] %v987
                  %v989 = vld [vmem:[%s933 + $0xe58] sm:%s926]
                  %990 = vst [vmem:[%s934 + $0x6c0] sm:%s926] %v989
                  %v991 = vld [vmem:[%s933 + $0xee0] sm:%s926]
                  %992 = vst [vmem:[%s934 + $0x700] sm:%s926] %v991
                  %v993 = vld [vmem:[%s933 + $0xf68] sm:%s926]
                  %994 = vst [vmem:[%s934 + $0x740] sm:%s926] %v993
                  %v995 = vld [vmem:[%s933 + $0xff0] sm:%s926]
                  %996 = vst [vmem:[%s934 + $0x780] sm:%s926] %v995
                  %v997 = vld [vmem:[%s933 + $0x1078] sm:%s926]
                  %998 = vst [vmem:[%s934 + $0x7c0] sm:%s926] %v997
                  %v999 = vld [vmem:[%s933 + $0x1100] sm:%s926]
                  %1000 = vst [vmem:[%s934 + $0x800] sm:%s926] %v999
                  %v1001 = vld [vmem:[%s933 + $0x1188] sm:%s926]
                  %1002 = vst [vmem:[%s934 + $0x840] sm:%s926] %v1001
                  %v1003 = vld [vmem:[%s933 + $0x1210] sm:%s926]
                  %1004 = vst [vmem:[%s934 + $0x880] sm:%s926] %v1003
                  %v1005 = vld [vmem:[%s933 + $0x1298] sm:%s926]
                  %1006 = vst [vmem:[%s934 + $0x8c0] sm:%s926] %v1005
                  %v1007 = vld [vmem:[%s933 + $0x1320] sm:%s926]
                  %1008 = vst [vmem:[%s934 + $0x900] sm:%s926] %v1007
                  %v1009 = vld [vmem:[%s933 + $0x13a8] sm:%s926]
                  %1010 = vst [vmem:[%s934 + $0x940] sm:%s926] %v1009
                  %v1011 = vld [vmem:[%s933 + $0x1430] sm:%s926]
                  %1012 = vst [vmem:[%s934 + $0x980] sm:%s926] %v1011
                  %v1013 = vld [vmem:[%s933 + $0x14b8] sm:%s926]
                  %1014 = vst [vmem:[%s934 + $0x9c0] sm:%s926] %v1013
                  %v1015 = vld [vmem:[%s933 + $0x1540] sm:%s926]
                  %1016 = vst [vmem:[%s934 + $0xa00] sm:%s926] %v1015
                  %v1017 = vld [vmem:[%s933 + $0x15c8] sm:%s926]
                  %1018 = vst [vmem:[%s934 + $0xa40] sm:%s926] %v1017
                  %v1019 = vld [vmem:[%s933 + $0x1650] sm:%s926]
                  %1020 = vst [vmem:[%s934 + $0xa80] sm:%s926] %v1019
                $region92: #{model_forward.1} parent=72 // loop_footer
                  %s932 = sadd.s32 1, %s928
                $region93: #{model_forward.1} parent=72 // loop_footer_branch
                  %927 = sbr.rel target = $region89
                $region94: #{model_forward.1} parent=72 // loop_exit
                  _
              $region73: #{model_forward.1} parent=39 // pred_fallthru
                _
            $region40: #{model_forward.1} parent=35 // pred_fallthru
              _
            // Predicated region
            $region41: #{model_forward.1} parent=35 // pred_check
              %p203 = pneg %p199
            $region42: #{model_forward.1} parent=35 // pred_check_branch
              %205 = sbr.rel (%p203) target = $region44
            $region43: #{model_forward.1} parent=35 // pred_region
              %s206 = sshll.u32 1, %s195
              %s207 = ssub.s32 %s206, 1
              loop: start=0, step=1, limit=1
              $region45: #{model_forward.1} parent=43 // loop_pre_header
                _
              $region46: #{model_forward.1} parent=43 // loop_header
                %s209 = sphi 0, %s213
                %p210 = scmp.ge.s32.totalorder %s209, 1
                %s214 = sphi %s194, %s194
                %s215 = sphi %s186, %s186
              $region47: #{model_forward.1} parent=43 // loop_header_branch
                %212 = sbr.rel (%p210) target = $region51
              $region48: #{model_forward.1} parent=43 // loop_body
                %v216 = vld [vmem:[%s214] sm:%s207]
                %217 = vst [vmem:[%s215] sm:%s207] %v216
                %v218 = vld [vmem:[%s214 + $0x88] sm:%s207]
                %219 = vst [vmem:[%s215 + $0x40] sm:%s207] %v218
                %v220 = vld [vmem:[%s214 + $0x110] sm:%s207]
                %221 = vst [vmem:[%s215 + $0x80] sm:%s207] %v220
                %v222 = vld [vmem:[%s214 + $0x198] sm:%s207]
                %223 = vst [vmem:[%s215 + $0xc0] sm:%s207] %v222
                %v224 = vld [vmem:[%s214 + $0x220] sm:%s207]
                %225 = vst [vmem:[%s215 + $0x100] sm:%s207] %v224
                %v226 = vld [vmem:[%s214 + $0x2a8] sm:%s207]
                %227 = vst [vmem:[%s215 + $0x140] sm:%s207] %v226
                %v228 = vld [vmem:[%s214 + $0x330] sm:%s207]
                %229 = vst [vmem:[%s215 + $0x180] sm:%s207] %v228
                %v230 = vld [vmem:[%s214 + $0x3b8] sm:%s207]
                %231 = vst [vmem:[%s215 + $0x1c0] sm:%s207] %v230
                %v232 = vld [vmem:[%s214 + $0x440] sm:%s207]
                %233 = vst [vmem:[%s215 + $0x200] sm:%s207] %v232
                %v234 = vld [vmem:[%s214 + $0x4c8] sm:%s207]
                %235 = vst [vmem:[%s215 + $0x240] sm:%s207] %v234
                %v236 = vld [vmem:[%s214 + $0x550] sm:%s207]
                %237 = vst [vmem:[%s215 + $0x280] sm:%s207] %v236
                %v238 = vld [vmem:[%s214 + $0x5d8] sm:%s207]
                %239 = vst [vmem:[%s215 + $0x2c0] sm:%s207] %v238
                %v240 = vld [vmem:[%s214 + $0x660] sm:%s207]
                %241 = vst [vmem:[%s215 + $0x300] sm:%s207] %v240
                %v242 = vld [vmem:[%s214 + $0x6e8] sm:%s207]
                %243 = vst [vmem:[%s215 + $0x340] sm:%s207] %v242
                %v244 = vld [vmem:[%s214 + $0x770] sm:%s207]
                %245 = vst [vmem:[%s215 + $0x380] sm:%s207] %v244
                %v246 = vld [vmem:[%s214 + $0x7f8] sm:%s207]
                %247 = vst [vmem:[%s215 + $0x3c0] sm:%s207] %v246
                %v248 = vld [vmem:[%s214 + $0x880] sm:%s207]
                %249 = vst [vmem:[%s215 + $0x400] sm:%s207] %v248
                %v250 = vld [vmem:[%s214 + $0x908] sm:%s207]
                %251 = vst [vmem:[%s215 + $0x440] sm:%s207] %v250
                %v252 = vld [vmem:[%s214 + $0x990] sm:%s207]
                %253 = vst [vmem:[%s215 + $0x480] sm:%s207] %v252
                %v254 = vld [vmem:[%s214 + $0xa18] sm:%s207]
                %255 = vst [vmem:[%s215 + $0x4c0] sm:%s207] %v254
                %v256 = vld [vmem:[%s214 + $0xaa0] sm:%s207]
                %257 = vst [vmem:[%s215 + $0x500] sm:%s207] %v256
                %v258 = vld [vmem:[%s214 + $0xb28] sm:%s207]
                %259 = vst [vmem:[%s215 + $0x540] sm:%s207] %v258
                %v260 = vld [vmem:[%s214 + $0xbb0] sm:%s207]
                %261 = vst [vmem:[%s215 + $0x580] sm:%s207] %v260
                %v262 = vld [vmem:[%s214 + $0xc38] sm:%s207]
                %263 = vst [vmem:[%s215 + $0x5c0] sm:%s207] %v262
                %v264 = vld [vmem:[%s214 + $0xcc0] sm:%s207]
                %265 = vst [vmem:[%s215 + $0x600] sm:%s207] %v264
                %v266 = vld [vmem:[%s214 + $0xd48] sm:%s207]
                %267 = vst [vmem:[%s215 + $0x640] sm:%s207] %v266
                %v268 = vld [vmem:[%s214 + $0xdd0] sm:%s207]
                %269 = vst [vmem:[%s215 + $0x680] sm:%s207] %v268
                %v270 = vld [vmem:[%s214 + $0xe58] sm:%s207]
                %271 = vst [vmem:[%s215 + $0x6c0] sm:%s207] %v270
                %v272 = vld [vmem:[%s214 + $0xee0] sm:%s207]
                %273 = vst [vmem:[%s215 + $0x700] sm:%s207] %v272
                %v274 = vld [vmem:[%s214 + $0xf68] sm:%s207]
                %275 = vst [vmem:[%s215 + $0x740] sm:%s207] %v274
                %v276 = vld [vmem:[%s214 + $0xff0] sm:%s207]
                %277 = vst [vmem:[%s215 + $0x780] sm:%s207] %v276
                %v278 = vld [vmem:[%s214 + $0x1078] sm:%s207]
                %279 = vst [vmem:[%s215 + $0x7c0] sm:%s207] %v278
                %v280 = vld [vmem:[%s214 + $0x1100] sm:%s207]
                %281 = vst [vmem:[%s215 + $0x800] sm:%s207] %v280
                %v282 = vld [vmem:[%s214 + $0x1188] sm:%s207]
                %283 = vst [vmem:[%s215 + $0x840] sm:%s207] %v282
                %v284 = vld [vmem:[%s214 + $0x1210] sm:%s207]
                %285 = vst [vmem:[%s215 + $0x880] sm:%s207] %v284
                %v286 = vld [vmem:[%s214 + $0x1298] sm:%s207]
                %287 = vst [vmem:[%s215 + $0x8c0] sm:%s207] %v286
                %v288 = vld [vmem:[%s214 + $0x1320] sm:%s207]
                %289 = vst [vmem:[%s215 + $0x900] sm:%s207] %v288
                %v290 = vld [vmem:[%s214 + $0x13a8] sm:%s207]
                %291 = vst [vmem:[%s215 + $0x940] sm:%s207] %v290
                %v292 = vld [vmem:[%s214 + $0x1430] sm:%s207]
                %293 = vst [vmem:[%s215 + $0x980] sm:%s207] %v292
                %v294 = vld [vmem:[%s214 + $0x14b8] sm:%s207]
                %295 = vst [vmem:[%s215 + $0x9c0] sm:%s207] %v294
                %v296 = vld [vmem:[%s214 + $0x1540] sm:%s207]
                %297 = vst [vmem:[%s215 + $0xa00] sm:%s207] %v296
                %v298 = vld [vmem:[%s214 + $0x15c8] sm:%s207]
                %299 = vst [vmem:[%s215 + $0xa40] sm:%s207] %v298
                %v300 = vld [vmem:[%s214 + $0x1650] sm:%s207]
                %301 = vst [vmem:[%s215 + $0xa80] sm:%s207] %v300
              $region49: #{model_forward.1} parent=43 // loop_footer
                %s213 = sadd.s32 1, %s209
              $region50: #{model_forward.1} parent=43 // loop_footer_branch
                %208 = sbr.rel target = $region46
              $region51: #{model_forward.1} parent=43 // loop_exit
                _
            $region44: #{model_forward.1} parent=35 // pred_fallthru
              _
          $region36: #{model_forward.1} parent=31 // pred_fallthru
            _
          %1021 = vnop
        $region32: #{model_forward.1} parent=27 // pred_fallthru
          _
        // Predicated region
        $region95: #{model_forward.1} parent=27 // pred_check
          %p1022 = pneg %p120
        $region96: #{model_forward.1} parent=27 // pred_check_branch
          %1024 = sbr.rel (%p1022) target = $region98
        $region97: #{model_forward.1} parent=27 // pred_region
          %s1025 = smul.u32 8, %s11
          %s1026 = ssub.s32 17, %s1025
          %p1027 = scmp.lt.s32.totalorder %s1026, 8
          %s1028 = scalar_select %p1027, %s1026, 8
          %s1029 = smul.u32 32, %s1028
          %p1030 = scmp.lt.s32.totalorder %s1025, 16
          %s1031 = scalar_select %p1030, %s1025, 16
          %s1032 = smul.addr %s1031, 2
          %s1033 = scalar_lea.vmem %s4, %s1032
          %s1034 = smul.u32 8, %s11
          %s1035 = ssub.s32 17, %s1034
          %p1036 = scmp.lt.s32.totalorder %s1035, 8
          %s1037 = scalar_select %p1036, %s1035, 8
          %s1038 = smul.u32 32, %s1037
        $region98: #{model_forward.1} parent=27 // pred_fallthru
          _
      $region28: #{model_forward.1} parent=5 // pred_fallthru
        _
      %p1039 = scmp.le.s32.totalorder 1, %s11
      %p1040 = scmp.lt.s32.totalorder %s11, 4
      %p1041 = pnand %p1039, %p1040
      %p1042 = pneg %p1041
      // Predicated region
      $region99: #{model_forward.1} parent=5 // pred_check
        _
      $region100: #{model_forward.1} parent=5 // pred_check_branch
        %1044 = sbr.rel (%p1041) target = $region102
      $region101: #{model_forward.1} parent=5 // pred_region
        %s1045 = ssub.s32 %s11, 1
        %s1046 = sand.u32 %s87, 1
        %s1047 = sand.u32 %s87, 1
        %s1048 = smul.addr %s1047, 2752
        %s1049 = scalar_lea.vmem [#allocation2], %s1048
        // Predicated region
        $region103: #{model_forward.1} parent=101 // pred_check
          %p1050 = pneg %p100
        $region104: #{model_forward.1} parent=101 // pred_check_branch
          %1052 = sbr.rel (%p1050) target = $region106
        $region105: #{model_forward.1} parent=101 // pred_region
          _
        $region106: #{model_forward.1} parent=101 // pred_fallthru
          _
        %p1053 = pneg %p32
        %p1054 = pneg %p29
        %p1055 = pneg %p53
        %p1056 = pneg %p50
        %p1057 = pneg %p74
        %p1058 = pneg %p71
        %s1059 = sand.u32 %s87, 1
        %s1060 = sand.u32 %s87, 1
        %s1061 = smul.addr %s1060, 2752
        %s1062 = scalar_lea.vmem [#allocation2], %s1061
        %p1063 = pneg %p100
        %p1064 = pneg %p97
        %s1065 = smul.u32 8, %s16
        %s1066 = ssub.s32 17, %s1065
        %p1067 = scmp.lt.s32.totalorder %s1066, 8
        %s1068 = scalar_select %p1067, %s1066, 8
        %s1069 = smul.u32 32, %s1068
        %p1070 = scmp.lt.s32.totalorder %s1065, 16
        %s1071 = scalar_select %p1070, %s1065, 16
        %s1072 = smul.addr %s1071, 2
        %s1073 = scalar_lea.vmem %s4, %s1072
        %p1074 = pneg %p126
        %p1075 = pneg %p123
        %p1076 = pneg %p152
        %p1077 = pneg %p149
        %s1078 = sand.u32 %s139, 1
        %s1079 = sand.u32 %s139, 1
        %s1080 = smul.addr %s1079, 448
        %s1081 = scalar_lea.vmem [#allocation3], %s1080
        %s1082 = smul.u32 8, %s16
        %s1083 = ssub.s32 17, %s1082
        %p1084 = scmp.lt.s32.totalorder %s1083, 8
        %s1085 = scalar_select %p1084, %s1083, 8
        %s1086 = smul.u32 5504, %s1085
        %s1087 = smul.u32 8, %s16
        %s1088 = ssub.s32 17, %s1087
        %p1089 = scmp.lt.s32.totalorder %s1088, 8
        %s1090 = scalar_select %p1089, %s1088, 8
        %s1091 = smul.u32 32, %s1090
        %p1092 = scmp.lt.s32.totalorder %s1087, 16
        %s1093 = scalar_select %p1092, %s1087, 16
        %s1094 = smul.addr %s1093, 2
        %s1095 = scalar_lea.vmem %s4, %s1094
        %s1096 = smul.u32 8, %s16
        %s1097 = ssub.s32 17, %s1096
        %p1098 = scmp.lt.s32.totalorder %s1097, 8
        %s1099 = scalar_select %p1098, %s1097, 8
        %s1100 = smul.u32 32, %s1099
        %s1101 = smul.u32 8, %s16
        %s1102 = ssub.s32 17, %s1101
        %p1103 = scmp.lt.s32.totalorder %s1102, 8
        %s1104 = scalar_select %p1103, %s1102, 8
        %s1105 = smul.u32 896, %s1104
        %v1106 = vld [vmem:[%s0] sm:$0xff]
        %v1107 = vld [vmem:[%s0 + $0x8] sm:$0xff]
        %v1108 = vld [vmem:[%s0 + $0x10] sm:$0xff]
        %v1109 = vld [vmem:[%s0 + $0x18] sm:$0xff]
        %v1110 = vld [vmem:[%s0 + $0x20] sm:$0xff]
        %v1111 = vld [vmem:[%s0 + $0x28] sm:$0xff]
        %v1112 = vld [vmem:[%s0 + $0x30] sm:$0xff]
        %v1113 = vld [vmem:[%s0 + $0x38] sm:$0xff]
        %v1114 = vld [vmem:[%s0 + $0x40] sm:$0xff]
        %v1115 = vld [vmem:[%s0 + $0x48] sm:$0xff]
        %v1116 = vld [vmem:[%s0 + $0x50] sm:$0xff]
        %v1117 = vld [vmem:[%s0 + $0x58] sm:$0xff]
        %v1118 = vld [vmem:[%s0 + $0x60] sm:$0xff]
        %v1119 = vld [vmem:[%s0 + $0x68] sm:$0xff]
        %v1120 = vld [vmem:[%s0 + $0x70] sm:$0xff]
        %v1121 = vld [vmem:[%s0 + $0x78] sm:$0xff]
        %v1122 = vld [vmem:[%s0 + $0x80] sm:$0xff]
        %v1123 = vld [vmem:[%s0 + $0x88] sm:$0xff]
        %v1124 = vld [vmem:[%s0 + $0x90] sm:$0x1]
        %v1125 = vld [vmem:[%s0 + $0x98] sm:$0x1]
        %v1126 = vld [vmem:[%s0 + $0xa0] sm:$0x1]
        %v1127 = vld [vmem:[%s1] sm:$0xff]
        %v1128 = vld [vmem:[%s1 + $0x8] sm:$0xff]
        %v1129 = vld [vmem:[%s1 + $0x10] sm:$0xff]
        %v1130 = vld [vmem:[%s1 + $0x18] sm:$0xff]
        %v1131 = vld [vmem:[%s1 + $0x20] sm:$0xff]
        %v1132 = vld [vmem:[%s1 + $0x28] sm:$0xff]
        %v1133 = vld [vmem:[%s1 + $0x30] sm:$0xff]
        %v1134 = vld [vmem:[%s1 + $0x38] sm:$0xff]
        %v1135 = vld [vmem:[%s1 + $0x40] sm:$0xff]
        %v1136 = vld [vmem:[%s1 + $0x48] sm:$0xff]
        %v1137 = vld [vmem:[%s1 + $0x50] sm:$0xff]
        %v1138 = vld [vmem:[%s1 + $0x58] sm:$0xff]
        %v1139 = vld [vmem:[%s1 + $0x60] sm:$0xff]
        %v1140 = vld [vmem:[%s1 + $0x68] sm:$0xff]
        %v1141 = vld [vmem:[%s1 + $0x70] sm:$0xff]
        %v1142 = vld [vmem:[%s1 + $0x78] sm:$0xff]
        %v1143 = vld [vmem:[%s1 + $0x80] sm:$0xff]
        %v1144 = vld [vmem:[%s1 + $0x88] sm:$0xff]
        %v1145 = vld [vmem:[%s1 + $0x90] sm:$0x1]
        %v1146 = vld [vmem:[%s1 + $0x98] sm:$0x1]
        %v1147 = vld [vmem:[%s1 + $0xa0] sm:$0x1]
        %v1148 = vadd.f32 %v1106, %v1109
        %v1149 = vadd.f32 %v1148, %v1112
        %v1150 = vadd.f32 %v1149, %v1115
        %v1151 = vadd.f32 %v1150, %v1118
        %v1152 = vadd.f32 %v1151, %v1121
        %vm1153 = vcmask 1040384
        %v1154 = vsel %vm1153, %v1124, 0.0
        %v1155 = vadd.f32 %v1152, %v1154
        %v1156 = vrot.slane %v1155, 4
        %v1157 = vadd.f32 %v1155, %v1156
        %v1158 = vrot.slane %v1157, 2
        %v1159 = vadd.f32 %v1157, %v1158
        %v1160 = vrot.slane %v1159, 1
        %v1161 = vadd.f32 %v1159, %v1160
        %v1162 = vadd.f32 %v1107, %v1110
        %v1163 = vadd.f32 %v1162, %v1113
        %v1164 = vadd.f32 %v1163, %v1116
        %v1165 = vadd.f32 %v1164, %v1119
        %v1166 = vadd.f32 %v1165, %v1122
        %v1167 = vsel %vm1153, %v1125, 0.0
        %v1168 = vadd.f32 %v1166, %v1167
        %v1169 = vrot.slane %v1168, 4
        %v1170 = vadd.f32 %v1168, %v1169
        %v1171 = vrot.slane %v1170, 2
        %v1172 = vadd.f32 %v1170, %v1171
        %v1173 = vrot.slane %v1172, 1
        %v1174 = vadd.f32 %v1172, %v1173
        %vm1175 = vcmask 719872
        %v1176 = vsel %vm1175, %v1108, 0.0
        %v1177 = vsel %vm1175, %v1111, 0.0
        %v1178 = vadd.f32 %v1176, %v1177
        %v1179 = vsel %vm1175, %v1114, 0.0
        %v1180 = vadd.f32 %v1178, %v1179
        %v1181 = vsel %vm1175, %v1117, 0.0
        %v1182 = vadd.f32 %v1180, %v1181
        %v1183 = vsel %vm1175, %v1120, 0.0
        %v1184 = vadd.f32 %v1182, %v1183
        %v1185 = vsel %vm1175, %v1123, 0.0
        %v1186 = vadd.f32 %v1184, %v1185
        %vm1187 = vcmask 712704
        %v1188 = vsel %vm1187, %v1126, 0.0
        %v1189 = vadd.f32 %v1186, %v1188
        %v1190 = vrot.slane %v1189, 4
        %v1191 = vadd.f32 %v1189, %v1190
        %v1192 = vrot.slane %v1191, 2
        %v1193 = vadd.f32 %v1191, %v1192
        %v1194 = vrot.slane %v1193, 1
        %v1195 = vadd.f32 %v1193, %v1194
        %v1196 = vrcp.pop 49.0
        %v1197 = vmul.f32 %v1161, %v1196
        %v1198 = vmul.f32 %v1174, %v1196
        %v1199 = vmul.f32 %v1195, %v1196
        %v1200 = vsub.f32 %v1106, %v1197
        %v1201 = vsub.f32 %v1107, %v1198
        %v1202 = vsub.f32 %v1108, %v1199
        %v1203 = vsub.f32 %v1109, %v1197
        %v1204 = vsub.f32 %v1110, %v1198
        %v1205 = vsub.f32 %v1111, %v1199
        %v1206 = vsub.f32 %v1112, %v1197
        %v1207 = vsub.f32 %v1113, %v1198
        %v1208 = vsub.f32 %v1114, %v1199
        %v1209 = vsub.f32 %v1115, %v1197
        %v1210 = vsub.f32 %v1116, %v1198
        %v1211 = vsub.f32 %v1117, %v1199
        %v1212 = vsub.f32 %v1118, %v1197
        %v1213 = vsub.f32 %v1119, %v1198
        %v1214 = vsub.f32 %v1120, %v1199
        %v1215 = vsub.f32 %v1121, %v1197
        %v1216 = vsub.f32 %v1122, %v1198
        %v1217 = vsub.f32 %v1123, %v1199
        %v1218 = vsub.f32 %v1124, %v1197
        %v1219 = vsub.f32 %v1125, %v1198
        %v1220 = vsub.f32 %v1126, %v1199
        %v1221 = vmul.f32 %v1200, %v1200
        %v1222 = vmul.f32 %v1201, %v1201
        %v1223 = vmul.f32 %v1202, %v1202
        %v1224 = vmul.f32 %v1203, %v1203
        %v1225 = vmul.f32 %v1204, %v1204
        %v1226 = vmul.f32 %v1205, %v1205
        %v1227 = vmul.f32 %v1206, %v1206
        %v1228 = vmul.f32 %v1207, %v1207
        %v1229 = vmul.f32 %v1208, %v1208
        %v1230 = vmul.f32 %v1209, %v1209
        %v1231 = vmul.f32 %v1210, %v1210
        %v1232 = vmul.f32 %v1211, %v1211
        %v1233 = vmul.f32 %v1212, %v1212
        %v1234 = vmul.f32 %v1213, %v1213
        %v1235 = vmul.f32 %v1214, %v1214
        %v1236 = vmul.f32 %v1215, %v1215
        %v1237 = vmul.f32 %v1216, %v1216
        %v1238 = vmul.f32 %v1217, %v1217
        %v1239 = vmul.f32 %v1218, %v1218
        %v1240 = vmul.f32 %v1219, %v1219
        %v1241 = vmul.f32 %v1220, %v1220
        %v1242 = vadd.f32 %v1221, %v1224
        %v1243 = vadd.f32 %v1242, %v1227
        %v1244 = vadd.f32 %v1243, %v1230
        %v1245 = vadd.f32 %v1244, %v1233
        %v1246 = vadd.f32 %v1245, %v1236
        %v1247 = vsel %vm1153, %v1239, 0.0
        %v1248 = vadd.f32 %v1246, %v1247
        %v1249 = vrot.slane %v1248, 4
        %v1250 = vadd.f32 %v1248, %v1249
        %v1251 = vrot.slane %v1250, 2
        %v1252 = vadd.f32 %v1250, %v1251
        %v1253 = vrot.slane %v1252, 1
        %v1254 = vadd.f32 %v1252, %v1253
        %v1255 = vadd.f32 %v1222, %v1225
        %v1256 = vadd.f32 %v1255, %v1228
        %v1257 = vadd.f32 %v1256, %v1231
        %v1258 = vadd.f32 %v1257, %v1234
        %v1259 = vadd.f32 %v1258, %v1237
        %v1260 = vsel %vm1153, %v1240, 0.0
        %v1261 = vadd.f32 %v1259, %v1260
        %v1262 = vrot.slane %v1261, 4
        %v1263 = vadd.f32 %v1261, %v1262
        %v1264 = vrot.slane %v1263, 2
        %v1265 = vadd.f32 %v1263, %v1264
        %v1266 = vrot.slane %v1265, 1
        %v1267 = vadd.f32 %v1265, %v1266
        %v1268 = vsel %vm1175, %v1223, 0.0
        %v1269 = vsel %vm1175, %v1226, 0.0
        %v1270 = vadd.f32 %v1268, %v1269
        %v1271 = vsel %vm1175, %v1229, 0.0
        %v1272 = vadd.f32 %v1270, %v1271
        %v1273 = vsel %vm1175, %v1232, 0.0
        %v1274 = vadd.f32 %v1272, %v1273
        %v1275 = vsel %vm1175, %v1235, 0.0
        %v1276 = vadd.f32 %v1274, %v1275
        %v1277 = vsel %vm1175, %v1238, 0.0
        %v1278 = vadd.f32 %v1276, %v1277
        %v1279 = vsel %vm1187, %v1241, 0.0
        %v1280 = vadd.f32 %v1278, %v1279
        %v1281 = vrot.slane %v1280, 4
        %v1282 = vadd.f32 %v1280, %v1281
        %v1283 = vrot.slane %v1282, 2
        %v1284 = vadd.f32 %v1282, %v1283
        %v1285 = vrot.slane %v1284, 1
        %v1286 = vadd.f32 %v1284, %v1285
        %v1287 = vmul.f32 %v1254, %v1196
        %v1288 = vmul.f32 %v1267, %v1196
        %v1289 = vmul.f32 %v1286, %v1196
        %v1290 = vld [vmem:[%s2] ss:$2 sm:$0x7]
        %v1292 = vlaneseq
        %v1293 = vshrl.u32 %v1292, 7
        %v1294 = vsub.s32 0, %v1293
        %v1295 = vrot.slane %v1290, %v1294
        %v1296 = vlaneseq
        %v1297 = vshrl.u32 %v1296, 7
        %v1298 = vsub.s32 1, %v1297
        %v1299 = vrot.slane %v1290, %v1298
        %v1300 = vlaneseq
        %v1301 = vshrl.u32 %v1300, 7
        %v1302 = vsub.s32 2, %v1301
        %v1303 = vrot.slane %v1290, %v1302
        %v1307 = vmul.f32 %v1295, %v1200
        %v1308 = vmul.f32 %v1299, %v1201
        %v1309 = vmul.f32 %v1303, %v1202
        %v1310 = vmul.f32 %v1295, %v1203
        %v1311 = vmul.f32 %v1299, %v1204
        %v1312 = vmul.f32 %v1303, %v1205
        %v1313 = vmul.f32 %v1295, %v1206
        %v1314 = vmul.f32 %v1299, %v1207
        %v1315 = vmul.f32 %v1303, %v1208
        %v1316 = vmul.f32 %v1295, %v1209
        %v1317 = vmul.f32 %v1299, %v1210
        %v1318 = vmul.f32 %v1303, %v1211
        %v1319 = vmul.f32 %v1295, %v1212
        %v1320 = vmul.f32 %v1299, %v1213
        %v1321 = vmul.f32 %v1303, %v1214
        %v1322 = vmul.f32 %v1295, %v1215
        %v1323 = vmul.f32 %v1299, %v1216
        %v1324 = vmul.f32 %v1303, %v1217
        %v1325 = vmul.f32 %v1295, %v1218
        %v1326 = vmul.f32 %v1299, %v1219
        %v1327 = vmul.f32 %v1303, %v1220
        %v1328 = vadd.f32 %v1287, 1e-05
        %v1329 = vadd.f32 %v1288, 1e-05
        %v1330 = vadd.f32 %v1289, 1e-05
        %v1331 = vrsqrt.pop %v1328
        %v1332 = vrsqrt.pop %v1329
        %v1333 = vrsqrt.pop %v1330
        %v1334 = vmul.f32 %v1307, %v1331
        %v1335 = vmul.f32 %v1308, %v1332
        %v1336 = vmul.f32 %v1309, %v1333
        %v1337 = vmul.f32 %v1310, %v1331
        %v1338 = vmul.f32 %v1311, %v1332
        %v1339 = vmul.f32 %v1312, %v1333
        %v1340 = vmul.f32 %v1313, %v1331
        %v1341 = vmul.f32 %v1314, %v1332
        %v1342 = vmul.f32 %v1315, %v1333
        %v1343 = vmul.f32 %v1316, %v1331
        %v1344 = vmul.f32 %v1317, %v1332
        %v1345 = vmul.f32 %v1318, %v1333
        %v1346 = vmul.f32 %v1319, %v1331
        %v1347 = vmul.f32 %v1320, %v1332
        %v1348 = vmul.f32 %v1321, %v1333
        %v1349 = vmul.f32 %v1322, %v1331
        %v1350 = vmul.f32 %v1323, %v1332
        %v1351 = vmul.f32 %v1324, %v1333
        %v1352 = vmul.f32 %v1325, %v1331
        %v1353 = vmul.f32 %v1326, %v1332
        %v1354 = vmul.f32 %v1327, %v1333
        %s1355 = scalar_lea.vmem %s2, 1
        %v1356 = vld [vmem:[%s1355] ss:$2 sm:$0x7]
        %v1358 = vlaneseq
        %v1359 = vshrl.u32 %v1358, 7
        %v1360 = vsub.s32 0, %v1359
        %v1361 = vrot.slane %v1356, %v1360
        %v1362 = vlaneseq
        %v1363 = vshrl.u32 %v1362, 7
        %v1364 = vsub.s32 1, %v1363
        %v1365 = vrot.slane %v1356, %v1364
        %v1366 = vlaneseq
        %v1367 = vshrl.u32 %v1366, 7
        %v1368 = vsub.s32 2, %v1367
        %v1369 = vrot.slane %v1356, %v1368
        %v1373 = vadd.f32 %v1334, %v1361
        %v1374 = vadd.f32 %v1335, %v1365
        %v1375 = vadd.f32 %v1336, %v1369
        %v1376 = vadd.f32 %v1337, %v1361
        %v1377 = vadd.f32 %v1338, %v1365
        %v1378 = vadd.f32 %v1339, %v1369
        %v1379 = vadd.f32 %v1340, %v1361
        %v1380 = vadd.f32 %v1341, %v1365
        %v1381 = vadd.f32 %v1342, %v1369
        %v1382 = vadd.f32 %v1343, %v1361
        %v1383 = vadd.f32 %v1344, %v1365
        %v1384 = vadd.f32 %v1345, %v1369
        %v1385 = vadd.f32 %v1346, %v1361
        %v1386 = vadd.f32 %v1347, %v1365
        %v1387 = vadd.f32 %v1348, %v1369
        %v1388 = vadd.f32 %v1349, %v1361
        %v1389 = vadd.f32 %v1350, %v1365
        %v1390 = vadd.f32 %v1351, %v1369
        %v1391 = vadd.f32 %v1352, %v1361
        %v1392 = vadd.f32 %v1353, %v1365
        %v1393 = vadd.f32 %v1354, %v1369
        %v1394 = vadd.f32 %v1373, %v1127
        %v1395 = vadd.f32 %v1374, %v1128
        %v1396 = vadd.f32 %v1375, %v1129
        %v1397 = vadd.f32 %v1376, %v1130
        %v1398 = vadd.f32 %v1377, %v1131
        %v1399 = vadd.f32 %v1378, %v1132
        %v1400 = vadd.f32 %v1379, %v1133
        %v1401 = vadd.f32 %v1380, %v1134
        %v1402 = vadd.f32 %v1381, %v1135
        %v1403 = vadd.f32 %v1382, %v1136
        %v1404 = vadd.f32 %v1383, %v1137
        %v1405 = vadd.f32 %v1384, %v1138
        %v1406 = vadd.f32 %v1385, %v1139
        %v1407 = vadd.f32 %v1386, %v1140
        %v1408 = vadd.f32 %v1387, %v1141
        %v1409 = vadd.f32 %v1388, %v1142
        %v1410 = vadd.f32 %v1389, %v1143
        %v1411 = vadd.f32 %v1390, %v1144
        %v1412 = vadd.f32 %v1391, %v1145
        %v1413 = vadd.f32 %v1392, %v1146
        %v1414 = vadd.f32 %v1393, %v1147
        %v1415 = vld [vmem:[%s1049] sm:$0xff]
        %v1416 = vld [vmem:[%s1049 + $0x8] sm:$0xff]
        %v1417 = vld [vmem:[%s1049 + $0x10] sm:$0xff]
        %v1418 = vld [vmem:[%s1049 + $0x18] sm:$0xff]
        %v1419 = vld [vmem:[%s1049 + $0x20] sm:$0xff]
        %v1420 = vld [vmem:[%s1049 + $0x28] sm:$0xff]
        %v1421 = vld [vmem:[%s1049 + $0x30] sm:$0xff]
        %v1422 = vld [vmem:[%s1049 + $0x38] sm:$0xff]
        %v1423 = vld [vmem:[%s1049 + $0x40] sm:$0xff]
        %v1424 = vld [vmem:[%s1049 + $0x48] sm:$0xff]
        %v1425 = vld [vmem:[%s1049 + $0x50] sm:$0xff]
        %v1426 = vld [vmem:[%s1049 + $0x58] sm:$0xff]
        %v1427 = vld [vmem:[%s1049 + $0x60] sm:$0xff]
        %v1428 = vld [vmem:[%s1049 + $0x68] sm:$0xff]
        %v1429 = vld [vmem:[%s1049 + $0x70] sm:$0xff]
        %v1430 = vld [vmem:[%s1049 + $0x78] sm:$0xff]
        %v1431 = vld [vmem:[%s1049 + $0x80] sm:$0xff]
        %v1432 = vld [vmem:[%s1049 + $0x88] sm:$0xff]
        %v1433 = vld [vmem:[%s1049 + $0x90] sm:$0xff]
        %v1434 = vld [vmem:[%s1049 + $0x98] sm:$0xff]
        %v1435 = vld [vmem:[%s1049 + $0xa0] sm:$0xff]
        %v1436 = vld [vmem:[%s1049 + $0xa8] sm:$0xff]
        %v1437 = vld [vmem:[%s1049 + $0xb0] sm:$0xff]
        %v1438 = vld [vmem:[%s1049 + $0xb8] sm:$0xff]
        %v1439 = vld [vmem:[%s1049 + $0xc0] sm:$0xff]
        %v1440 = vld [vmem:[%s1049 + $0xc8] sm:$0xff]
        %v1441 = vld [vmem:[%s1049 + $0xd0] sm:$0xff]
        %v1442 = vld [vmem:[%s1049 + $0xd8] sm:$0xff]
        %v1443 = vld [vmem:[%s1049 + $0xe0] sm:$0xff]
        %v1444 = vld [vmem:[%s1049 + $0xe8] sm:$0xff]
        %v1445 = vld [vmem:[%s1049 + $0xf0] sm:$0xff]
        %v1446 = vld [vmem:[%s1049 + $0xf8] sm:$0xff]
        %v1447 = vld [vmem:[%s1049 + $0x100] sm:$0xff]
        %v1448 = vld [vmem:[%s1049 + $0x108] sm:$0xff]
        %v1449 = vld [vmem:[%s1049 + $0x110] sm:$0xff]
        %v1450 = vld [vmem:[%s1049 + $0x118] sm:$0xff]
        %v1451 = vld [vmem:[%s1049 + $0x120] sm:$0xff]
        %v1452 = vld [vmem:[%s1049 + $0x128] sm:$0xff]
        %v1453 = vld [vmem:[%s1049 + $0x130] sm:$0xff]
        %v1454 = vld [vmem:[%s1049 + $0x138] sm:$0xff]
        %v1455 = vld [vmem:[%s1049 + $0x140] sm:$0xff]
        %v1456 = vld [vmem:[%s1049 + $0x148] sm:$0xff]
        %v1457 = vld [vmem:[%s1049 + $0x150] sm:$0xff]
        %v1458 = vld [vmem:[%s1049 + $0x158] sm:$0xff]
        %v1459 = vld [vmem:[%s1049 + $0x160] sm:$0xff]
        %v1460 = vld [vmem:[%s1049 + $0x168] sm:$0xff]
        %v1461 = vld [vmem:[%s1049 + $0x170] sm:$0xff]
        %v1462 = vld [vmem:[%s1049 + $0x178] sm:$0xff]
        %v1463 = vld [vmem:[%s1049 + $0x180] sm:$0xff]
        %v1464 = vld [vmem:[%s1049 + $0x188] sm:$0xff]
        %v1465 = vld [vmem:[%s1049 + $0x190] sm:$0xff]
        %v1466 = vld [vmem:[%s1049 + $0x198] sm:$0xff]
        %v1467 = vld [vmem:[%s1049 + $0x1a0] sm:$0xff]
        %v1468 = vld [vmem:[%s1049 + $0x1a8] sm:$0xff]
        %v1469 = vld [vmem:[%s1049 + $0x1b0] sm:$0xff]
        %v1470 = vld [vmem:[%s1049 + $0x1b8] sm:$0xff]
        %v1471 = vld [vmem:[%s1049 + $0x1c0] sm:$0xff]
        %v1472 = vld [vmem:[%s1049 + $0x1c8] sm:$0xff]
        %v1473 = vld [vmem:[%s1049 + $0x1d0] sm:$0xff]
        %v1474 = vld [vmem:[%s1049 + $0x1d8] sm:$0xff]
        %v1475 = vld [vmem:[%s1049 + $0x1e0] sm:$0xff]
        %v1476 = vld [vmem:[%s1049 + $0x1e8] sm:$0xff]
        %v1477 = vld [vmem:[%s1049 + $0x1f0] sm:$0xff]
        %v1478 = vld [vmem:[%s1049 + $0x1f8] sm:$0xff]
        %v1479 = vld [vmem:[%s1049 + $0x200] sm:$0xff]
        %v1480 = vld [vmem:[%s1049 + $0x208] sm:$0xff]
        %v1481 = vld [vmem:[%s1049 + $0x210] sm:$0xff]
        %v1482 = vld [vmem:[%s1049 + $0x218] sm:$0xff]
        %v1483 = vld [vmem:[%s1049 + $0x220] sm:$0xff]
        %v1484 = vld [vmem:[%s1049 + $0x228] sm:$0xff]
        %v1485 = vld [vmem:[%s1049 + $0x230] sm:$0xff]
        %v1486 = vld [vmem:[%s1049 + $0x238] sm:$0xff]
        %v1487 = vld [vmem:[%s1049 + $0x240] sm:$0xff]
        %v1488 = vld [vmem:[%s1049 + $0x248] sm:$0xff]
        %v1489 = vld [vmem:[%s1049 + $0x250] sm:$0xff]
        %v1490 = vld [vmem:[%s1049 + $0x258] sm:$0xff]
        %v1491 = vld [vmem:[%s1049 + $0x260] sm:$0xff]
        %v1492 = vld [vmem:[%s1049 + $0x268] sm:$0xff]
        %v1493 = vld [vmem:[%s1049 + $0x270] sm:$0xff]
        %v1494 = vld [vmem:[%s1049 + $0x278] sm:$0xff]
        %v1495 = vld [vmem:[%s1049 + $0x280] sm:$0xff]
        %v1496 = vld [vmem:[%s1049 + $0x288] sm:$0xff]
        %v1497 = vld [vmem:[%s1049 + $0x290] sm:$0xff]
        %v1498 = vld [vmem:[%s1049 + $0x298] sm:$0xff]
        %v1499 = vld [vmem:[%s1049 + $0x2a0] sm:$0xff]
        %v1500 = vld [vmem:[%s1049 + $0x2a8] sm:$0xff]
        %v1501 = vld [vmem:[%s1049 + $0x2b0] sm:$0xff]
        %v1502 = vld [vmem:[%s1049 + $0x2b8] sm:$0xff]
        %v1503 = vld [vmem:[%s1049 + $0x2c0] sm:$0xff]
        %v1504 = vld [vmem:[%s1049 + $0x2c8] sm:$0xff]
        %v1505 = vld [vmem:[%s1049 + $0x2d0] sm:$0xff]
        %v1506 = vld [vmem:[%s1049 + $0x2d8] sm:$0xff]
        %v1507 = vld [vmem:[%s1049 + $0x2e0] sm:$0xff]
        %v1508 = vld [vmem:[%s1049 + $0x2e8] sm:$0xff]
        %v1509 = vld [vmem:[%s1049 + $0x2f0] sm:$0xff]
        %v1510 = vld [vmem:[%s1049 + $0x2f8] sm:$0xff]
        %v1511 = vld [vmem:[%s1049 + $0x300] sm:$0xff]
        %v1512 = vld [vmem:[%s1049 + $0x308] sm:$0xff]
        %v1513 = vld [vmem:[%s1049 + $0x310] sm:$0xff]
        %v1514 = vld [vmem:[%s1049 + $0x318] sm:$0xff]
        %v1515 = vld [vmem:[%s1049 + $0x320] sm:$0xff]
        %v1516 = vld [vmem:[%s1049 + $0x328] sm:$0xff]
        %v1517 = vld [vmem:[%s1049 + $0x330] sm:$0xff]
        %v1518 = vld [vmem:[%s1049 + $0x338] sm:$0xff]
        %v1519 = vld [vmem:[%s1049 + $0x340] sm:$0xff]
        %v1520 = vld [vmem:[%s1049 + $0x348] sm:$0xff]
        %v1521 = vld [vmem:[%s1049 + $0x350] sm:$0xff]
        %v1522 = vld [vmem:[%s1049 + $0x358] sm:$0xff]
        %v1523 = vld [vmem:[%s1049 + $0x360] sm:$0xff]
        %v1524 = vld [vmem:[%s1049 + $0x368] sm:$0xff]
        %v1525 = vld [vmem:[%s1049 + $0x370] sm:$0xff]
        %v1526 = vld [vmem:[%s1049 + $0x378] sm:$0xff]
        %v1527 = vld [vmem:[%s1049 + $0x380] sm:$0xff]
        %v1528 = vld [vmem:[%s1049 + $0x388] sm:$0xff]
        %v1529 = vld [vmem:[%s1049 + $0x390] sm:$0xff]
        %v1530 = vld [vmem:[%s1049 + $0x398] sm:$0xff]
        %v1531 = vld [vmem:[%s1049 + $0x3a0] sm:$0xff]
        %v1532 = vld [vmem:[%s1049 + $0x3a8] sm:$0xff]
        %v1533 = vld [vmem:[%s1049 + $0x3b0] sm:$0xff]
        %v1534 = vld [vmem:[%s1049 + $0x3b8] sm:$0xff]
        %v1535 = vld [vmem:[%s1049 + $0x3c0] sm:$0xff]
        %v1536 = vld [vmem:[%s1049 + $0x3c8] sm:$0xff]
        %v1537 = vld [vmem:[%s1049 + $0x3d0] sm:$0xff]
        %v1538 = vld [vmem:[%s1049 + $0x3d8] sm:$0xff]
        %v1539 = vld [vmem:[%s1049 + $0x3e0] sm:$0xff]
        %v1540 = vld [vmem:[%s1049 + $0x3e8] sm:$0xff]
        %v1541 = vld [vmem:[%s1049 + $0x3f0] sm:$0xff]
        %v1542 = vld [vmem:[%s1049 + $0x3f8] sm:$0xff]
        %v1543 = vld [vmem:[%s1049 + $0x400] sm:$0xff]
        %v1544 = vld [vmem:[%s1049 + $0x408] sm:$0xff]
        %v1545 = vld [vmem:[%s1049 + $0x410] sm:$0xff]
        %v1546 = vld [vmem:[%s1049 + $0x418] sm:$0xff]
        %v1547 = vld [vmem:[%s1049 + $0x420] sm:$0xff]
        %v1548 = vld [vmem:[%s1049 + $0x428] sm:$0xff]
        %v1549 = vld [vmem:[%s1049 + $0x430] sm:$0xff]
        %v1550 = vld [vmem:[%s1049 + $0x438] sm:$0xff]
        %v1551 = vld [vmem:[%s1049 + $0x440] sm:$0xff]
        %v1552 = vld [vmem:[%s1049 + $0x448] sm:$0xff]
        %v1553 = vld [vmem:[%s1049 + $0x450] sm:$0xff]
        %v1554 = vld [vmem:[%s1049 + $0x458] sm:$0xff]
        %v1555 = vld [vmem:[%s1049 + $0x460] sm:$0xff]
        %v1556 = vld [vmem:[%s1049 + $0x468] sm:$0xff]
        %v1557 = vld [vmem:[%s1049 + $0x470] sm:$0xff]
        %v1558 = vld [vmem:[%s1049 + $0x478] sm:$0xff]
        %v1559 = vld [vmem:[%s1049 + $0x480] sm:$0xff]
        %v1560 = vld [vmem:[%s1049 + $0x488] sm:$0xff]
        %v1561 = vld [vmem:[%s1049 + $0x490] sm:$0xff]
        %v1562 = vld [vmem:[%s1049 + $0x498] sm:$0xff]
        %v1563 = vld [vmem:[%s1049 + $0x4a0] sm:$0xff]
        %v1564 = vld [vmem:[%s1049 + $0x4a8] sm:$0xff]
        %v1565 = vld [vmem:[%s1049 + $0x4b0] sm:$0xff]
        %v1566 = vld [vmem:[%s1049 + $0x4b8] sm:$0xff]
        %v1567 = vld [vmem:[%s1049 + $0x4c0] sm:$0xff]
        %v1568 = vld [vmem:[%s1049 + $0x4c8] sm:$0xff]
        %v1569 = vld [vmem:[%s1049 + $0x4d0] sm:$0xff]
        %v1570 = vld [vmem:[%s1049 + $0x4d8] sm:$0xff]
        %v1571 = vld [vmem:[%s1049 + $0x4e0] sm:$0xff]
        %v1572 = vld [vmem:[%s1049 + $0x4e8] sm:$0xff]
        %v1573 = vld [vmem:[%s1049 + $0x4f0] sm:$0xff]
        %v1574 = vld [vmem:[%s1049 + $0x4f8] sm:$0xff]
        %v1575 = vld [vmem:[%s1049 + $0x500] sm:$0xff]
        %v1576 = vld [vmem:[%s1049 + $0x508] sm:$0xff]
        %v1577 = vld [vmem:[%s1049 + $0x510] sm:$0xff]
        %v1578 = vld [vmem:[%s1049 + $0x518] sm:$0xff]
        %v1579 = vld [vmem:[%s1049 + $0x520] sm:$0xff]
        %v1580 = vld [vmem:[%s1049 + $0x528] sm:$0xff]
        %v1581 = vld [vmem:[%s1049 + $0x530] sm:$0xff]
        %v1582 = vld [vmem:[%s1049 + $0x538] sm:$0xff]
        %v1583 = vld [vmem:[%s1049 + $0x540] sm:$0xff]
        %v1584 = vld [vmem:[%s1049 + $0x548] sm:$0xff]
        %v1585 = vld [vmem:[%s1049 + $0x550] sm:$0xff]
        %v1586 = vld [vmem:[%s1049 + $0x558] sm:$0xff]
        %v1587 = vld [vmem:[%s1049 + $0x560] sm:$0xff]
        %v1588 = vld [vmem:[%s1049 + $0x568] sm:$0xff]
        %v1589 = vld [vmem:[%s1049 + $0x570] sm:$0xff]
        %v1590 = vld [vmem:[%s1049 + $0x578] sm:$0xff]
        %v1591 = vld [vmem:[%s1049 + $0x580] sm:$0xff]
        %v1592 = vld [vmem:[%s1049 + $0x588] sm:$0xff]
        %v1593 = vld [vmem:[%s1049 + $0x590] sm:$0xff]
        %v1594 = vld [vmem:[%s1049 + $0x598] sm:$0xff]
        %v1595 = vld [vmem:[%s1049 + $0x5a0] sm:$0xff]
        %v1596 = vld [vmem:[%s1049 + $0x5a8] sm:$0xff]
        %v1597 = vld [vmem:[%s1049 + $0x5b0] sm:$0xff]
        %v1598 = vld [vmem:[%s1049 + $0x5b8] sm:$0xff]
        %v1599 = vld [vmem:[%s1049 + $0x5c0] sm:$0xff]
        %v1600 = vld [vmem:[%s1049 + $0x5c8] sm:$0xff]
        %v1601 = vld [vmem:[%s1049 + $0x5d0] sm:$0xff]
        %v1602 = vld [vmem:[%s1049 + $0x5d8] sm:$0xff]
        %v1603 = vld [vmem:[%s1049 + $0x5e0] sm:$0xff]
        %v1604 = vld [vmem:[%s1049 + $0x5e8] sm:$0xff]
        %v1605 = vld [vmem:[%s1049 + $0x5f0] sm:$0xff]
        %v1606 = vld [vmem:[%s1049 + $0x5f8] sm:$0xff]
        %v1607 = vld [vmem:[%s1049 + $0x600] sm:$0xff]
        %v1608 = vld [vmem:[%s1049 + $0x608] sm:$0xff]
        %v1609 = vld [vmem:[%s1049 + $0x610] sm:$0xff]
        %v1610 = vld [vmem:[%s1049 + $0x618] sm:$0xff]
        %v1611 = vld [vmem:[%s1049 + $0x620] sm:$0xff]
        %v1612 = vld [vmem:[%s1049 + $0x628] sm:$0xff]
        %v1613 = vld [vmem:[%s1049 + $0x630] sm:$0xff]
        %v1614 = vld [vmem:[%s1049 + $0x638] sm:$0xff]
        %v1615 = vld [vmem:[%s1049 + $0x640] sm:$0xff]
        %v1616 = vld [vmem:[%s1049 + $0x648] sm:$0xff]
        %v1617 = vld [vmem:[%s1049 + $0x650] sm:$0xff]
        %v1618 = vld [vmem:[%s1049 + $0x658] sm:$0xff]
        %v1619 = vld [vmem:[%s1049 + $0x660] sm:$0xff]
        %v1620 = vld [vmem:[%s1049 + $0x668] sm:$0xff]
        %v1621 = vld [vmem:[%s1049 + $0x670] sm:$0xff]
        %v1622 = vld [vmem:[%s1049 + $0x678] sm:$0xff]
        %v1623 = vld [vmem:[%s1049 + $0x680] sm:$0xff]
        %v1624 = vld [vmem:[%s1049 + $0x688] sm:$0xff]
        %v1625 = vld [vmem:[%s1049 + $0x690] sm:$0xff]
        %v1626 = vld [vmem:[%s1049 + $0x698] sm:$0xff]
        %v1627 = vld [vmem:[%s1049 + $0x6a0] sm:$0xff]
        %v1628 = vld [vmem:[%s1049 + $0x6a8] sm:$0xff]
        %v1629 = vld [vmem:[%s1049 + $0x6b0] sm:$0xff]
        %v1630 = vld [vmem:[%s1049 + $0x6b8] sm:$0xff]
        %v1631 = vld [vmem:[%s1049 + $0x6c0] sm:$0xff]
        %v1632 = vld [vmem:[%s1049 + $0x6c8] sm:$0xff]
        %v1633 = vld [vmem:[%s1049 + $0x6d0] sm:$0xff]
        %v1634 = vld [vmem:[%s1049 + $0x6d8] sm:$0xff]
        %v1635 = vld [vmem:[%s1049 + $0x6e0] sm:$0xff]
        %v1636 = vld [vmem:[%s1049 + $0x6e8] sm:$0xff]
        %v1637 = vld [vmem:[%s1049 + $0x6f0] sm:$0xff]
        %v1638 = vld [vmem:[%s1049 + $0x6f8] sm:$0xff]
        %v1639 = vld [vmem:[%s1049 + $0x700] sm:$0xff]
        %v1640 = vld [vmem:[%s1049 + $0x708] sm:$0xff]
        %v1641 = vld [vmem:[%s1049 + $0x710] sm:$0xff]
        %v1642 = vld [vmem:[%s1049 + $0x718] sm:$0xff]
        %v1643 = vld [vmem:[%s1049 + $0x720] sm:$0xff]
        %v1644 = vld [vmem:[%s1049 + $0x728] sm:$0xff]
        %v1645 = vld [vmem:[%s1049 + $0x730] sm:$0xff]
        %v1646 = vld [vmem:[%s1049 + $0x738] sm:$0xff]
        %v1647 = vld [vmem:[%s1049 + $0x740] sm:$0xff]
        %v1648 = vld [vmem:[%s1049 + $0x748] sm:$0xff]
        %v1649 = vld [vmem:[%s1049 + $0x750] sm:$0xff]
        %v1650 = vld [vmem:[%s1049 + $0x758] sm:$0xff]
        %v1651 = vld [vmem:[%s1049 + $0x760] sm:$0xff]
        %v1652 = vld [vmem:[%s1049 + $0x768] sm:$0xff]
        %v1653 = vld [vmem:[%s1049 + $0x770] sm:$0xff]
        %v1654 = vld [vmem:[%s1049 + $0x778] sm:$0xff]
        %v1655 = vld [vmem:[%s1049 + $0x780] sm:$0xff]
        %v1656 = vld [vmem:[%s1049 + $0x788] sm:$0xff]
        %v1657 = vld [vmem:[%s1049 + $0x790] sm:$0xff]
        %v1658 = vld [vmem:[%s1049 + $0x798] sm:$0xff]
        %v1659 = vld [vmem:[%s1049 + $0x7a0] sm:$0xff]
        %v1660 = vld [vmem:[%s1049 + $0x7a8] sm:$0xff]
        %v1661 = vld [vmem:[%s1049 + $0x7b0] sm:$0xff]
        %v1662 = vld [vmem:[%s1049 + $0x7b8] sm:$0xff]
        %v1663 = vld [vmem:[%s1049 + $0x7c0] sm:$0xff]
        %v1664 = vld [vmem:[%s1049 + $0x7c8] sm:$0xff]
        %v1665 = vld [vmem:[%s1049 + $0x7d0] sm:$0xff]
        %v1666 = vld [vmem:[%s1049 + $0x7d8] sm:$0xff]
        %v1667 = vld [vmem:[%s1049 + $0x7e0] sm:$0xff]
        %v1668 = vld [vmem:[%s1049 + $0x7e8] sm:$0xff]
        %v1669 = vld [vmem:[%s1049 + $0x7f0] sm:$0xff]
        %v1670 = vld [vmem:[%s1049 + $0x7f8] sm:$0xff]
        %v1671 = vld [vmem:[%s1049 + $0x800] sm:$0xff]
        %v1672 = vld [vmem:[%s1049 + $0x808] sm:$0xff]
        %v1673 = vld [vmem:[%s1049 + $0x810] sm:$0xff]
        %v1674 = vld [vmem:[%s1049 + $0x818] sm:$0xff]
        %v1675 = vld [vmem:[%s1049 + $0x820] sm:$0xff]
        %v1676 = vld [vmem:[%s1049 + $0x828] sm:$0xff]
        %v1677 = vld [vmem:[%s1049 + $0x830] sm:$0xff]
        %v1678 = vld [vmem:[%s1049 + $0x838] sm:$0xff]
        %v1679 = vld [vmem:[%s1049 + $0x840] sm:$0xff]
        %v1680 = vld [vmem:[%s1049 + $0x848] sm:$0xff]
        %v1681 = vld [vmem:[%s1049 + $0x850] sm:$0xff]
        %v1682 = vld [vmem:[%s1049 + $0x858] sm:$0xff]
        %v1683 = vld [vmem:[%s1049 + $0x860] sm:$0xff]
        %v1684 = vld [vmem:[%s1049 + $0x868] sm:$0xff]
        %v1685 = vld [vmem:[%s1049 + $0x870] sm:$0xff]
        %v1686 = vld [vmem:[%s1049 + $0x878] sm:$0xff]
        %v1687 = vld [vmem:[%s1049 + $0x880] sm:$0xff]
        %v1688 = vld [vmem:[%s1049 + $0x888] sm:$0xff]
        %v1689 = vld [vmem:[%s1049 + $0x890] sm:$0xff]
        %v1690 = vld [vmem:[%s1049 + $0x898] sm:$0xff]
        %v1691 = vld [vmem:[%s1049 + $0x8a0] sm:$0xff]
        %v1692 = vld [vmem:[%s1049 + $0x8a8] sm:$0xff]
        %v1693 = vld [vmem:[%s1049 + $0x8b0] sm:$0xff]
        %v1694 = vld [vmem:[%s1049 + $0x8b8] sm:$0xff]
        %v1695 = vld [vmem:[%s1049 + $0x8c0] sm:$0xff]
        %v1696 = vld [vmem:[%s1049 + $0x8c8] sm:$0xff]
        %v1697 = vld [vmem:[%s1049 + $0x8d0] sm:$0xff]
        %v1698 = vld [vmem:[%s1049 + $0x8d8] sm:$0xff]
        %v1699 = vld [vmem:[%s1049 + $0x8e0] sm:$0xff]
        %v1700 = vld [vmem:[%s1049 + $0x8e8] sm:$0xff]
        %v1701 = vld [vmem:[%s1049 + $0x8f0] sm:$0xff]
        %v1702 = vld [vmem:[%s1049 + $0x8f8] sm:$0xff]
        %v1703 = vld [vmem:[%s1049 + $0x900] sm:$0xff]
        %v1704 = vld [vmem:[%s1049 + $0x908] sm:$0xff]
        %v1705 = vld [vmem:[%s1049 + $0x910] sm:$0xff]
        %v1706 = vld [vmem:[%s1049 + $0x918] sm:$0xff]
        %v1707 = vld [vmem:[%s1049 + $0x920] sm:$0xff]
        %v1708 = vld [vmem:[%s1049 + $0x928] sm:$0xff]
        %v1709 = vld [vmem:[%s1049 + $0x930] sm:$0xff]
        %v1710 = vld [vmem:[%s1049 + $0x938] sm:$0xff]
        %v1711 = vld [vmem:[%s1049 + $0x940] sm:$0xff]
        %v1712 = vld [vmem:[%s1049 + $0x948] sm:$0xff]
        %v1713 = vld [vmem:[%s1049 + $0x950] sm:$0xff]
        %v1714 = vld [vmem:[%s1049 + $0x958] sm:$0xff]
        %v1715 = vld [vmem:[%s1049 + $0x960] sm:$0xff]
        %v1716 = vld [vmem:[%s1049 + $0x968] sm:$0xff]
        %v1717 = vld [vmem:[%s1049 + $0x970] sm:$0xff]
        %v1718 = vld [vmem:[%s1049 + $0x978] sm:$0xff]
        %v1719 = vld [vmem:[%s1049 + $0x980] sm:$0xff]
        %v1720 = vld [vmem:[%s1049 + $0x988] sm:$0xff]
        %v1721 = vld [vmem:[%s1049 + $0x990] sm:$0xff]
        %v1722 = vld [vmem:[%s1049 + $0x998] sm:$0xff]
        %v1723 = vld [vmem:[%s1049 + $0x9a0] sm:$0xff]
        %v1724 = vld [vmem:[%s1049 + $0x9a8] sm:$0xff]
        %v1725 = vld [vmem:[%s1049 + $0x9b0] sm:$0xff]
        %v1726 = vld [vmem:[%s1049 + $0x9b8] sm:$0xff]
        %v1727 = vld [vmem:[%s1049 + $0x9c0] sm:$0xff]
        %v1728 = vld [vmem:[%s1049 + $0x9c8] sm:$0xff]
        %v1729 = vld [vmem:[%s1049 + $0x9d0] sm:$0xff]
        %v1730 = vld [vmem:[%s1049 + $0x9d8] sm:$0xff]
        %v1731 = vld [vmem:[%s1049 + $0x9e0] sm:$0xff]
        %v1732 = vld [vmem:[%s1049 + $0x9e8] sm:$0xff]
        %v1733 = vld [vmem:[%s1049 + $0x9f0] sm:$0xff]
        %v1734 = vld [vmem:[%s1049 + $0x9f8] sm:$0xff]
        %v1735 = vld [vmem:[%s1049 + $0xa00] sm:$0xff]
        %v1736 = vld [vmem:[%s1049 + $0xa08] sm:$0xff]
        %v1737 = vld [vmem:[%s1049 + $0xa10] sm:$0xff]
        %v1738 = vld [vmem:[%s1049 + $0xa18] sm:$0xff]
        %v1739 = vld [vmem:[%s1049 + $0xa20] sm:$0xff]
        %v1740 = vld [vmem:[%s1049 + $0xa28] sm:$0xff]
        %v1741 = vld [vmem:[%s1049 + $0xa30] sm:$0xff]
        %v1742 = vld [vmem:[%s1049 + $0xa38] sm:$0xff]
        %v1743 = vld [vmem:[%s1049 + $0xa40] sm:$0xff]
        %v1744 = vld [vmem:[%s1049 + $0xa48] sm:$0xff]
        %v1745 = vld [vmem:[%s1049 + $0xa50] sm:$0xff]
        %v1746 = vld [vmem:[%s1049 + $0xa58] sm:$0xff]
        %v1747 = vld [vmem:[%s1049 + $0xa60] sm:$0xff]
        %v1748 = vld [vmem:[%s1049 + $0xa68] sm:$0xff]
        %v1749 = vld [vmem:[%s1049 + $0xa70] sm:$0xff]
        %v1750 = vld [vmem:[%s1049 + $0xa78] sm:$0xff]
        %v1751 = vld [vmem:[%s1049 + $0xa80] sm:$0xff]
        %v1752 = vld [vmem:[%s1049 + $0xa88] sm:$0xff]
        %v1753 = vld [vmem:[%s1049 + $0xa90] sm:$0xff]
        %v1754 = vld [vmem:[%s1049 + $0xa98] sm:$0xff]
        %v1755 = vld [vmem:[%s1049 + $0xaa0] sm:$0xff]
        %v1756 = vld [vmem:[%s1049 + $0xaa8] sm:$0xff]
        %v1757 = vld [vmem:[%s1049 + $0xab0] sm:$0xff]
        %v1758 = vld [vmem:[%s1049 + $0xab8] sm:$0xff]
        %v1760 = vsel %vm1175, %v1396, 0
        %v1763 = vsel %vm1175, %v1399, 0
        %v1766 = vsel %vm1175, %v1402, 0
        %v1769 = vsel %vm1175, %v1405, 0
        %v1772 = vsel %vm1175, %v1408, 0
        %v1775 = vsel %vm1175, %v1411, 0
        %v1778 = vsel %vm1175, %v1414, 0
        %1780 = vmatprep.subr.mxu0 %v1536
        %1781 = vmatpush1.msra.mxu0 %v1535
        %1782 = vmatprep.subr.mxu0 %v1528
        %1783 = vmatpush1.msra.mxu0 %v1527
        %1784 = vmatprep.subr.mxu0 %v1520
        %1785 = vmatpush1.msra.mxu0 %v1519
        %1786 = vmatprep.subr.mxu0 %v1512
        %1787 = vmatpush1.msra.mxu0 %v1511
        %1788 = vmatprep.subr.mxu0 %v1504
        %1789 = vmatpush1.msra.mxu0 %v1503
        %1790 = vmatprep.subr.mxu0 %v1496
        %1791 = vmatpush1.msra.mxu0 %v1495
        %1792 = vmatprep.subr.mxu0 %v1488
        %1793 = vmatpush1.msra.mxu0 %v1487
        %1794 = vmatprep.subr.mxu0 %v1480
        %1795 = vmatpush1.msra.mxu0 %v1479
        %1796 = vmatprep.subr.mxu0 %v1472
        %1797 = vmatpush1.msra.mxu0 %v1471
        %1798 = vmatprep.subr.mxu0 %v1464
        %1799 = vmatpush1.msra.mxu0 %v1463
        %1800 = vmatprep.subr.mxu0 %v1456
        %1801 = vmatpush1.msra.mxu0 %v1455
        %1802 = vmatprep.subr.mxu0 %v1448
        %1803 = vmatpush1.msra.mxu0 %v1447
        %1804 = vmatprep.subr.mxu0 %v1440
        %1805 = vmatpush1.msra.mxu0 %v1439
        %1806 = vmatprep.subr.mxu0 %v1432
        %1807 = vmatpush1.msra.mxu0 %v1431
        %1808 = vmatprep.subr.mxu0 %v1424
        %1809 = vmatpush1.msra.mxu0 %v1423
        %1810 = vmatprep.subr.mxu0 %v1416
        %1811 = vmatpush1.msra.mxu0 %v1415
        %1812 = vmatprep.subr.mxu0 %v1664
        %1813 = vmatpush2.msra.mxu0 %v1663
        %1814 = vmatprep.subr.mxu0 %v1656
        %1815 = vmatpush2.msra.mxu0 %v1655
        %1816 = vmatprep.subr.mxu0 %v1648
        %1817 = vmatpush2.msra.mxu0 %v1647
        %1818 = vmatprep.subr.mxu0 %v1640
        %1819 = vmatpush2.msra.mxu0 %v1639
        %1820 = vmatprep.subr.mxu0 %v1632
        %1821 = vmatpush2.msra.mxu0 %v1631
        %1822 = vmatprep.subr.mxu0 %v1624
        %1823 = vmatpush2.msra.mxu0 %v1623
        %1824 = vmatprep.subr.mxu0 %v1616
        %1825 = vmatpush2.msra.mxu0 %v1615
        %1826 = vmatprep.subr.mxu0 %v1608
        %1827 = vmatpush2.msra.mxu0 %v1607
        %1828 = vmatprep.subr.mxu0 %v1600
        %1829 = vmatpush2.msra.mxu0 %v1599
        %1830 = vmatprep.subr.mxu0 %v1592
        %1831 = vmatpush2.msra.mxu0 %v1591
        %1832 = vmatprep.subr.mxu0 %v1584
        %1833 = vmatpush2.msra.mxu0 %v1583
        %1834 = vmatprep.subr.mxu0 %v1576
        %1835 = vmatpush2.msra.mxu0 %v1575
        %1836 = vmatprep.subr.mxu0 %v1568
        %1837 = vmatpush2.msra.mxu0 %v1567
        %1838 = vmatprep.subr.mxu0 %v1560
        %1839 = vmatpush2.msra.mxu0 %v1559
        %1840 = vmatprep.subr.mxu0 %v1552
        %1841 = vmatpush2.msra.mxu0 %v1551
        %1842 = vmatprep.subr.mxu0 %v1544
        %1843 = vmatpush2.msra.mxu0 %v1543
        %1844 = vmatprep.mubr.f32.mxu0 %v1395
        %1845 = vmatmul.mubr.f32.gmra.mxu0 %v1394
        %v1846 = vpop.f32.mrf.mxu0
        %v1847 = vadd.f32 0.0, %v1846
        %v1848 = vpop.f32.mrf.mxu0
        %v1849 = vadd.f32 0.0, %v1848
        %1850 = vmatprep.mubr.f32.mxu0 %v1398
        %1851 = vmatmul.mubr.f32.gmra.mxu0 %v1397
        %v1852 = vpop.f32.mrf.mxu0
        %v1853 = vadd.f32 0.0, %v1852
        %v1854 = vpop.f32.mrf.mxu0
        %v1855 = vadd.f32 0.0, %v1854
        %1856 = vmatprep.mubr.f32.mxu0 %v1401
        %1857 = vmatmul.mubr.f32.gmra.mxu0 %v1400
        %v1858 = vpop.f32.mrf.mxu0
        %v1859 = vadd.f32 0.0, %v1858
        %v1860 = vpop.f32.mrf.mxu0
        %v1861 = vadd.f32 0.0, %v1860
        %1862 = vmatprep.mubr.f32.mxu0 %v1404
        %1863 = vmatmul.mubr.f32.gmra.mxu0 %v1403
        %v1864 = vpop.f32.mrf.mxu0
        %v1865 = vadd.f32 0.0, %v1864
        %v1866 = vpop.f32.mrf.mxu0
        %v1867 = vadd.f32 0.0, %v1866
        %1868 = vmatprep.mubr.f32.mxu0 %v1407
        %1869 = vmatmul.mubr.f32.gmra.mxu0 %v1406
        %v1870 = vpop.f32.mrf.mxu0
        %v1871 = vadd.f32 0.0, %v1870
        %v1872 = vpop.f32.mrf.mxu0
        %v1873 = vadd.f32 0.0, %v1872
        %1874 = vmatprep.mubr.f32.mxu0 %v1410
        %1875 = vmatmul.mubr.f32.gmra.mxu0 %v1409
        %v1876 = vpop.f32.mrf.mxu0
        %v1877 = vadd.f32 0.0, %v1876
        %v1878 = vpop.f32.mrf.mxu0
        %v1879 = vadd.f32 0.0, %v1878
        %1880 = vmatprep.mubr.f32.mxu0 %v1413
        %1881 = vmatmul.mubr.f32.gmra.mxu0 %v1412
        %v1882 = vpop.f32.mrf.mxu0
        %v1883 = vadd.f32 0.0, %v1882
        %v1884 = vpop.f32.mrf.mxu0
        %v1885 = vadd.f32 0.0, %v1884
        %1886 = vdwg.mxu0
        %1887 = vmatprep.subr.mxu0 0.0
        %1888 = vmatpush1.msra.mxu0 0.0
        %1889 = vmatprep.subr.mxu0 0.0
        %1890 = vmatpush1.msra.mxu0 0.0
        %1891 = vmatprep.subr.mxu0 0.0
        %1892 = vmatpush1.msra.mxu0 0.0
        %1893 = vmatprep.subr.mxu0 0.0
        %1894 = vmatpush1.msra.mxu0 0.0
        %1895 = vmatprep.subr.mxu0 0.0
        %1896 = vmatpush1.msra.mxu0 0.0
        %1897 = vmatprep.subr.mxu0 %v1752
        %1898 = vmatpush1.msra.mxu0 %v1751
        %1899 = vmatprep.subr.mxu0 %v1744
        %1900 = vmatpush1.msra.mxu0 %v1743
        %1901 = vmatprep.subr.mxu0 %v1736
        %1902 = vmatpush1.msra.mxu0 %v1735
        %1903 = vmatprep.subr.mxu0 %v1728
        %1904 = vmatpush1.msra.mxu0 %v1727
        %1905 = vmatprep.subr.mxu0 %v1720
        %1906 = vmatpush1.msra.mxu0 %v1719
        %1907 = vmatprep.subr.mxu0 %v1712
        %1908 = vmatpush1.msra.mxu0 %v1711
        %1909 = vmatprep.subr.mxu0 %v1704
        %1910 = vmatpush1.msra.mxu0 %v1703
        %1911 = vmatprep.subr.mxu0 %v1696
        %1912 = vmatpush1.msra.mxu0 %v1695
        %1913 = vmatprep.subr.mxu0 %v1688
        %1914 = vmatpush1.msra.mxu0 %v1687
        %1915 = vmatprep.subr.mxu0 %v1680
        %1916 = vmatpush1.msra.mxu0 %v1679
        %1917 = vmatprep.subr.mxu0 %v1672
        %1918 = vmatpush1.msra.mxu0 %v1671
        %1919 = vmatprep.subr.mxu0 0.0
        %1920 = vmatpush2.msra.mxu0 0.0
        %1921 = vmatprep.subr.mxu0 0.0
        %1922 = vmatpush2.msra.mxu0 0.0
        %1923 = vmatprep.subr.mxu0 0.0
        %1924 = vmatpush2.msra.mxu0 0.0
        %1925 = vmatprep.subr.mxu0 0.0
        %1926 = vmatpush2.msra.mxu0 0.0
        %1927 = vmatprep.subr.mxu0 0.0
        %1928 = vmatpush2.msra.mxu0 0.0
        %1929 = vmatprep.subr.mxu0 0.0
        %1930 = vmatpush2.msra.mxu0 0.0
        %1931 = vmatprep.subr.mxu0 0.0
        %1932 = vmatpush2.msra.mxu0 0.0
        %1933 = vmatprep.subr.mxu0 0.0
        %1934 = vmatpush2.msra.mxu0 0.0
        %1935 = vmatprep.subr.mxu0 0.0
        %1936 = vmatpush2.msra.mxu0 0.0
        %1937 = vmatprep.subr.mxu0 0.0
        %1938 = vmatpush2.msra.mxu0 0.0
        %1939 = vmatprep.subr.mxu0 0.0
        %1940 = vmatpush2.msra.mxu0 0.0
        %1941 = vmatprep.subr.mxu0 0.0
        %1942 = vmatpush2.msra.mxu0 0.0
        %1943 = vmatprep.subr.mxu0 0.0
        %1944 = vmatpush2.msra.mxu0 0.0
        %1945 = vmatprep.subr.mxu0 0.0
        %1946 = vmatpush2.msra.mxu0 0.0
        %1947 = vmatprep.subr.mxu0 0.0
        %1948 = vmatpush2.msra.mxu0 0.0
        %1949 = vmatprep.subr.mxu0 0.0
        %1950 = vmatpush2.msra.mxu0 0.0
        %1951 = vmatprep.mubr.f32.mxu0 0.0
        %1952 = vmatmul.mubr.f32.gmra.mxu0 %v1760
        %v1953 = vpop.f32.mrf.mxu0
        %v1954 = vadd.f32 %v1847, %v1953
        %v1955 = vpop.f32.mrf.mxu0
        %v1956 = vadd.f32 %v1849, %v1955
        %1957 = vmatprep.mubr.f32.mxu0 0.0
        %1958 = vmatmul.mubr.f32.gmra.mxu0 %v1763
        %v1959 = vpop.f32.mrf.mxu0
        %v1960 = vadd.f32 %v1853, %v1959
        %v1961 = vpop.f32.mrf.mxu0
        %v1962 = vadd.f32 %v1855, %v1961
        %1963 = vmatprep.mubr.f32.mxu0 0.0
        %1964 = vmatmul.mubr.f32.gmra.mxu0 %v1766
        %v1965 = vpop.f32.mrf.mxu0
        %v1966 = vadd.f32 %v1859, %v1965
        %v1967 = vpop.f32.mrf.mxu0
        %v1968 = vadd.f32 %v1861, %v1967
        %1969 = vmatprep.mubr.f32.mxu0 0.0
        %1970 = vmatmul.mubr.f32.gmra.mxu0 %v1769
        %v1971 = vpop.f32.mrf.mxu0
        %v1972 = vadd.f32 %v1865, %v1971
        %v1973 = vpop.f32.mrf.mxu0
        %v1974 = vadd.f32 %v1867, %v1973
        %1975 = vmatprep.mubr.f32.mxu0 0.0
        %1976 = vmatmul.mubr.f32.gmra.mxu0 %v1772
        %v1977 = vpop.f32.mrf.mxu0
        %v1978 = vadd.f32 %v1871, %v1977
        %v1979 = vpop.f32.mrf.mxu0
        %v1980 = vadd.f32 %v1873, %v1979
        %1981 = vmatprep.mubr.f32.mxu0 0.0
        %1982 = vmatmul.mubr.f32.gmra.mxu0 %v1775
        %v1983 = vpop.f32.mrf.mxu0
        %v1984 = vadd.f32 %v1877, %v1983
        %v1985 = vpop.f32.mrf.mxu0
        %v1986 = vadd.f32 %v1879, %v1985
        %1987 = vmatprep.mubr.f32.mxu0 0.0
        %1988 = vmatmul.mubr.f32.gmra.mxu0 %v1778
        %v1989 = vpop.f32.mrf.mxu0
        %v1990 = vadd.f32 %v1883, %v1989
        %v1991 = vpop.f32.mrf.mxu0
        %v1992 = vadd.f32 %v1885, %v1991
        %1993 = vdwg.mxu0
        %1994 = vmatprep.subr.mxu0 %v1538
        %1995 = vmatpush1.msra.mxu0 %v1537
        %1996 = vmatprep.subr.mxu0 %v1530
        %1997 = vmatpush1.msra.mxu0 %v1529
        %1998 = vmatprep.subr.mxu0 %v1522
        %1999 = vmatpush1.msra.mxu0 %v1521
        %2000 = vmatprep.subr.mxu0 %v1514
        %2001 = vmatpush1.msra.mxu0 %v1513
        %2002 = vmatprep.subr.mxu0 %v1506
        %2003 = vmatpush1.msra.mxu0 %v1505
        %2004 = vmatprep.subr.mxu0 %v1498
        %2005 = vmatpush1.msra.mxu0 %v1497
        %2006 = vmatprep.subr.mxu0 %v1490
        %2007 = vmatpush1.msra.mxu0 %v1489
        %2008 = vmatprep.subr.mxu0 %v1482
        %2009 = vmatpush1.msra.mxu0 %v1481
        %2010 = vmatprep.subr.mxu0 %v1474
        %2011 = vmatpush1.msra.mxu0 %v1473
        %2012 = vmatprep.subr.mxu0 %v1466
        %2013 = vmatpush1.msra.mxu0 %v1465
        %2014 = vmatprep.subr.mxu0 %v1458
        %2015 = vmatpush1.msra.mxu0 %v1457
        %2016 = vmatprep.subr.mxu0 %v1450
        %2017 = vmatpush1.msra.mxu0 %v1449
        %2018 = vmatprep.subr.mxu0 %v1442
        %2019 = vmatpush1.msra.mxu0 %v1441
        %2020 = vmatprep.subr.mxu0 %v1434
        %2021 = vmatpush1.msra.mxu0 %v1433
        %2022 = vmatprep.subr.mxu0 %v1426
        %2023 = vmatpush1.msra.mxu0 %v1425
        %2024 = vmatprep.subr.mxu0 %v1418
        %2025 = vmatpush1.msra.mxu0 %v1417
        %2026 = vmatprep.subr.mxu0 %v1666
        %2027 = vmatpush2.msra.mxu0 %v1665
        %2028 = vmatprep.subr.mxu0 %v1658
        %2029 = vmatpush2.msra.mxu0 %v1657
        %2030 = vmatprep.subr.mxu0 %v1650
        %2031 = vmatpush2.msra.mxu0 %v1649
        %2032 = vmatprep.subr.mxu0 %v1642
        %2033 = vmatpush2.msra.mxu0 %v1641
        %2034 = vmatprep.subr.mxu0 %v1634
        %2035 = vmatpush2.msra.mxu0 %v1633
        %2036 = vmatprep.subr.mxu0 %v1626
        %2037 = vmatpush2.msra.mxu0 %v1625
        %2038 = vmatprep.subr.mxu0 %v1618
        %2039 = vmatpush2.msra.mxu0 %v1617
        %2040 = vmatprep.subr.mxu0 %v1610
        %2041 = vmatpush2.msra.mxu0 %v1609
        %2042 = vmatprep.subr.mxu0 %v1602
        %2043 = vmatpush2.msra.mxu0 %v1601
        %2044 = vmatprep.subr.mxu0 %v1594
        %2045 = vmatpush2.msra.mxu0 %v1593
        %2046 = vmatprep.subr.mxu0 %v1586
        %2047 = vmatpush2.msra.mxu0 %v1585
        %2048 = vmatprep.subr.mxu0 %v1578
        %2049 = vmatpush2.msra.mxu0 %v1577
        %2050 = vmatprep.subr.mxu0 %v1570
        %2051 = vmatpush2.msra.mxu0 %v1569
        %2052 = vmatprep.subr.mxu0 %v1562
        %2053 = vmatpush2.msra.mxu0 %v1561
        %2054 = vmatprep.subr.mxu0 %v1554
        %2055 = vmatpush2.msra.mxu0 %v1553
        %2056 = vmatprep.subr.mxu0 %v1546
        %2057 = vmatpush2.msra.mxu0 %v1545
        %2058 = vmatprep.mubr.f32.mxu0 %v1395
        %2059 = vmatmul.mubr.f32.gmra.mxu0 %v1394
        %v2060 = vpop.f32.mrf.mxu0
        %v2061 = vadd.f32 0.0, %v2060
        %v2062 = vpop.f32.mrf.mxu0
        %v2063 = vadd.f32 0.0, %v2062
        %2064 = vmatprep.mubr.f32.mxu0 %v1398
        %2065 = vmatmul.mubr.f32.gmra.mxu0 %v1397
        %v2066 = vpop.f32.mrf.mxu0
        %v2067 = vadd.f32 0.0, %v2066
        %v2068 = vpop.f32.mrf.mxu0
        %v2069 = vadd.f32 0.0, %v2068
        %2070 = vmatprep.mubr.f32.mxu0 %v1401
        %2071 = vmatmul.mubr.f32.gmra.mxu0 %v1400
        %v2072 = vpop.f32.mrf.mxu0
        %v2073 = vadd.f32 0.0, %v2072
        %v2074 = vpop.f32.mrf.mxu0
        %v2075 = vadd.f32 0.0, %v2074
        %2076 = vmatprep.mubr.f32.mxu0 %v1404
        %2077 = vmatmul.mubr.f32.gmra.mxu0 %v1403
        %v2078 = vpop.f32.mrf.mxu0
        %v2079 = vadd.f32 0.0, %v2078
        %v2080 = vpop.f32.mrf.mxu0
        %v2081 = vadd.f32 0.0, %v2080
        %2082 = vmatprep.mubr.f32.mxu0 %v1407
        %2083 = vmatmul.mubr.f32.gmra.mxu0 %v1406
        %v2084 = vpop.f32.mrf.mxu0
        %v2085 = vadd.f32 0.0, %v2084
        %v2086 = vpop.f32.mrf.mxu0
        %v2087 = vadd.f32 0.0, %v2086
        %2088 = vmatprep.mubr.f32.mxu0 %v1410
        %2089 = vmatmul.mubr.f32.gmra.mxu0 %v1409
        %v2090 = vpop.f32.mrf.mxu0
        %v2091 = vadd.f32 0.0, %v2090
        %v2092 = vpop.f32.mrf.mxu0
        %v2093 = vadd.f32 0.0, %v2092
        %2094 = vmatprep.mubr.f32.mxu0 %v1413
        %2095 = vmatmul.mubr.f32.gmra.mxu0 %v1412
        %v2096 = vpop.f32.mrf.mxu0
        %v2097 = vadd.f32 0.0, %v2096
        %v2098 = vpop.f32.mrf.mxu0
        %v2099 = vadd.f32 0.0, %v2098
        %2100 = vdwg.mxu0
        %2101 = vmatprep.subr.mxu0 0.0
        %2102 = vmatpush1.msra.mxu0 0.0
        %2103 = vmatprep.subr.mxu0 0.0
        %2104 = vmatpush1.msra.mxu0 0.0
        %2105 = vmatprep.subr.mxu0 0.0
        %2106 = vmatpush1.msra.mxu0 0.0
        %2107 = vmatprep.subr.mxu0 0.0
        %2108 = vmatpush1.msra.mxu0 0.0
        %2109 = vmatprep.subr.mxu0 0.0
        %2110 = vmatpush1.msra.mxu0 0.0
        %2111 = vmatprep.subr.mxu0 %v1754
        %2112 = vmatpush1.msra.mxu0 %v1753
        %2113 = vmatprep.subr.mxu0 %v1746
        %2114 = vmatpush1.msra.mxu0 %v1745
        %2115 = vmatprep.subr.mxu0 %v1738
        %2116 = vmatpush1.msra.mxu0 %v1737
        %2117 = vmatprep.subr.mxu0 %v1730
        %2118 = vmatpush1.msra.mxu0 %v1729
        %2119 = vmatprep.subr.mxu0 %v1722
        %2120 = vmatpush1.msra.mxu0 %v1721
        %2121 = vmatprep.subr.mxu0 %v1714
        %2122 = vmatpush1.msra.mxu0 %v1713
        %2123 = vmatprep.subr.mxu0 %v1706
        %2124 = vmatpush1.msra.mxu0 %v1705
        %2125 = vmatprep.subr.mxu0 %v1698
        %2126 = vmatpush1.msra.mxu0 %v1697
        %2127 = vmatprep.subr.mxu0 %v1690
        %2128 = vmatpush1.msra.mxu0 %v1689
        %2129 = vmatprep.subr.mxu0 %v1682
        %2130 = vmatpush1.msra.mxu0 %v1681
        %2131 = vmatprep.subr.mxu0 %v1674
        %2132 = vmatpush1.msra.mxu0 %v1673
        %2133 = vmatprep.subr.mxu0 0.0
        %2134 = vmatpush2.msra.mxu0 0.0
        %2135 = vmatprep.subr.mxu0 0.0
        %2136 = vmatpush2.msra.mxu0 0.0
        %2137 = vmatprep.subr.mxu0 0.0
        %2138 = vmatpush2.msra.mxu0 0.0
        %2139 = vmatprep.subr.mxu0 0.0
        %2140 = vmatpush2.msra.mxu0 0.0
        %2141 = vmatprep.subr.mxu0 0.0
        %2142 = vmatpush2.msra.mxu0 0.0
        %2143 = vmatprep.subr.mxu0 0.0
        %2144 = vmatpush2.msra.mxu0 0.0
        %2145 = vmatprep.subr.mxu0 0.0
        %2146 = vmatpush2.msra.mxu0 0.0
        %2147 = vmatprep.subr.mxu0 0.0
        %2148 = vmatpush2.msra.mxu0 0.0
        %2149 = vmatprep.subr.mxu0 0.0
        %2150 = vmatpush2.msra.mxu0 0.0
        %2151 = vmatprep.subr.mxu0 0.0
        %2152 = vmatpush2.msra.mxu0 0.0
        %2153 = vmatprep.subr.mxu0 0.0
        %2154 = vmatpush2.msra.mxu0 0.0
        %2155 = vmatprep.subr.mxu0 0.0
        %2156 = vmatpush2.msra.mxu0 0.0
        %2157 = vmatprep.subr.mxu0 0.0
        %2158 = vmatpush2.msra.mxu0 0.0
        %2159 = vmatprep.subr.mxu0 0.0
        %2160 = vmatpush2.msra.mxu0 0.0
        %2161 = vmatprep.subr.mxu0 0.0
        %2162 = vmatpush2.msra.mxu0 0.0
        %2163 = vmatprep.subr.mxu0 0.0
        %2164 = vmatpush2.msra.mxu0 0.0
        %2165 = vmatprep.mubr.f32.mxu0 0.0
        %2166 = vmatmul.mubr.f32.gmra.mxu0 %v1760
        %v2167 = vpop.f32.mrf.mxu0
        %v2168 = vadd.f32 %v2061, %v2167
        %v2169 = vpop.f32.mrf.mxu0
        %v2170 = vadd.f32 %v2063, %v2169
        %2171 = vmatprep.mubr.f32.mxu0 0.0
        %2172 = vmatmul.mubr.f32.gmra.mxu0 %v1763
        %v2173 = vpop.f32.mrf.mxu0
        %v2174 = vadd.f32 %v2067, %v2173
        %v2175 = vpop.f32.mrf.mxu0
        %v2176 = vadd.f32 %v2069, %v2175
        %2177 = vmatprep.mubr.f32.mxu0 0.0
        %2178 = vmatmul.mubr.f32.gmra.mxu0 %v1766
        %v2179 = vpop.f32.mrf.mxu0
        %v2180 = vadd.f32 %v2073, %v2179
        %v2181 = vpop.f32.mrf.mxu0
        %v2182 = vadd.f32 %v2075, %v2181
        %2183 = vmatprep.mubr.f32.mxu0 0.0
        %2184 = vmatmul.mubr.f32.gmra.mxu0 %v1769
        %v2185 = vpop.f32.mrf.mxu0
        %v2186 = vadd.f32 %v2079, %v2185
        %v2187 = vpop.f32.mrf.mxu0
        %v2188 = vadd.f32 %v2081, %v2187
        %2189 = vmatprep.mubr.f32.mxu0 0.0
        %2190 = vmatmul.mubr.f32.gmra.mxu0 %v1772
        %v2191 = vpop.f32.mrf.mxu0
        %v2192 = vadd.f32 %v2085, %v2191
        %v2193 = vpop.f32.mrf.mxu0
        %v2194 = vadd.f32 %v2087, %v2193
        %2195 = vmatprep.mubr.f32.mxu0 0.0
        %2196 = vmatmul.mubr.f32.gmra.mxu0 %v1775
        %v2197 = vpop.f32.mrf.mxu0
        %v2198 = vadd.f32 %v2091, %v2197
        %v2199 = vpop.f32.mrf.mxu0
        %v2200 = vadd.f32 %v2093, %v2199
        %2201 = vmatprep.mubr.f32.mxu0 0.0
        %2202 = vmatmul.mubr.f32.gmra.mxu0 %v1778
        %v2203 = vpop.f32.mrf.mxu0
        %v2204 = vadd.f32 %v2097, %v2203
        %v2205 = vpop.f32.mrf.mxu0
        %v2206 = vadd.f32 %v2099, %v2205
        %2207 = vdwg.mxu0
        %2208 = vmatprep.subr.mxu0 %v1540
        %2209 = vmatpush1.msra.mxu0 %v1539
        %2210 = vmatprep.subr.mxu0 %v1532
        %2211 = vmatpush1.msra.mxu0 %v1531
        %2212 = vmatprep.subr.mxu0 %v1524
        %2213 = vmatpush1.msra.mxu0 %v1523
        %2214 = vmatprep.subr.mxu0 %v1516
        %2215 = vmatpush1.msra.mxu0 %v1515
        %2216 = vmatprep.subr.mxu0 %v1508
        %2217 = vmatpush1.msra.mxu0 %v1507
        %2218 = vmatprep.subr.mxu0 %v1500
        %2219 = vmatpush1.msra.mxu0 %v1499
        %2220 = vmatprep.subr.mxu0 %v1492
        %2221 = vmatpush1.msra.mxu0 %v1491
        %2222 = vmatprep.subr.mxu0 %v1484
        %2223 = vmatpush1.msra.mxu0 %v1483
        %2224 = vmatprep.subr.mxu0 %v1476
        %2225 = vmatpush1.msra.mxu0 %v1475
        %2226 = vmatprep.subr.mxu0 %v1468
        %2227 = vmatpush1.msra.mxu0 %v1467
        %2228 = vmatprep.subr.mxu0 %v1460
        %2229 = vmatpush1.msra.mxu0 %v1459
        %2230 = vmatprep.subr.mxu0 %v1452
        %2231 = vmatpush1.msra.mxu0 %v1451
        %2232 = vmatprep.subr.mxu0 %v1444
        %2233 = vmatpush1.msra.mxu0 %v1443
        %2234 = vmatprep.subr.mxu0 %v1436
        %2235 = vmatpush1.msra.mxu0 %v1435
        %2236 = vmatprep.subr.mxu0 %v1428
        %2237 = vmatpush1.msra.mxu0 %v1427
        %2238 = vmatprep.subr.mxu0 %v1420
        %2239 = vmatpush1.msra.mxu0 %v1419
        %2240 = vmatprep.subr.mxu0 %v1668
        %2241 = vmatpush2.msra.mxu0 %v1667
        %2242 = vmatprep.subr.mxu0 %v1660
        %2243 = vmatpush2.msra.mxu0 %v1659
        %2244 = vmatprep.subr.mxu0 %v1652
        %2245 = vmatpush2.msra.mxu0 %v1651
        %2246 = vmatprep.subr.mxu0 %v1644
        %2247 = vmatpush2.msra.mxu0 %v1643
        %2248 = vmatprep.subr.mxu0 %v1636
        %2249 = vmatpush2.msra.mxu0 %v1635
        %2250 = vmatprep.subr.mxu0 %v1628
        %2251 = vmatpush2.msra.mxu0 %v1627
        %2252 = vmatprep.subr.mxu0 %v1620
        %2253 = vmatpush2.msra.mxu0 %v1619
        %2254 = vmatprep.subr.mxu0 %v1612
        %2255 = vmatpush2.msra.mxu0 %v1611
        %2256 = vmatprep.subr.mxu0 %v1604
        %2257 = vmatpush2.msra.mxu0 %v1603
        %2258 = vmatprep.subr.mxu0 %v1596
        %2259 = vmatpush2.msra.mxu0 %v1595
        %2260 = vmatprep.subr.mxu0 %v1588
        %2261 = vmatpush2.msra.mxu0 %v1587
        %2262 = vmatprep.subr.mxu0 %v1580
        %2263 = vmatpush2.msra.mxu0 %v1579
        %2264 = vmatprep.subr.mxu0 %v1572
        %2265 = vmatpush2.msra.mxu0 %v1571
        %2266 = vmatprep.subr.mxu0 %v1564
        %2267 = vmatpush2.msra.mxu0 %v1563
        %2268 = vmatprep.subr.mxu0 %v1556
        %2269 = vmatpush2.msra.mxu0 %v1555
        %2270 = vmatprep.subr.mxu0 %v1548
        %2271 = vmatpush2.msra.mxu0 %v1547
        %2272 = vmatprep.mubr.f32.mxu0 %v1395
        %2273 = vmatmul.mubr.f32.gmra.mxu0 %v1394
        %v2274 = vpop.f32.mrf.mxu0
        %v2275 = vadd.f32 0.0, %v2274
        %v2276 = vpop.f32.mrf.mxu0
        %v2277 = vadd.f32 0.0, %v2276
        %2278 = vmatprep.mubr.f32.mxu0 %v1398
        %2279 = vmatmul.mubr.f32.gmra.mxu0 %v1397
        %v2280 = vpop.f32.mrf.mxu0
        %v2281 = vadd.f32 0.0, %v2280
        %v2282 = vpop.f32.mrf.mxu0
        %v2283 = vadd.f32 0.0, %v2282
        %2284 = vmatprep.mubr.f32.mxu0 %v1401
        %2285 = vmatmul.mubr.f32.gmra.mxu0 %v1400
        %v2286 = vpop.f32.mrf.mxu0
        %v2287 = vadd.f32 0.0, %v2286
        %v2288 = vpop.f32.mrf.mxu0
        %v2289 = vadd.f32 0.0, %v2288
        %2290 = vmatprep.mubr.f32.mxu0 %v1404
        %2291 = vmatmul.mubr.f32.gmra.mxu0 %v1403
        %v2292 = vpop.f32.mrf.mxu0
        %v2293 = vadd.f32 0.0, %v2292
        %v2294 = vpop.f32.mrf.mxu0
        %v2295 = vadd.f32 0.0, %v2294
        %2296 = vmatprep.mubr.f32.mxu0 %v1407
        %2297 = vmatmul.mubr.f32.gmra.mxu0 %v1406
        %v2298 = vpop.f32.mrf.mxu0
        %v2299 = vadd.f32 0.0, %v2298
        %v2300 = vpop.f32.mrf.mxu0
        %v2301 = vadd.f32 0.0, %v2300
        %2302 = vmatprep.mubr.f32.mxu0 %v1410
        %2303 = vmatmul.mubr.f32.gmra.mxu0 %v1409
        %v2304 = vpop.f32.mrf.mxu0
        %v2305 = vadd.f32 0.0, %v2304
        %v2306 = vpop.f32.mrf.mxu0
        %v2307 = vadd.f32 0.0, %v2306
        %2308 = vmatprep.mubr.f32.mxu0 %v1413
        %2309 = vmatmul.mubr.f32.gmra.mxu0 %v1412
        %v2310 = vpop.f32.mrf.mxu0
        %v2311 = vadd.f32 0.0, %v2310
        %v2312 = vpop.f32.mrf.mxu0
        %v2313 = vadd.f32 0.0, %v2312
        %2314 = vdwg.mxu0
        %2315 = vmatprep.subr.mxu0 0.0
        %2316 = vmatpush1.msra.mxu0 0.0
        %2317 = vmatprep.subr.mxu0 0.0
        %2318 = vmatpush1.msra.mxu0 0.0
        %2319 = vmatprep.subr.mxu0 0.0
        %2320 = vmatpush1.msra.mxu0 0.0
        %2321 = vmatprep.subr.mxu0 0.0
        %2322 = vmatpush1.msra.mxu0 0.0
        %2323 = vmatprep.subr.mxu0 0.0
        %2324 = vmatpush1.msra.mxu0 0.0
        %2325 = vmatprep.subr.mxu0 %v1756
        %2326 = vmatpush1.msra.mxu0 %v1755
        %2327 = vmatprep.subr.mxu0 %v1748
        %2328 = vmatpush1.msra.mxu0 %v1747
        %2329 = vmatprep.subr.mxu0 %v1740
        %2330 = vmatpush1.msra.mxu0 %v1739
        %2331 = vmatprep.subr.mxu0 %v1732
        %2332 = vmatpush1.msra.mxu0 %v1731
        %2333 = vmatprep.subr.mxu0 %v1724
        %2334 = vmatpush1.msra.mxu0 %v1723
        %2335 = vmatprep.subr.mxu0 %v1716
        %2336 = vmatpush1.msra.mxu0 %v1715
        %2337 = vmatprep.subr.mxu0 %v1708
        %2338 = vmatpush1.msra.mxu0 %v1707
        %2339 = vmatprep.subr.mxu0 %v1700
        %2340 = vmatpush1.msra.mxu0 %v1699
        %2341 = vmatprep.subr.mxu0 %v1692
        %2342 = vmatpush1.msra.mxu0 %v1691
        %2343 = vmatprep.subr.mxu0 %v1684
        %2344 = vmatpush1.msra.mxu0 %v1683
        %2345 = vmatprep.subr.mxu0 %v1676
        %2346 = vmatpush1.msra.mxu0 %v1675
        %2347 = vmatprep.subr.mxu0 0.0
        %2348 = vmatpush2.msra.mxu0 0.0
        %2349 = vmatprep.subr.mxu0 0.0
        %2350 = vmatpush2.msra.mxu0 0.0
        %2351 = vmatprep.subr.mxu0 0.0
        %2352 = vmatpush2.msra.mxu0 0.0
        %2353 = vmatprep.subr.mxu0 0.0
        %2354 = vmatpush2.msra.mxu0 0.0
        %2355 = vmatprep.subr.mxu0 0.0
        %2356 = vmatpush2.msra.mxu0 0.0
        %2357 = vmatprep.subr.mxu0 0.0
        %2358 = vmatpush2.msra.mxu0 0.0
        %2359 = vmatprep.subr.mxu0 0.0
        %2360 = vmatpush2.msra.mxu0 0.0
        %2361 = vmatprep.subr.mxu0 0.0
        %2362 = vmatpush2.msra.mxu0 0.0
        %2363 = vmatprep.subr.mxu0 0.0
        %2364 = vmatpush2.msra.mxu0 0.0
        %2365 = vmatprep.subr.mxu0 0.0
        %2366 = vmatpush2.msra.mxu0 0.0
        %2367 = vmatprep.subr.mxu0 0.0
        %2368 = vmatpush2.msra.mxu0 0.0
        %2369 = vmatprep.subr.mxu0 0.0
        %2370 = vmatpush2.msra.mxu0 0.0
        %2371 = vmatprep.subr.mxu0 0.0
        %2372 = vmatpush2.msra.mxu0 0.0
        %2373 = vmatprep.subr.mxu0 0.0
        %2374 = vmatpush2.msra.mxu0 0.0
        %2375 = vmatprep.subr.mxu0 0.0
        %2376 = vmatpush2.msra.mxu0 0.0
        %2377 = vmatprep.subr.mxu0 0.0
        %2378 = vmatpush2.msra.mxu0 0.0
        %2379 = vmatprep.mubr.f32.mxu0 0.0
        %2380 = vmatmul.mubr.f32.gmra.mxu0 %v1760
        %v2381 = vpop.f32.mrf.mxu0
        %v2382 = vadd.f32 %v2275, %v2381
        %v2383 = vpop.f32.mrf.mxu0
        %v2384 = vadd.f32 %v2277, %v2383
        %2385 = vmatprep.mubr.f32.mxu0 0.0
        %2386 = vmatmul.mubr.f32.gmra.mxu0 %v1763
        %v2387 = vpop.f32.mrf.mxu0
        %v2388 = vadd.f32 %v2281, %v2387
        %v2389 = vpop.f32.mrf.mxu0
        %v2390 = vadd.f32 %v2283, %v2389
        %2391 = vmatprep.mubr.f32.mxu0 0.0
        %2392 = vmatmul.mubr.f32.gmra.mxu0 %v1766
        %v2393 = vpop.f32.mrf.mxu0
        %v2394 = vadd.f32 %v2287, %v2393
        %v2395 = vpop.f32.mrf.mxu0
        %v2396 = vadd.f32 %v2289, %v2395
        %2397 = vmatprep.mubr.f32.mxu0 0.0
        %2398 = vmatmul.mubr.f32.gmra.mxu0 %v1769
        %v2399 = vpop.f32.mrf.mxu0
        %v2400 = vadd.f32 %v2293, %v2399
        %v2401 = vpop.f32.mrf.mxu0
        %v2402 = vadd.f32 %v2295, %v2401
        %2403 = vmatprep.mubr.f32.mxu0 0.0
        %2404 = vmatmul.mubr.f32.gmra.mxu0 %v1772
        %v2405 = vpop.f32.mrf.mxu0
        %v2406 = vadd.f32 %v2299, %v2405
        %v2407 = vpop.f32.mrf.mxu0
        %v2408 = vadd.f32 %v2301, %v2407
        %2409 = vmatprep.mubr.f32.mxu0 0.0
        %2410 = vmatmul.mubr.f32.gmra.mxu0 %v1775
        %v2411 = vpop.f32.mrf.mxu0
        %v2412 = vadd.f32 %v2305, %v2411
        %v2413 = vpop.f32.mrf.mxu0
        %v2414 = vadd.f32 %v2307, %v2413
        %2415 = vmatprep.mubr.f32.mxu0 0.0
        %2416 = vmatmul.mubr.f32.gmra.mxu0 %v1778
        %v2417 = vpop.f32.mrf.mxu0
        %v2418 = vadd.f32 %v2311, %v2417
        %v2419 = vpop.f32.mrf.mxu0
        %v2420 = vadd.f32 %v2313, %v2419
        %2421 = vdwg.mxu0
        %2422 = vmatprep.subr.mxu0 %v1542
        %2423 = vmatpush1.msra.mxu0 %v1541
        %2424 = vmatprep.subr.mxu0 %v1534
        %2425 = vmatpush1.msra.mxu0 %v1533
        %2426 = vmatprep.subr.mxu0 %v1526
        %2427 = vmatpush1.msra.mxu0 %v1525
        %2428 = vmatprep.subr.mxu0 %v1518
        %2429 = vmatpush1.msra.mxu0 %v1517
        %2430 = vmatprep.subr.mxu0 %v1510
        %2431 = vmatpush1.msra.mxu0 %v1509
        %2432 = vmatprep.subr.mxu0 %v1502
        %2433 = vmatpush1.msra.mxu0 %v1501
        %2434 = vmatprep.subr.mxu0 %v1494
        %2435 = vmatpush1.msra.mxu0 %v1493
        %2436 = vmatprep.subr.mxu0 %v1486
        %2437 = vmatpush1.msra.mxu0 %v1485
        %2438 = vmatprep.subr.mxu0 %v1478
        %2439 = vmatpush1.msra.mxu0 %v1477
        %2440 = vmatprep.subr.mxu0 %v1470
        %2441 = vmatpush1.msra.mxu0 %v1469
        %2442 = vmatprep.subr.mxu0 %v1462
        %2443 = vmatpush1.msra.mxu0 %v1461
        %2444 = vmatprep.subr.mxu0 %v1454
        %2445 = vmatpush1.msra.mxu0 %v1453
        %2446 = vmatprep.subr.mxu0 %v1446
        %2447 = vmatpush1.msra.mxu0 %v1445
        %2448 = vmatprep.subr.mxu0 %v1438
        %2449 = vmatpush1.msra.mxu0 %v1437
        %2450 = vmatprep.subr.mxu0 %v1430
        %2451 = vmatpush1.msra.mxu0 %v1429
        %2452 = vmatprep.subr.mxu0 %v1422
        %2453 = vmatpush1.msra.mxu0 %v1421
        %2454 = vmatprep.subr.mxu0 %v1670
        %2455 = vmatpush2.msra.mxu0 %v1669
        %2456 = vmatprep.subr.mxu0 %v1662
        %2457 = vmatpush2.msra.mxu0 %v1661
        %2458 = vmatprep.subr.mxu0 %v1654
        %2459 = vmatpush2.msra.mxu0 %v1653
        %2460 = vmatprep.subr.mxu0 %v1646
        %2461 = vmatpush2.msra.mxu0 %v1645
        %2462 = vmatprep.subr.mxu0 %v1638
        %2463 = vmatpush2.msra.mxu0 %v1637
        %2464 = vmatprep.subr.mxu0 %v1630
        %2465 = vmatpush2.msra.mxu0 %v1629
        %2466 = vmatprep.subr.mxu0 %v1622
        %2467 = vmatpush2.msra.mxu0 %v1621
        %2468 = vmatprep.subr.mxu0 %v1614
        %2469 = vmatpush2.msra.mxu0 %v1613
        %2470 = vmatprep.subr.mxu0 %v1606
        %2471 = vmatpush2.msra.mxu0 %v1605
        %2472 = vmatprep.subr.mxu0 %v1598
        %2473 = vmatpush2.msra.mxu0 %v1597
        %2474 = vmatprep.subr.mxu0 %v1590
        %2475 = vmatpush2.msra.mxu0 %v1589
        %2476 = vmatprep.subr.mxu0 %v1582
        %2477 = vmatpush2.msra.mxu0 %v1581
        %2478 = vmatprep.subr.mxu0 %v1574
        %2479 = vmatpush2.msra.mxu0 %v1573
        %2480 = vmatprep.subr.mxu0 %v1566
        %2481 = vmatpush2.msra.mxu0 %v1565
        %2482 = vmatprep.subr.mxu0 %v1558
        %2483 = vmatpush2.msra.mxu0 %v1557
        %2484 = vmatprep.subr.mxu0 %v1550
        %2485 = vmatpush2.msra.mxu0 %v1549
        %2486 = vmatprep.mubr.f32.mxu0 %v1395
        %2487 = vmatmul.mubr.f32.gmra.mxu0 %v1394
        %v2488 = vpop.f32.mrf.mxu0
        %v2489 = vadd.f32 0.0, %v2488
        %v2490 = vpop.f32.mrf.mxu0
        %v2491 = vadd.f32 0.0, %v2490
        %2492 = vmatprep.mubr.f32.mxu0 %v1398
        %2493 = vmatmul.mubr.f32.gmra.mxu0 %v1397
        %v2494 = vpop.f32.mrf.mxu0
        %v2495 = vadd.f32 0.0, %v2494
        %v2496 = vpop.f32.mrf.mxu0
        %v2497 = vadd.f32 0.0, %v2496
        %2498 = vmatprep.mubr.f32.mxu0 %v1401
        %2499 = vmatmul.mubr.f32.gmra.mxu0 %v1400
        %v2500 = vpop.f32.mrf.mxu0
        %v2501 = vadd.f32 0.0, %v2500
        %v2502 = vpop.f32.mrf.mxu0
        %v2503 = vadd.f32 0.0, %v2502
        %2504 = vmatprep.mubr.f32.mxu0 %v1404
        %2505 = vmatmul.mubr.f32.gmra.mxu0 %v1403
        %v2506 = vpop.f32.mrf.mxu0
        %v2507 = vadd.f32 0.0, %v2506
        %v2508 = vpop.f32.mrf.mxu0
        %v2509 = vadd.f32 0.0, %v2508
        %2510 = vmatprep.mubr.f32.mxu0 %v1407
        %2511 = vmatmul.mubr.f32.gmra.mxu0 %v1406
        %v2512 = vpop.f32.mrf.mxu0
        %v2513 = vadd.f32 0.0, %v2512
        %v2514 = vpop.f32.mrf.mxu0
        %v2515 = vadd.f32 0.0, %v2514
        %2516 = vmatprep.mubr.f32.mxu0 %v1410
        %2517 = vmatmul.mubr.f32.gmra.mxu0 %v1409
        %v2518 = vpop.f32.mrf.mxu0
        %v2519 = vadd.f32 0.0, %v2518
        %v2520 = vpop.f32.mrf.mxu0
        %v2521 = vadd.f32 0.0, %v2520
        %2522 = vmatprep.mubr.f32.mxu0 %v1413
        %2523 = vmatmul.mubr.f32.gmra.mxu0 %v1412
        %v2524 = vpop.f32.mrf.mxu0
        %v2525 = vadd.f32 0.0, %v2524
        %v2526 = vpop.f32.mrf.mxu0
        %v2527 = vadd.f32 0.0, %v2526
        %2528 = vdwg.mxu0
        %2529 = vmatprep.subr.mxu0 0.0
        %2530 = vmatpush1.msra.mxu0 0.0
        %2531 = vmatprep.subr.mxu0 0.0
        %2532 = vmatpush1.msra.mxu0 0.0
        %2533 = vmatprep.subr.mxu0 0.0
        %2534 = vmatpush1.msra.mxu0 0.0
        %2535 = vmatprep.subr.mxu0 0.0
        %2536 = vmatpush1.msra.mxu0 0.0
        %2537 = vmatprep.subr.mxu0 0.0
        %2538 = vmatpush1.msra.mxu0 0.0
        %2539 = vmatprep.subr.mxu0 %v1758
        %2540 = vmatpush1.msra.mxu0 %v1757
        %2541 = vmatprep.subr.mxu0 %v1750
        %2542 = vmatpush1.msra.mxu0 %v1749
        %2543 = vmatprep.subr.mxu0 %v1742
        %2544 = vmatpush1.msra.mxu0 %v1741
        %2545 = vmatprep.subr.mxu0 %v1734
        %2546 = vmatpush1.msra.mxu0 %v1733
        %2547 = vmatprep.subr.mxu0 %v1726
        %2548 = vmatpush1.msra.mxu0 %v1725
        %2549 = vmatprep.subr.mxu0 %v1718
        %2550 = vmatpush1.msra.mxu0 %v1717
        %2551 = vmatprep.subr.mxu0 %v1710
        %2552 = vmatpush1.msra.mxu0 %v1709
        %2553 = vmatprep.subr.mxu0 %v1702
        %2554 = vmatpush1.msra.mxu0 %v1701
        %2555 = vmatprep.subr.mxu0 %v1694
        %2556 = vmatpush1.msra.mxu0 %v1693
        %2557 = vmatprep.subr.mxu0 %v1686
        %2558 = vmatpush1.msra.mxu0 %v1685
        %2559 = vmatprep.subr.mxu0 %v1678
        %2560 = vmatpush1.msra.mxu0 %v1677
        %2561 = vmatprep.subr.mxu0 0.0
        %2562 = vmatpush2.msra.mxu0 0.0
        %2563 = vmatprep.subr.mxu0 0.0
        %2564 = vmatpush2.msra.mxu0 0.0
        %2565 = vmatprep.subr.mxu0 0.0
        %2566 = vmatpush2.msra.mxu0 0.0
        %2567 = vmatprep.subr.mxu0 0.0
        %2568 = vmatpush2.msra.mxu0 0.0
        %2569 = vmatprep.subr.mxu0 0.0
        %2570 = vmatpush2.msra.mxu0 0.0
        %2571 = vmatprep.subr.mxu0 0.0
        %2572 = vmatpush2.msra.mxu0 0.0
        %2573 = vmatprep.subr.mxu0 0.0
        %2574 = vmatpush2.msra.mxu0 0.0
        %2575 = vmatprep.subr.mxu0 0.0
        %2576 = vmatpush2.msra.mxu0 0.0
        %2577 = vmatprep.subr.mxu0 0.0
        %2578 = vmatpush2.msra.mxu0 0.0
        %2579 = vmatprep.subr.mxu0 0.0
        %2580 = vmatpush2.msra.mxu0 0.0
        %2581 = vmatprep.subr.mxu0 0.0
        %2582 = vmatpush2.msra.mxu0 0.0
        %2583 = vmatprep.subr.mxu0 0.0
        %2584 = vmatpush2.msra.mxu0 0.0
        %2585 = vmatprep.subr.mxu0 0.0
        %2586 = vmatpush2.msra.mxu0 0.0
        %2587 = vmatprep.subr.mxu0 0.0
        %2588 = vmatpush2.msra.mxu0 0.0
        %2589 = vmatprep.subr.mxu0 0.0
        %2590 = vmatpush2.msra.mxu0 0.0
        %2591 = vmatprep.subr.mxu0 0.0
        %2592 = vmatpush2.msra.mxu0 0.0
        %2593 = vmatprep.mubr.f32.mxu0 0.0
        %2594 = vmatmul.mubr.f32.gmra.mxu0 %v1760
        %v2595 = vpop.f32.mrf.mxu0
        %v2596 = vadd.f32 %v2489, %v2595
        %v2597 = vpop.f32.mrf.mxu0
        %v2598 = vadd.f32 %v2491, %v2597
        %2599 = vmatprep.mubr.f32.mxu0 0.0
        %2600 = vmatmul.mubr.f32.gmra.mxu0 %v1763
        %v2601 = vpop.f32.mrf.mxu0
        %v2602 = vadd.f32 %v2495, %v2601
        %v2603 = vpop.f32.mrf.mxu0
        %v2604 = vadd.f32 %v2497, %v2603
        %2605 = vmatprep.mubr.f32.mxu0 0.0
        %2606 = vmatmul.mubr.f32.gmra.mxu0 %v1766
        %v2607 = vpop.f32.mrf.mxu0
        %v2608 = vadd.f32 %v2501, %v2607
        %v2609 = vpop.f32.mrf.mxu0
        %v2610 = vadd.f32 %v2503, %v2609
        %2611 = vmatprep.mubr.f32.mxu0 0.0
        %2612 = vmatmul.mubr.f32.gmra.mxu0 %v1769
        %v2613 = vpop.f32.mrf.mxu0
        %v2614 = vadd.f32 %v2507, %v2613
        %v2615 = vpop.f32.mrf.mxu0
        %v2616 = vadd.f32 %v2509, %v2615
        %2617 = vmatprep.mubr.f32.mxu0 0.0
        %2618 = vmatmul.mubr.f32.gmra.mxu0 %v1772
        %v2619 = vpop.f32.mrf.mxu0
        %v2620 = vadd.f32 %v2513, %v2619
        %v2621 = vpop.f32.mrf.mxu0
        %v2622 = vadd.f32 %v2515, %v2621
        %2623 = vmatprep.mubr.f32.mxu0 0.0
        %2624 = vmatmul.mubr.f32.gmra.mxu0 %v1775
        %v2625 = vpop.f32.mrf.mxu0
        %v2626 = vadd.f32 %v2519, %v2625
        %v2627 = vpop.f32.mrf.mxu0
        %v2628 = vadd.f32 %v2521, %v2627
        %2629 = vmatprep.mubr.f32.mxu0 0.0
        %2630 = vmatmul.mubr.f32.gmra.mxu0 %v1778
        %v2631 = vpop.f32.mrf.mxu0
        %v2632 = vadd.f32 %v2525, %v2631
        %v2633 = vpop.f32.mrf.mxu0
        %v2634 = vadd.f32 %v2527, %v2633
        %2635 = vdwg.mxu0
        %v2636 = vadd.f32 %v1954, %v1960
        %v2637 = vadd.f32 %v2636, %v1966
        %v2638 = vadd.f32 %v2637, %v1972
        %v2639 = vadd.f32 %v2638, %v1978
        %v2640 = vadd.f32 %v2639, %v1984
        %v2641 = vsel %vm1153, %v1990, 0.0
        %v2642 = vadd.f32 %v2640, %v2641
        %v2643 = vrot.slane %v2642, 4
        %v2644 = vadd.f32 %v2642, %v2643
        %v2645 = vrot.slane %v2644, 2
        %v2646 = vadd.f32 %v2644, %v2645
        %v2647 = vrot.slane %v2646, 1
        %v2648 = vadd.f32 %v2646, %v2647
        %v2649 = vadd.f32 %v1956, %v1962
        %v2650 = vadd.f32 %v2649, %v1968
        %v2651 = vadd.f32 %v2650, %v1974
        %v2652 = vadd.f32 %v2651, %v1980
        %v2653 = vadd.f32 %v2652, %v1986
        %v2654 = vsel %vm1153, %v1992, 0.0
        %v2655 = vadd.f32 %v2653, %v2654
        %v2656 = vrot.slane %v2655, 4
        %v2657 = vadd.f32 %v2655, %v2656
        %v2658 = vrot.slane %v2657, 2
        %v2659 = vadd.f32 %v2657, %v2658
        %v2660 = vrot.slane %v2659, 1
        %v2661 = vadd.f32 %v2659, %v2660
        %v2662 = vadd.f32 %v2168, %v2174
        %v2663 = vadd.f32 %v2662, %v2180
        %v2664 = vadd.f32 %v2663, %v2186
        %v2665 = vadd.f32 %v2664, %v2192
        %v2666 = vadd.f32 %v2665, %v2198
        %v2667 = vsel %vm1153, %v2204, 0.0
        %v2668 = vadd.f32 %v2666, %v2667
        %v2669 = vrot.slane %v2668, 4
        %v2670 = vadd.f32 %v2668, %v2669
        %v2671 = vrot.slane %v2670, 2
        %v2672 = vadd.f32 %v2670, %v2671
        %v2673 = vrot.slane %v2672, 1
        %v2674 = vadd.f32 %v2672, %v2673
        %v2675 = vadd.f32 %v2170, %v2176
        %v2676 = vadd.f32 %v2675, %v2182
        %v2677 = vadd.f32 %v2676, %v2188
        %v2678 = vadd.f32 %v2677, %v2194
        %v2679 = vadd.f32 %v2678, %v2200
        %v2680 = vsel %vm1153, %v2206, 0.0
        %v2681 = vadd.f32 %v2679, %v2680
        %v2682 = vrot.slane %v2681, 4
        %v2683 = vadd.f32 %v2681, %v2682
        %v2684 = vrot.slane %v2683, 2
        %v2685 = vadd.f32 %v2683, %v2684
        %v2686 = vrot.slane %v2685, 1
        %v2687 = vadd.f32 %v2685, %v2686
        %v2688 = vadd.f32 %v2382, %v2388
        %v2689 = vadd.f32 %v2688, %v2394
        %v2690 = vadd.f32 %v2689, %v2400
        %v2691 = vadd.f32 %v2690, %v2406
        %v2692 = vadd.f32 %v2691, %v2412
        %v2693 = vsel %vm1153, %v2418, 0.0
        %v2694 = vadd.f32 %v2692, %v2693
        %v2695 = vrot.slane %v2694, 4
        %v2696 = vadd.f32 %v2694, %v2695
        %v2697 = vrot.slane %v2696, 2
        %v2698 = vadd.f32 %v2696, %v2697
        %v2699 = vrot.slane %v2698, 1
        %v2700 = vadd.f32 %v2698, %v2699
        %v2701 = vadd.f32 %v2384, %v2390
        %v2702 = vadd.f32 %v2701, %v2396
        %v2703 = vadd.f32 %v2702, %v2402
        %v2704 = vadd.f32 %v2703, %v2408
        %v2705 = vadd.f32 %v2704, %v2414
        %v2706 = vsel %vm1153, %v2420, 0.0
        %v2707 = vadd.f32 %v2705, %v2706
        %v2708 = vrot.slane %v2707, 4
        %v2709 = vadd.f32 %v2707, %v2708
        %v2710 = vrot.slane %v2709, 2
        %v2711 = vadd.f32 %v2709, %v2710
        %v2712 = vrot.slane %v2711, 1
        %v2713 = vadd.f32 %v2711, %v2712
        %v2714 = vadd.f32 %v2596, %v2602
        %v2715 = vadd.f32 %v2714, %v2608
        %v2716 = vadd.f32 %v2715, %v2614
        %v2717 = vadd.f32 %v2716, %v2620
        %v2718 = vadd.f32 %v2717, %v2626
        %v2719 = vsel %vm1153, %v2632, 0.0
        %v2720 = vadd.f32 %v2718, %v2719
        %v2721 = vrot.slane %v2720, 4
        %v2722 = vadd.f32 %v2720, %v2721
        %v2723 = vrot.slane %v2722, 2
        %v2724 = vadd.f32 %v2722, %v2723
        %v2725 = vrot.slane %v2724, 1
        %v2726 = vadd.f32 %v2724, %v2725
        %v2727 = vadd.f32 %v2598, %v2604
        %v2728 = vadd.f32 %v2727, %v2610
        %v2729 = vadd.f32 %v2728, %v2616
        %v2730 = vadd.f32 %v2729, %v2622
        %v2731 = vadd.f32 %v2730, %v2628
        %v2732 = vsel %vm1153, %v2634, 0.0
        %v2733 = vadd.f32 %v2731, %v2732
        %v2734 = vrot.slane %v2733, 4
        %v2735 = vadd.f32 %v2733, %v2734
        %v2736 = vrot.slane %v2735, 2
        %v2737 = vadd.f32 %v2735, %v2736
        %v2738 = vrot.slane %v2737, 1
        %v2739 = vadd.f32 %v2737, %v2738
        %v2740 = vmul.f32 %v2648, %v1196
        %v2741 = vmul.f32 %v2661, %v1196
        %v2742 = vmul.f32 %v2674, %v1196
        %v2743 = vmul.f32 %v2687, %v1196
        %v2744 = vmul.f32 %v2700, %v1196
        %v2745 = vmul.f32 %v2713, %v1196
        %v2746 = vmul.f32 %v2726, %v1196
        %v2747 = vmul.f32 %v2739, %v1196
        %v2748 = vsub.f32 %v1954, %v2740
        %v2749 = vsub.f32 %v1956, %v2741
        %v2750 = vsub.f32 %v2168, %v2742
        %v2751 = vsub.f32 %v2170, %v2743
        %v2752 = vsub.f32 %v2382, %v2744
        %v2753 = vsub.f32 %v2384, %v2745
        %v2754 = vsub.f32 %v2596, %v2746
        %v2755 = vsub.f32 %v2598, %v2747
        %v2756 = vsub.f32 %v1960, %v2740
        %v2757 = vsub.f32 %v1962, %v2741
        %v2758 = vsub.f32 %v2174, %v2742
        %v2759 = vsub.f32 %v2176, %v2743
        %v2760 = vsub.f32 %v2388, %v2744
        %v2761 = vsub.f32 %v2390, %v2745
        %v2762 = vsub.f32 %v2602, %v2746
        %v2763 = vsub.f32 %v2604, %v2747
        %v2764 = vsub.f32 %v1966, %v2740
        %v2765 = vsub.f32 %v1968, %v2741
        %v2766 = vsub.f32 %v2180, %v2742
        %v2767 = vsub.f32 %v2182, %v2743
        %v2768 = vsub.f32 %v2394, %v2744
        %v2769 = vsub.f32 %v2396, %v2745
        %v2770 = vsub.f32 %v2608, %v2746
        %v2771 = vsub.f32 %v2610, %v2747
        %v2772 = vsub.f32 %v1972, %v2740
        %v2773 = vsub.f32 %v1974, %v2741
        %v2774 = vsub.f32 %v2186, %v2742
        %v2775 = vsub.f32 %v2188, %v2743
        %v2776 = vsub.f32 %v2400, %v2744
        %v2777 = vsub.f32 %v2402, %v2745
        %v2778 = vsub.f32 %v2614, %v2746
        %v2779 = vsub.f32 %v2616, %v2747
        %v2780 = vsub.f32 %v1978, %v2740
        %v2781 = vsub.f32 %v1980, %v2741
        %v2782 = vsub.f32 %v2192, %v2742
        %v2783 = vsub.f32 %v2194, %v2743
        %v2784 = vsub.f32 %v2406, %v2744
        %v2785 = vsub.f32 %v2408, %v2745
        %v2786 = vsub.f32 %v2620, %v2746
        %v2787 = vsub.f32 %v2622, %v2747
        %v2788 = vsub.f32 %v1984, %v2740
        %v2789 = vsub.f32 %v1986, %v2741
        %v2790 = vsub.f32 %v2198, %v2742
        %v2791 = vsub.f32 %v2200, %v2743
        %v2792 = vsub.f32 %v2412, %v2744
        %v2793 = vsub.f32 %v2414, %v2745
        %v2794 = vsub.f32 %v2626, %v2746
        %v2795 = vsub.f32 %v2628, %v2747
        %v2796 = vsub.f32 %v1990, %v2740
        %v2797 = vsub.f32 %v1992, %v2741
        %v2798 = vsub.f32 %v2204, %v2742
        %v2799 = vsub.f32 %v2206, %v2743
        %v2800 = vsub.f32 %v2418, %v2744
        %v2801 = vsub.f32 %v2420, %v2745
        %v2802 = vsub.f32 %v2632, %v2746
        %v2803 = vsub.f32 %v2634, %v2747
        %v2804 = vmul.f32 %v2748, %v2748
        %v2805 = vmul.f32 %v2749, %v2749
        %v2806 = vmul.f32 %v2750, %v2750
        %v2807 = vmul.f32 %v2751, %v2751
        %v2808 = vmul.f32 %v2752, %v2752
        %v2809 = vmul.f32 %v2753, %v2753
        %v2810 = vmul.f32 %v2754, %v2754
        %v2811 = vmul.f32 %v2755, %v2755
        %v2812 = vmul.f32 %v2756, %v2756
        %v2813 = vmul.f32 %v2757, %v2757
        %v2814 = vmul.f32 %v2758, %v2758
        %v2815 = vmul.f32 %v2759, %v2759
        %v2816 = vmul.f32 %v2760, %v2760
        %v2817 = vmul.f32 %v2761, %v2761
        %v2818 = vmul.f32 %v2762, %v2762
        %v2819 = vmul.f32 %v2763, %v2763
        %v2820 = vmul.f32 %v2764, %v2764
        %v2821 = vmul.f32 %v2765, %v2765
        %v2822 = vmul.f32 %v2766, %v2766
        %v2823 = vmul.f32 %v2767, %v2767
        %v2824 = vmul.f32 %v2768, %v2768
        %v2825 = vmul.f32 %v2769, %v2769
        %v2826 = vmul.f32 %v2770, %v2770
        %v2827 = vmul.f32 %v2771, %v2771
        %v2828 = vmul.f32 %v2772, %v2772
        %v2829 = vmul.f32 %v2773, %v2773
        %v2830 = vmul.f32 %v2774, %v2774
        %v2831 = vmul.f32 %v2775, %v2775
        %v2832 = vmul.f32 %v2776, %v2776
        %v2833 = vmul.f32 %v2777, %v2777
        %v2834 = vmul.f32 %v2778, %v2778
        %v2835 = vmul.f32 %v2779, %v2779
        %v2836 = vmul.f32 %v2780, %v2780
        %v2837 = vmul.f32 %v2781, %v2781
        %v2838 = vmul.f32 %v2782, %v2782
        %v2839 = vmul.f32 %v2783, %v2783
        %v2840 = vmul.f32 %v2784, %v2784
        %v2841 = vmul.f32 %v2785, %v2785
        %v2842 = vmul.f32 %v2786, %v2786
        %v2843 = vmul.f32 %v2787, %v2787
        %v2844 = vmul.f32 %v2788, %v2788
        %v2845 = vmul.f32 %v2789, %v2789
        %v2846 = vmul.f32 %v2790, %v2790
        %v2847 = vmul.f32 %v2791, %v2791
        %v2848 = vmul.f32 %v2792, %v2792
        %v2849 = vmul.f32 %v2793, %v2793
        %v2850 = vmul.f32 %v2794, %v2794
        %v2851 = vmul.f32 %v2795, %v2795
        %v2852 = vmul.f32 %v2796, %v2796
        %v2853 = vmul.f32 %v2797, %v2797
        %v2854 = vmul.f32 %v2798, %v2798
        %v2855 = vmul.f32 %v2799, %v2799
        %v2856 = vmul.f32 %v2800, %v2800
        %v2857 = vmul.f32 %v2801, %v2801
        %v2858 = vmul.f32 %v2802, %v2802
        %v2859 = vmul.f32 %v2803, %v2803
        %v2860 = vadd.f32 %v2804, %v2812
        %v2861 = vadd.f32 %v2860, %v2820
        %v2862 = vadd.f32 %v2861, %v2828
        %v2863 = vadd.f32 %v2862, %v2836
        %v2864 = vadd.f32 %v2863, %v2844
        %v2865 = vsel %vm1153, %v2852, 0.0
        %v2866 = vadd.f32 %v2864, %v2865
        %v2867 = vrot.slane %v2866, 4
        %v2868 = vadd.f32 %v2866, %v2867
        %v2869 = vrot.slane %v2868, 2
        %v2870 = vadd.f32 %v2868, %v2869
        %v2871 = vrot.slane %v2870, 1
        %v2872 = vadd.f32 %v2870, %v2871
        %v2873 = vadd.f32 %v2805, %v2813
        %v2874 = vadd.f32 %v2873, %v2821
        %v2875 = vadd.f32 %v2874, %v2829
        %v2876 = vadd.f32 %v2875, %v2837
        %v2877 = vadd.f32 %v2876, %v2845
        %v2878 = vsel %vm1153, %v2853, 0.0
        %v2879 = vadd.f32 %v2877, %v2878
        %v2880 = vrot.slane %v2879, 4
        %v2881 = vadd.f32 %v2879, %v2880
        %v2882 = vrot.slane %v2881, 2
        %v2883 = vadd.f32 %v2881, %v2882
        %v2884 = vrot.slane %v2883, 1
        %v2885 = vadd.f32 %v2883, %v2884
        %v2886 = vadd.f32 %v2806, %v2814
        %v2887 = vadd.f32 %v2886, %v2822
        %v2888 = vadd.f32 %v2887, %v2830
        %v2889 = vadd.f32 %v2888, %v2838
        %v2890 = vadd.f32 %v2889, %v2846
        %v2891 = vsel %vm1153, %v2854, 0.0
        %v2892 = vadd.f32 %v2890, %v2891
        %v2893 = vrot.slane %v2892, 4
        %v2894 = vadd.f32 %v2892, %v2893
        %v2895 = vrot.slane %v2894, 2
        %v2896 = vadd.f32 %v2894, %v2895
        %v2897 = vrot.slane %v2896, 1
        %v2898 = vadd.f32 %v2896, %v2897
        %v2899 = vadd.f32 %v2807, %v2815
        %v2900 = vadd.f32 %v2899, %v2823
        %v2901 = vadd.f32 %v2900, %v2831
        %v2902 = vadd.f32 %v2901, %v2839
        %v2903 = vadd.f32 %v2902, %v2847
        %v2904 = vsel %vm1153, %v2855, 0.0
        %v2905 = vadd.f32 %v2903, %v2904
        %v2906 = vrot.slane %v2905, 4
        %v2907 = vadd.f32 %v2905, %v2906
        %v2908 = vrot.slane %v2907, 2
        %v2909 = vadd.f32 %v2907, %v2908
        %v2910 = vrot.slane %v2909, 1
        %v2911 = vadd.f32 %v2909, %v2910
        %v2912 = vadd.f32 %v2808, %v2816
        %v2913 = vadd.f32 %v2912, %v2824
        %v2914 = vadd.f32 %v2913, %v2832
        %v2915 = vadd.f32 %v2914, %v2840
        %v2916 = vadd.f32 %v2915, %v2848
        %v2917 = vsel %vm1153, %v2856, 0.0
        %v2918 = vadd.f32 %v2916, %v2917
        %v2919 = vrot.slane %v2918, 4
        %v2920 = vadd.f32 %v2918, %v2919
        %v2921 = vrot.slane %v2920, 2
        %v2922 = vadd.f32 %v2920, %v2921
        %v2923 = vrot.slane %v2922, 1
        %v2924 = vadd.f32 %v2922, %v2923
        %v2925 = vadd.f32 %v2809, %v2817
        %v2926 = vadd.f32 %v2925, %v2825
        %v2927 = vadd.f32 %v2926, %v2833
        %v2928 = vadd.f32 %v2927, %v2841
        %v2929 = vadd.f32 %v2928, %v2849
        %v2930 = vsel %vm1153, %v2857, 0.0
        %v2931 = vadd.f32 %v2929, %v2930
        %v2932 = vrot.slane %v2931, 4
        %v2933 = vadd.f32 %v2931, %v2932
        %v2934 = vrot.slane %v2933, 2
        %v2935 = vadd.f32 %v2933, %v2934
        %v2936 = vrot.slane %v2935, 1
        %v2937 = vadd.f32 %v2935, %v2936
        %v2938 = vadd.f32 %v2810, %v2818
        %v2939 = vadd.f32 %v2938, %v2826
        %v2940 = vadd.f32 %v2939, %v2834
        %v2941 = vadd.f32 %v2940, %v2842
        %v2942 = vadd.f32 %v2941, %v2850
        %v2943 = vsel %vm1153, %v2858, 0.0
        %v2944 = vadd.f32 %v2942, %v2943
        %v2945 = vrot.slane %v2944, 4
        %v2946 = vadd.f32 %v2944, %v2945
        %v2947 = vrot.slane %v2946, 2
        %v2948 = vadd.f32 %v2946, %v2947
        %v2949 = vrot.slane %v2948, 1
        %v2950 = vadd.f32 %v2948, %v2949
        %v2951 = vadd.f32 %v2811, %v2819
        %v2952 = vadd.f32 %v2951, %v2827
        %v2953 = vadd.f32 %v2952, %v2835
        %v2954 = vadd.f32 %v2953, %v2843
        %v2955 = vadd.f32 %v2954, %v2851
        %v2956 = vsel %vm1153, %v2859, 0.0
        %v2957 = vadd.f32 %v2955, %v2956
        %v2958 = vrot.slane %v2957, 4
        %v2959 = vadd.f32 %v2957, %v2958
        %v2960 = vrot.slane %v2959, 2
        %v2961 = vadd.f32 %v2959, %v2960
        %v2962 = vrot.slane %v2961, 1
        %v2963 = vadd.f32 %v2961, %v2962
        %v2964 = vmul.f32 %v2872, %v1196
        %v2965 = vmul.f32 %v2885, %v1196
        %v2966 = vmul.f32 %v2898, %v1196
        %v2967 = vmul.f32 %v2911, %v1196
        %v2968 = vmul.f32 %v2924, %v1196
        %v2969 = vmul.f32 %v2937, %v1196
        %v2970 = vmul.f32 %v2950, %v1196
        %v2971 = vmul.f32 %v2963, %v1196
        %v2972 = vld [vmem:[%s1095] ss:$2 sm:$0xff]
        %v2974 = vlaneseq
        %v2975 = vshrl.u32 %v2974, 7
        %v2976 = vsub.s32 0, %v2975
        %v2977 = vrot.slane %v2972, %v2976
        %v2978 = vlaneseq
        %v2979 = vshrl.u32 %v2978, 7
        %v2980 = vsub.s32 1, %v2979
        %v2981 = vrot.slane %v2972, %v2980
        %v2982 = vlaneseq
        %v2983 = vshrl.u32 %v2982, 7
        %v2984 = vsub.s32 2, %v2983
        %v2985 = vrot.slane %v2972, %v2984
        %v2986 = vlaneseq
        %v2987 = vshrl.u32 %v2986, 7
        %v2988 = vsub.s32 3, %v2987
        %v2989 = vrot.slane %v2972, %v2988
        %v2990 = vlaneseq
        %v2991 = vshrl.u32 %v2990, 7
        %v2992 = vsub.s32 4, %v2991
        %v2993 = vrot.slane %v2972, %v2992
        %v2994 = vlaneseq
        %v2995 = vshrl.u32 %v2994, 7
        %v2996 = vsub.s32 5, %v2995
        %v2997 = vrot.slane %v2972, %v2996
        %v2998 = vlaneseq
        %v2999 = vshrl.u32 %v2998, 7
        %v3000 = vsub.s32 6, %v2999
        %v3001 = vrot.slane %v2972, %v3000
        %v3002 = vlaneseq
        %v3003 = vshrl.u32 %v3002, 7
        %v3004 = vsub.s32 7, %v3003
        %v3005 = vrot.slane %v2972, %v3004
        %v3014 = vmul.f32 %v2977, %v2748
        %v3015 = vmul.f32 %v2981, %v2749
        %v3016 = vmul.f32 %v2985, %v2750
        %v3017 = vmul.f32 %v2989, %v2751
        %v3018 = vmul.f32 %v2993, %v2752
        %v3019 = vmul.f32 %v2997, %v2753
        %v3020 = vmul.f32 %v3001, %v2754
        %v3021 = vmul.f32 %v3005, %v2755
        %v3022 = vmul.f32 %v2977, %v2756
        %v3023 = vmul.f32 %v2981, %v2757
        %v3024 = vmul.f32 %v2985, %v2758
        %v3025 = vmul.f32 %v2989, %v2759
        %v3026 = vmul.f32 %v2993, %v2760
        %v3027 = vmul.f32 %v2997, %v2761
        %v3028 = vmul.f32 %v3001, %v2762
        %v3029 = vmul.f32 %v3005, %v2763
        %v3030 = vmul.f32 %v2977, %v2764
        %v3031 = vmul.f32 %v2981, %v2765
        %v3032 = vmul.f32 %v2985, %v2766
        %v3033 = vmul.f32 %v2989, %v2767
        %v3034 = vmul.f32 %v2993, %v2768
        %v3035 = vmul.f32 %v2997, %v2769
        %v3036 = vmul.f32 %v3001, %v2770
        %v3037 = vmul.f32 %v3005, %v2771
        %v3038 = vmul.f32 %v2977, %v2772
        %v3039 = vmul.f32 %v2981, %v2773
        %v3040 = vmul.f32 %v2985, %v2774
        %v3041 = vmul.f32 %v2989, %v2775
        %v3042 = vmul.f32 %v2993, %v2776
        %v3043 = vmul.f32 %v2997, %v2777
        %v3044 = vmul.f32 %v3001, %v2778
        %v3045 = vmul.f32 %v3005, %v2779
        %v3046 = vmul.f32 %v2977, %v2780
        %v3047 = vmul.f32 %v2981, %v2781
        %v3048 = vmul.f32 %v2985, %v2782
        %v3049 = vmul.f32 %v2989, %v2783
        %v3050 = vmul.f32 %v2993, %v2784
        %v3051 = vmul.f32 %v2997, %v2785
        %v3052 = vmul.f32 %v3001, %v2786
        %v3053 = vmul.f32 %v3005, %v2787
        %v3054 = vmul.f32 %v2977, %v2788
        %v3055 = vmul.f32 %v2981, %v2789
        %v3056 = vmul.f32 %v2985, %v2790
        %v3057 = vmul.f32 %v2989, %v2791
        %v3058 = vmul.f32 %v2993, %v2792
        %v3059 = vmul.f32 %v2997, %v2793
        %v3060 = vmul.f32 %v3001, %v2794
        %v3061 = vmul.f32 %v3005, %v2795
        %v3062 = vmul.f32 %v2977, %v2796
        %v3063 = vmul.f32 %v2981, %v2797
        %v3064 = vmul.f32 %v2985, %v2798
        %v3065 = vmul.f32 %v2989, %v2799
        %v3066 = vmul.f32 %v2993, %v2800
        %v3067 = vmul.f32 %v2997, %v2801
        %v3068 = vmul.f32 %v3001, %v2802
        %v3069 = vmul.f32 %v3005, %v2803
        %v3070 = vadd.f32 %v2964, 1e-05
        %v3071 = vadd.f32 %v2965, 1e-05
        %v3072 = vadd.f32 %v2966, 1e-05
        %v3073 = vadd.f32 %v2967, 1e-05
        %v3074 = vadd.f32 %v2968, 1e-05
        %v3075 = vadd.f32 %v2969, 1e-05
        %v3076 = vadd.f32 %v2970, 1e-05
        %v3077 = vadd.f32 %v2971, 1e-05
        %v3078 = vrsqrt.pop %v3070
        %v3079 = vrsqrt.pop %v3071
        %v3080 = vrsqrt.pop %v3072
        %v3081 = vrsqrt.pop %v3073
        %v3082 = vrsqrt.pop %v3074
        %v3083 = vrsqrt.pop %v3075
        %v3084 = vrsqrt.pop %v3076
        %v3085 = vrsqrt.pop %v3077
        %v3086 = vmul.f32 %v3014, %v3078
        %v3087 = vmul.f32 %v3015, %v3079
        %v3088 = vmul.f32 %v3016, %v3080
        %v3089 = vmul.f32 %v3017, %v3081
        %v3090 = vmul.f32 %v3018, %v3082
        %v3091 = vmul.f32 %v3019, %v3083
        %v3092 = vmul.f32 %v3020, %v3084
        %v3093 = vmul.f32 %v3021, %v3085
        %v3094 = vmul.f32 %v3022, %v3078
        %v3095 = vmul.f32 %v3023, %v3079
        %v3096 = vmul.f32 %v3024, %v3080
        %v3097 = vmul.f32 %v3025, %v3081
        %v3098 = vmul.f32 %v3026, %v3082
        %v3099 = vmul.f32 %v3027, %v3083
        %v3100 = vmul.f32 %v3028, %v3084
        %v3101 = vmul.f32 %v3029, %v3085
        %v3102 = vmul.f32 %v3030, %v3078
        %v3103 = vmul.f32 %v3031, %v3079
        %v3104 = vmul.f32 %v3032, %v3080
        %v3105 = vmul.f32 %v3033, %v3081
        %v3106 = vmul.f32 %v3034, %v3082
        %v3107 = vmul.f32 %v3035, %v3083
        %v3108 = vmul.f32 %v3036, %v3084
        %v3109 = vmul.f32 %v3037, %v3085
        %v3110 = vmul.f32 %v3038, %v3078
        %v3111 = vmul.f32 %v3039, %v3079
        %v3112 = vmul.f32 %v3040, %v3080
        %v3113 = vmul.f32 %v3041, %v3081
        %v3114 = vmul.f32 %v3042, %v3082
        %v3115 = vmul.f32 %v3043, %v3083
        %v3116 = vmul.f32 %v3044, %v3084
        %v3117 = vmul.f32 %v3045, %v3085
        %v3118 = vmul.f32 %v3046, %v3078
        %v3119 = vmul.f32 %v3047, %v3079
        %v3120 = vmul.f32 %v3048, %v3080
        %v3121 = vmul.f32 %v3049, %v3081
        %v3122 = vmul.f32 %v3050, %v3082
        %v3123 = vmul.f32 %v3051, %v3083
        %v3124 = vmul.f32 %v3052, %v3084
        %v3125 = vmul.f32 %v3053, %v3085
        %v3126 = vmul.f32 %v3054, %v3078
        %v3127 = vmul.f32 %v3055, %v3079
        %v3128 = vmul.f32 %v3056, %v3080
        %v3129 = vmul.f32 %v3057, %v3081
        %v3130 = vmul.f32 %v3058, %v3082
        %v3131 = vmul.f32 %v3059, %v3083
        %v3132 = vmul.f32 %v3060, %v3084
        %v3133 = vmul.f32 %v3061, %v3085
        %v3134 = vmul.f32 %v3062, %v3078
        %v3135 = vmul.f32 %v3063, %v3079
        %v3136 = vmul.f32 %v3064, %v3080
        %v3137 = vmul.f32 %v3065, %v3081
        %v3138 = vmul.f32 %v3066, %v3082
        %v3139 = vmul.f32 %v3067, %v3083
        %v3140 = vmul.f32 %v3068, %v3084
        %v3141 = vmul.f32 %v3069, %v3085
        %s3142 = scalar_lea.vmem %s1095, 1
        %v3143 = vld [vmem:[%s3142] ss:$2 sm:$0xff]
        %v3145 = vlaneseq
        %v3146 = vshrl.u32 %v3145, 7
        %v3147 = vsub.s32 0, %v3146
        %v3148 = vrot.slane %v3143, %v3147
        %v3149 = vlaneseq
        %v3150 = vshrl.u32 %v3149, 7
        %v3151 = vsub.s32 1, %v3150
        %v3152 = vrot.slane %v3143, %v3151
        %v3153 = vlaneseq
        %v3154 = vshrl.u32 %v3153, 7
        %v3155 = vsub.s32 2, %v3154
        %v3156 = vrot.slane %v3143, %v3155
        %v3157 = vlaneseq
        %v3158 = vshrl.u32 %v3157, 7
        %v3159 = vsub.s32 3, %v3158
        %v3160 = vrot.slane %v3143, %v3159
        %v3161 = vlaneseq
        %v3162 = vshrl.u32 %v3161, 7
        %v3163 = vsub.s32 4, %v3162
        %v3164 = vrot.slane %v3143, %v3163
        %v3165 = vlaneseq
        %v3166 = vshrl.u32 %v3165, 7
        %v3167 = vsub.s32 5, %v3166
        %v3168 = vrot.slane %v3143, %v3167
        %v3169 = vlaneseq
        %v3170 = vshrl.u32 %v3169, 7
        %v3171 = vsub.s32 6, %v3170
        %v3172 = vrot.slane %v3143, %v3171
        %v3173 = vlaneseq
        %v3174 = vshrl.u32 %v3173, 7
        %v3175 = vsub.s32 7, %v3174
        %v3176 = vrot.slane %v3143, %v3175
        %v3185 = vadd.f32 %v3086, %v3148
        %v3186 = vadd.f32 %v3087, %v3152
        %v3187 = vadd.f32 %v3088, %v3156
        %v3188 = vadd.f32 %v3089, %v3160
        %v3189 = vadd.f32 %v3090, %v3164
        %v3190 = vadd.f32 %v3091, %v3168
        %v3191 = vadd.f32 %v3092, %v3172
        %v3192 = vadd.f32 %v3093, %v3176
        %v3193 = vadd.f32 %v3094, %v3148
        %v3194 = vadd.f32 %v3095, %v3152
        %v3195 = vadd.f32 %v3096, %v3156
        %v3196 = vadd.f32 %v3097, %v3160
        %v3197 = vadd.f32 %v3098, %v3164
        %v3198 = vadd.f32 %v3099, %v3168
        %v3199 = vadd.f32 %v3100, %v3172
        %v3200 = vadd.f32 %v3101, %v3176
        %v3201 = vadd.f32 %v3102, %v3148
        %v3202 = vadd.f32 %v3103, %v3152
        %v3203 = vadd.f32 %v3104, %v3156
        %v3204 = vadd.f32 %v3105, %v3160
        %v3205 = vadd.f32 %v3106, %v3164
        %v3206 = vadd.f32 %v3107, %v3168
        %v3207 = vadd.f32 %v3108, %v3172
        %v3208 = vadd.f32 %v3109, %v3176
        %v3209 = vadd.f32 %v3110, %v3148
        %v3210 = vadd.f32 %v3111, %v3152
        %v3211 = vadd.f32 %v3112, %v3156
        %v3212 = vadd.f32 %v3113, %v3160
        %v3213 = vadd.f32 %v3114, %v3164
        %v3214 = vadd.f32 %v3115, %v3168
        %v3215 = vadd.f32 %v3116, %v3172
        %v3216 = vadd.f32 %v3117, %v3176
        %v3217 = vadd.f32 %v3118, %v3148
        %v3218 = vadd.f32 %v3119, %v3152
        %v3219 = vadd.f32 %v3120, %v3156
        %v3220 = vadd.f32 %v3121, %v3160
        %v3221 = vadd.f32 %v3122, %v3164
        %v3222 = vadd.f32 %v3123, %v3168
        %v3223 = vadd.f32 %v3124, %v3172
        %v3224 = vadd.f32 %v3125, %v3176
        %v3225 = vadd.f32 %v3126, %v3148
        %v3226 = vadd.f32 %v3127, %v3152
        %v3227 = vadd.f32 %v3128, %v3156
        %v3228 = vadd.f32 %v3129, %v3160
        %v3229 = vadd.f32 %v3130, %v3164
        %v3230 = vadd.f32 %v3131, %v3168
        %v3231 = vadd.f32 %v3132, %v3172
        %v3232 = vadd.f32 %v3133, %v3176
        %v3233 = vadd.f32 %v3134, %v3148
        %v3234 = vadd.f32 %v3135, %v3152
        %v3235 = vadd.f32 %v3136, %v3156
        %v3236 = vadd.f32 %v3137, %v3160
        %v3237 = vadd.f32 %v3138, %v3164
        %v3238 = vadd.f32 %v3139, %v3168
        %v3239 = vadd.f32 %v3140, %v3172
        %v3240 = vadd.f32 %v3141, %v3176
        %3241 = vst [vmem:[%s1081] sm:$0xff] %v3185
        %3242 = vst [vmem:[%s1081 + $0x8] sm:$0xff] %v3186
        %3243 = vst [vmem:[%s1081 + $0x10] sm:$0xff] %v3187
        %3244 = vst [vmem:[%s1081 + $0x18] sm:$0xff] %v3188
        %3245 = vst [vmem:[%s1081 + $0x20] sm:$0xff] %v3189
        %3246 = vst [vmem:[%s1081 + $0x28] sm:$0xff] %v3190
        %3247 = vst [vmem:[%s1081 + $0x30] sm:$0xff] %v3191
        %3248 = vst [vmem:[%s1081 + $0x38] sm:$0xff] %v3192
        %3249 = vst [vmem:[%s1081 + $0x40] sm:$0xff] %v3193
        %3250 = vst [vmem:[%s1081 + $0x48] sm:$0xff] %v3194
        %3251 = vst [vmem:[%s1081 + $0x50] sm:$0xff] %v3195
        %3252 = vst [vmem:[%s1081 + $0x58] sm:$0xff] %v3196
        %3253 = vst [vmem:[%s1081 + $0x60] sm:$0xff] %v3197
        %3254 = vst [vmem:[%s1081 + $0x68] sm:$0xff] %v3198
        %3255 = vst [vmem:[%s1081 + $0x70] sm:$0xff] %v3199
        %3256 = vst [vmem:[%s1081 + $0x78] sm:$0xff] %v3200
        %3257 = vst [vmem:[%s1081 + $0x80] sm:$0xff] %v3201
        %3258 = vst [vmem:[%s1081 + $0x88] sm:$0xff] %v3202
        %3259 = vst [vmem:[%s1081 + $0x90] sm:$0xff] %v3203
        %3260 = vst [vmem:[%s1081 + $0x98] sm:$0xff] %v3204
        %3261 = vst [vmem:[%s1081 + $0xa0] sm:$0xff] %v3205
        %3262 = vst [vmem:[%s1081 + $0xa8] sm:$0xff] %v3206
        %3263 = vst [vmem:[%s1081 + $0xb0] sm:$0xff] %v3207
        %3264 = vst [vmem:[%s1081 + $0xb8] sm:$0xff] %v3208
        %3265 = vst [vmem:[%s1081 + $0xc0] sm:$0xff] %v3209
        %3266 = vst [vmem:[%s1081 + $0xc8] sm:$0xff] %v3210
        %3267 = vst [vmem:[%s1081 + $0xd0] sm:$0xff] %v3211
        %3268 = vst [vmem:[%s1081 + $0xd8] sm:$0xff] %v3212
        %3269 = vst [vmem:[%s1081 + $0xe0] sm:$0xff] %v3213
        %3270 = vst [vmem:[%s1081 + $0xe8] sm:$0xff] %v3214
        %3271 = vst [vmem:[%s1081 + $0xf0] sm:$0xff] %v3215
        %3272 = vst [vmem:[%s1081 + $0xf8] sm:$0xff] %v3216
        %3273 = vst [vmem:[%s1081 + $0x100] sm:$0xff] %v3217
        %3274 = vst [vmem:[%s1081 + $0x108] sm:$0xff] %v3218
        %3275 = vst [vmem:[%s1081 + $0x110] sm:$0xff] %v3219
        %3276 = vst [vmem:[%s1081 + $0x118] sm:$0xff] %v3220
        %3277 = vst [vmem:[%s1081 + $0x120] sm:$0xff] %v3221
        %3278 = vst [vmem:[%s1081 + $0x128] sm:$0xff] %v3222
        %3279 = vst [vmem:[%s1081 + $0x130] sm:$0xff] %v3223
        %3280 = vst [vmem:[%s1081 + $0x138] sm:$0xff] %v3224
        %3281 = vst [vmem:[%s1081 + $0x140] sm:$0xff] %v3225
        %3282 = vst [vmem:[%s1081 + $0x148] sm:$0xff] %v3226
        %3283 = vst [vmem:[%s1081 + $0x150] sm:$0xff] %v3227
        %3284 = vst [vmem:[%s1081 + $0x158] sm:$0xff] %v3228
        %3285 = vst [vmem:[%s1081 + $0x160] sm:$0xff] %v3229
        %3286 = vst [vmem:[%s1081 + $0x168] sm:$0xff] %v3230
        %3287 = vst [vmem:[%s1081 + $0x170] sm:$0xff] %v3231
        %3288 = vst [vmem:[%s1081 + $0x178] sm:$0xff] %v3232
        %3289 = vst [vmem:[%s1081 + $0x180] sm:$0x1] %v3233
        %3290 = vst [vmem:[%s1081 + $0x188] sm:$0x1] %v3234
        %3291 = vst [vmem:[%s1081 + $0x190] sm:$0x1] %v3235
        %3292 = vst [vmem:[%s1081 + $0x198] sm:$0x1] %v3236
        %3293 = vst [vmem:[%s1081 + $0x1a0] sm:$0x1] %v3237
        %3294 = vst [vmem:[%s1081 + $0x1a8] sm:$0x1] %v3238
        %3295 = vst [vmem:[%s1081 + $0x1b0] sm:$0x1] %v3239
        %3296 = vst [vmem:[%s1081 + $0x1b8] sm:$0x1] %v3240
        %s3297 = sand.u32 %s139, 1
        %s3298 = sand.u32 %s139, 1
        %s3299 = smul.addr %s3298, 448
        %s3300 = scalar_lea.vmem [#allocation3], %s3299
        // Predicated region
        $region107: #{model_forward.1} parent=101 // pred_check
          %p3301 = pneg %p149
        $region108: #{model_forward.1} parent=101 // pred_check_branch
          %3303 = sbr.rel (%p3301) target = $region110
        $region109: #{model_forward.1} parent=101 // pred_region
          %s3304 = smul.u32 8, %s16
          %s3305 = ssub.s32 17, %s3304
          %p3306 = scmp.lt.s32.totalorder %s3305, 8
          %s3307 = scalar_select %p3306, %s3305, 8
          %s3308 = smul.u32 896, %s3307
          %p3309 = scmp.ne.s32.totalorder 0, %s3308
          %s3310 = smul.addr %s3304, 8
          %s3311 = scalar_lea.vmem %s5, %s3310
          %s3312 = smul.u32 %s3307, 8
          // Predicated region
          $region111: #{model_forward.1} parent=109 // pred_check
            %p3313 = pneg %p3309
          $region112: #{model_forward.1} parent=109 // pred_check_branch
            %3315 = sbr.rel (%p3313) target = $region114
          $region113: #{model_forward.1} parent=109 // pred_region
            %p3316 = scmp.lt.u32.totalorder %s3312, 8
            %p3317 = pneg %p3316
            // Predicated region
            $region115: #{model_forward.1} parent=113 // pred_check
              _
            $region116: #{model_forward.1} parent=113 // pred_check_branch
              %3319 = sbr.rel (%p3316) target = $region118
            $region117: #{model_forward.1} parent=113 // pred_region
              %s3347 = sand.u32 %s3312, 7
              %p3348 = scmp.eq.s32.totalorder %s3347, 0
              // Predicated region
              $region130: #{model_forward.1} parent=117 // pred_check
                %p3349 = pneg %p3348
              $region131: #{model_forward.1} parent=117 // pred_check_branch
                %3351 = sbr.rel (%p3349) target = $region133
              $region132: #{model_forward.1} parent=117 // pred_region
                %s3352 = sshrl.u32 %s3312, 3
                %s3353 = sdiv.u32.pop %s3352, 12
                %s3354 = srem.u32.pop %s3352, 12
                // While loop
                $region134: #{model_forward.1} parent=132 // loop_pre_header
                  _
                $region135: #{model_forward.1} parent=132 // loop_header
                  %s3358 = sphi 0, %s3360
                  %p3359 = scmp.ge.s32.totalorder %s3358, %s3353
                  %s3363 = sphi 0, %s3536
                  %s3364 = sphi %s3300, %s3539
                  %s3365 = sphi %s3311, %s3540
                $region136: #{model_forward.1} parent=132 // loop_header_branch
                  %3362 = sbr.rel (%p3359) target = $region140
                $region137: #{model_forward.1} parent=132 // loop_body
                  %v3366 = vld [vmem:[%s3364] sm:$0xff]
                  %3367 = vst [vmem:[%s3365] sm:$0xff] %v3366
                  %v3368 = vld [vmem:[%s3364 + $0x8] sm:$0xff]
                  %3369 = vst [vmem:[%s3365 + $0x8] sm:$0xff] %v3368
                  %v3370 = vld [vmem:[%s3364 + $0x10] sm:$0xff]
                  %3371 = vst [vmem:[%s3365 + $0x10] sm:$0xff] %v3370
                  %v3372 = vld [vmem:[%s3364 + $0x18] sm:$0xff]
                  %3373 = vst [vmem:[%s3365 + $0x18] sm:$0xff] %v3372
                  %v3374 = vld [vmem:[%s3364 + $0x20] sm:$0xff]
                  %3375 = vst [vmem:[%s3365 + $0x20] sm:$0xff] %v3374
                  %v3376 = vld [vmem:[%s3364 + $0x28] sm:$0xff]
                  %3377 = vst [vmem:[%s3365 + $0x28] sm:$0xff] %v3376
                  %v3378 = vld [vmem:[%s3364 + $0x30] sm:$0xff]
                  %3379 = vst [vmem:[%s3365 + $0x30] sm:$0xff] %v3378
                  %v3380 = vld [vmem:[%s3364 + $0x38] sm:$0xff]
                  %3381 = vst [vmem:[%s3365 + $0x38] sm:$0xff] %v3380
                  %v3382 = vld [vmem:[%s3364 + $0x40] sm:$0xff]
                  %3383 = vst [vmem:[%s3365 + $0x40] sm:$0xff] %v3382
                  %v3384 = vld [vmem:[%s3364 + $0x48] sm:$0xff]
                  %3385 = vst [vmem:[%s3365 + $0x48] sm:$0xff] %v3384
                  %v3386 = vld [vmem:[%s3364 + $0x50] sm:$0xff]
                  %3387 = vst [vmem:[%s3365 + $0x50] sm:$0xff] %v3386
                  %v3388 = vld [vmem:[%s3364 + $0x58] sm:$0xff]
                  %3389 = vst [vmem:[%s3365 + $0x58] sm:$0xff] %v3388
                  %v3390 = vld [vmem:[%s3364 + $0x40] sm:$0xff]
                  %3391 = vst [vmem:[%s3365 + $0x88] sm:$0xff] %v3390
                  %v3392 = vld [vmem:[%s3364 + $0x48] sm:$0xff]
                  %3393 = vst [vmem:[%s3365 + $0x90] sm:$0xff] %v3392
                  %v3394 = vld [vmem:[%s3364 + $0x50] sm:$0xff]
                  %3395 = vst [vmem:[%s3365 + $0x98] sm:$0xff] %v3394
                  %v3396 = vld [vmem:[%s3364 + $0x58] sm:$0xff]
                  %3397 = vst [vmem:[%s3365 + $0xa0] sm:$0xff] %v3396
                  %v3398 = vld [vmem:[%s3364 + $0x60] sm:$0xff]
                  %3399 = vst [vmem:[%s3365 + $0xa8] sm:$0xff] %v3398
                  %v3400 = vld [vmem:[%s3364 + $0x68] sm:$0xff]
                  %3401 = vst [vmem:[%s3365 + $0xb0] sm:$0xff] %v3400
                  %v3402 = vld [vmem:[%s3364 + $0x70] sm:$0xff]
                  %3403 = vst [vmem:[%s3365 + $0xb8] sm:$0xff] %v3402
                  %v3404 = vld [vmem:[%s3364 + $0x78] sm:$0xff]
                  %3405 = vst [vmem:[%s3365 + $0xc0] sm:$0xff] %v3404
                  %v3406 = vld [vmem:[%s3364 + $0x80] sm:$0xff]
                  %3407 = vst [vmem:[%s3365 + $0xc8] sm:$0xff] %v3406
                  %v3408 = vld [vmem:[%s3364 + $0x88] sm:$0xff]
                  %3409 = vst [vmem:[%s3365 + $0xd0] sm:$0xff] %v3408
                  %v3410 = vld [vmem:[%s3364 + $0x90] sm:$0xff]
                  %3411 = vst [vmem:[%s3365 + $0xd8] sm:$0xff] %v3410
                  %v3412 = vld [vmem:[%s3364 + $0x98] sm:$0xff]
                  %3413 = vst [vmem:[%s3365 + $0xe0] sm:$0xff] %v3412
                  %v3414 = vld [vmem:[%s3364 + $0x80] sm:$0xff]
                  %3415 = vst [vmem:[%s3365 + $0x110] sm:$0xff] %v3414
                  %v3416 = vld [vmem:[%s3364 + $0x88] sm:$0xff]
                  %3417 = vst [vmem:[%s3365 + $0x118] sm:$0xff] %v3416
                  %v3418 = vld [vmem:[%s3364 + $0x90] sm:$0xff]
                  %3419 = vst [vmem:[%s3365 + $0x120] sm:$0xff] %v3418
                  %v3420 = vld [vmem:[%s3364 + $0x98] sm:$0xff]
                  %3421 = vst [vmem:[%s3365 + $0x128] sm:$0xff] %v3420
                  %v3422 = vld [vmem:[%s3364 + $0xa0] sm:$0xff]
                  %3423 = vst [vmem:[%s3365 + $0x130] sm:$0xff] %v3422
                  %v3424 = vld [vmem:[%s3364 + $0xa8] sm:$0xff]
                  %3425 = vst [vmem:[%s3365 + $0x138] sm:$0xff] %v3424
                  %v3426 = vld [vmem:[%s3364 + $0xb0] sm:$0xff]
                  %3427 = vst [vmem:[%s3365 + $0x140] sm:$0xff] %v3426
                  %v3428 = vld [vmem:[%s3364 + $0xb8] sm:$0xff]
                  %3429 = vst [vmem:[%s3365 + $0x148] sm:$0xff] %v3428
                  %v3430 = vld [vmem:[%s3364 + $0xc0] sm:$0xff]
                  %3431 = vst [vmem:[%s3365 + $0x150] sm:$0xff] %v3430
                  %v3432 = vld [vmem:[%s3364 + $0xc8] sm:$0xff]
                  %3433 = vst [vmem:[%s3365 + $0x158] sm:$0xff] %v3432
                  %v3434 = vld [vmem:[%s3364 + $0xd0] sm:$0xff]
                  %3435 = vst [vmem:[%s3365 + $0x160] sm:$0xff] %v3434
                  %v3436 = vld [vmem:[%s3364 + $0xd8] sm:$0xff]
                  %3437 = vst [vmem:[%s3365 + $0x168] sm:$0xff] %v3436
                  %v3438 = vld [vmem:[%s3364 + $0xc0] sm:$0xff]
                  %3439 = vst [vmem:[%s3365 + $0x198] sm:$0xff] %v3438
                  %v3440 = vld [vmem:[%s3364 + $0xc8] sm:$0xff]
                  %3441 = vst [vmem:[%s3365 + $0x1a0] sm:$0xff] %v3440
                  %v3442 = vld [vmem:[%s3364 + $0xd0] sm:$0xff]
                  %3443 = vst [vmem:[%s3365 + $0x1a8] sm:$0xff] %v3442
                  %v3444 = vld [vmem:[%s3364 + $0xd8] sm:$0xff]
                  %3445 = vst [vmem:[%s3365 + $0x1b0] sm:$0xff] %v3444
                  %v3446 = vld [vmem:[%s3364 + $0xe0] sm:$0xff]
                  %3447 = vst [vmem:[%s3365 + $0x1b8] sm:$0xff] %v3446
                  %v3448 = vld [vmem:[%s3364 + $0xe8] sm:$0xff]
                  %3449 = vst [vmem:[%s3365 + $0x1c0] sm:$0xff] %v3448
                  %v3450 = vld [vmem:[%s3364 + $0xf0] sm:$0xff]
                  %3451 = vst [vmem:[%s3365 + $0x1c8] sm:$0xff] %v3450
                  %v3452 = vld [vmem:[%s3364 + $0xf8] sm:$0xff]
                  %3453 = vst [vmem:[%s3365 + $0x1d0] sm:$0xff] %v3452
                  %v3454 = vld [vmem:[%s3364 + $0x100] sm:$0xff]
                  %3455 = vst [vmem:[%s3365 + $0x1d8] sm:$0xff] %v3454
                  %v3456 = vld [vmem:[%s3364 + $0x108] sm:$0xff]
                  %3457 = vst [vmem:[%s3365 + $0x1e0] sm:$0xff] %v3456
                  %v3458 = vld [vmem:[%s3364 + $0x110] sm:$0xff]
                  %3459 = vst [vmem:[%s3365 + $0x1e8] sm:$0xff] %v3458
                  %v3460 = vld [vmem:[%s3364 + $0x118] sm:$0xff]
                  %3461 = vst [vmem:[%s3365 + $0x1f0] sm:$0xff] %v3460
                  %v3462 = vld [vmem:[%s3364 + $0x100] sm:$0xff]
                  %3463 = vst [vmem:[%s3365 + $0x220] sm:$0xff] %v3462
                  %v3464 = vld [vmem:[%s3364 + $0x108] sm:$0xff]
                  %3465 = vst [vmem:[%s3365 + $0x228] sm:$0xff] %v3464
                  %v3466 = vld [vmem:[%s3364 + $0x110] sm:$0xff]
                  %3467 = vst [vmem:[%s3365 + $0x230] sm:$0xff] %v3466
                  %v3468 = vld [vmem:[%s3364 + $0x118] sm:$0xff]
                  %3469 = vst [vmem:[%s3365 + $0x238] sm:$0xff] %v3468
                  %v3470 = vld [vmem:[%s3364 + $0x120] sm:$0xff]
                  %3471 = vst [vmem:[%s3365 + $0x240] sm:$0xff] %v3470
                  %v3472 = vld [vmem:[%s3364 + $0x128] sm:$0xff]
                  %3473 = vst [vmem:[%s3365 + $0x248] sm:$0xff] %v3472
                  %v3474 = vld [vmem:[%s3364 + $0x130] sm:$0xff]
                  %3475 = vst [vmem:[%s3365 + $0x250] sm:$0xff] %v3474
                  %v3476 = vld [vmem:[%s3364 + $0x138] sm:$0xff]
                  %3477 = vst [vmem:[%s3365 + $0x258] sm:$0xff] %v3476
                  %v3478 = vld [vmem:[%s3364 + $0x140] sm:$0xff]
                  %3479 = vst [vmem:[%s3365 + $0x260] sm:$0xff] %v3478
                  %v3480 = vld [vmem:[%s3364 + $0x148] sm:$0xff]
                  %3481 = vst [vmem:[%s3365 + $0x268] sm:$0xff] %v3480
                  %v3482 = vld [vmem:[%s3364 + $0x150] sm:$0xff]
                  %3483 = vst [vmem:[%s3365 + $0x270] sm:$0xff] %v3482
                  %v3484 = vld [vmem:[%s3364 + $0x158] sm:$0xff]
                  %3485 = vst [vmem:[%s3365 + $0x278] sm:$0xff] %v3484
                  %v3486 = vld [vmem:[%s3364 + $0x140] sm:$0xff]
                  %3487 = vst [vmem:[%s3365 + $0x2a8] sm:$0xff] %v3486
                  %v3488 = vld [vmem:[%s3364 + $0x148] sm:$0xff]
                  %3489 = vst [vmem:[%s3365 + $0x2b0] sm:$0xff] %v3488
                  %v3490 = vld [vmem:[%s3364 + $0x150] sm:$0xff]
                  %3491 = vst [vmem:[%s3365 + $0x2b8] sm:$0xff] %v3490
                  %v3492 = vld [vmem:[%s3364 + $0x158] sm:$0xff]
                  %3493 = vst [vmem:[%s3365 + $0x2c0] sm:$0xff] %v3492
                  %v3494 = vld [vmem:[%s3364 + $0x160] sm:$0xff]
                  %3495 = vst [vmem:[%s3365 + $0x2c8] sm:$0xff] %v3494
                  %v3496 = vld [vmem:[%s3364 + $0x168] sm:$0xff]
                  %3497 = vst [vmem:[%s3365 + $0x2d0] sm:$0xff] %v3496
                  %v3498 = vld [vmem:[%s3364 + $0x170] sm:$0xff]
                  %3499 = vst [vmem:[%s3365 + $0x2d8] sm:$0xff] %v3498
                  %v3500 = vld [vmem:[%s3364 + $0x178] sm:$0xff]
                  %3501 = vst [vmem:[%s3365 + $0x2e0] sm:$0xff] %v3500
                  %v3502 = vld [vmem:[%s3364 + $0x180] sm:$0xff]
                  %3503 = vst [vmem:[%s3365 + $0x2e8] sm:$0xff] %v3502
                  %v3504 = vld [vmem:[%s3364 + $0x188] sm:$0xff]
                  %3505 = vst [vmem:[%s3365 + $0x2f0] sm:$0xff] %v3504
                  %v3506 = vld [vmem:[%s3364 + $0x190] sm:$0xff]
                  %3507 = vst [vmem:[%s3365 + $0x2f8] sm:$0xff] %v3506
                  %v3508 = vld [vmem:[%s3364 + $0x198] sm:$0xff]
                  %3509 = vst [vmem:[%s3365 + $0x300] sm:$0xff] %v3508
                  %v3510 = vld [vmem:[%s3364 + $0x180] sm:$0xff]
                  %3511 = vst [vmem:[%s3365 + $0x330] sm:$0xff] %v3510
                  %v3512 = vld [vmem:[%s3364 + $0x188] sm:$0xff]
                  %3513 = vst [vmem:[%s3365 + $0x338] sm:$0xff] %v3512
                  %v3514 = vld [vmem:[%s3364 + $0x190] sm:$0xff]
                  %3515 = vst [vmem:[%s3365 + $0x340] sm:$0xff] %v3514
                  %v3516 = vld [vmem:[%s3364 + $0x198] sm:$0xff]
                  %3517 = vst [vmem:[%s3365 + $0x348] sm:$0xff] %v3516
                  %v3518 = vld [vmem:[%s3364 + $0x1a0] sm:$0xff]
                  %3519 = vst [vmem:[%s3365 + $0x350] sm:$0xff] %v3518
                  %v3520 = vld [vmem:[%s3364 + $0x1a8] sm:$0xff]
                  %3521 = vst [vmem:[%s3365 + $0x358] sm:$0xff] %v3520
                  %v3522 = vld [vmem:[%s3364 + $0x1b0] sm:$0xff]
                  %3523 = vst [vmem:[%s3365 + $0x360] sm:$0xff] %v3522
                  %v3524 = vld [vmem:[%s3364 + $0x1b8] sm:$0xff]
                  %3525 = vst [vmem:[%s3365 + $0x368] sm:$0xff] %v3524
                  %v3526 = vld [vmem:[%s3364 + $0x1c0] sm:$0xff]
                  %3527 = vst [vmem:[%s3365 + $0x370] sm:$0xff] %v3526
                  %v3528 = vld [vmem:[%s3364 + $0x1c8] sm:$0xff]
                  %3529 = vst [vmem:[%s3365 + $0x378] sm:$0xff] %v3528
                  %v3530 = vld [vmem:[%s3364 + $0x1d0] sm:$0xff]
                  %3531 = vst [vmem:[%s3365 + $0x380] sm:$0xff] %v3530
                  %v3532 = vld [vmem:[%s3364 + $0x1d8] sm:$0xff]
                  %3533 = vst [vmem:[%s3365 + $0x388] sm:$0xff] %v3532
                  %s3534 = sadd.s32 1, %s3363
                  %p3535 = scmp.ge.s32.totalorder %s3534, %s3353
                  %s3536 = scalar_select %p3535, 0, %s3534
                  %s3537 = smul.u32 %s3536, 96
                  %s3538 = smul.u32 %s3536, 96
                  %s3539 = scalar_lea.vmem %s3300, %s3537 [#allocation3]
                  %s3540 = scalar_lea.vmem %s3311, %s3538
                $region138: #{model_forward.1} parent=132 // loop_footer
                  %s3360 = sadd.s32 %s3358, 1
                $region139: #{model_forward.1} parent=132 // loop_footer_branch
                  %3357 = sbr.rel target = $region135
                $region140: #{model_forward.1} parent=132 // loop_exit
                  _
                %s3541 = sdiv.u32.pop %s3352, 12
                %s3542 = srem.u32.pop %s3352, 12
                %s3543 = smul.u32 %s3541, 12
                %s3544 = smul.u32 128, %s3543
                %s3545 = sshra.s32 %s3544, 4
                %s3546 = scalar_lea.vmem %s3300, %s3545 [#allocation3]
                %s3547 = smul.u32 128, %s3543
                %s3548 = sshra.s32 %s3547, 4
                %s3549 = scalar_lea.vmem %s3311, %s3548
                // While loop
                $region141: #{model_forward.1} parent=132 // loop_pre_header
                  _
                $region142: #{model_forward.1} parent=132 // loop_header
                  %s3553 = sphi 0, %s3555
                  %p3554 = scmp.ge.s32.totalorder %s3553, %s3542
                  %s3558 = sphi 0, %s3577
                  %s3559 = sphi %s3546, %s3580
                  %s3560 = sphi %s3549, %s3581
                $region143: #{model_forward.1} parent=132 // loop_header_branch
                  %3557 = sbr.rel (%p3554) target = $region147
                $region144: #{model_forward.1} parent=132 // loop_body
                  %v3561 = vld [vmem:[%s3559] sm:$0xff]
                  %3562 = vst [vmem:[%s3560] sm:$0xff] %v3561
                  %v3563 = vld [vmem:[%s3559 + $0x40] sm:$0xff]
                  %3564 = vst [vmem:[%s3560 + $0x88] sm:$0xff] %v3563
                  %v3565 = vld [vmem:[%s3559 + $0x80] sm:$0xff]
                  %3566 = vst [vmem:[%s3560 + $0x110] sm:$0xff] %v3565
                  %v3567 = vld [vmem:[%s3559 + $0xc0] sm:$0xff]
                  %3568 = vst [vmem:[%s3560 + $0x198] sm:$0xff] %v3567
                  %v3569 = vld [vmem:[%s3559 + $0x100] sm:$0xff]
                  %3570 = vst [vmem:[%s3560 + $0x220] sm:$0xff] %v3569
                  %v3571 = vld [vmem:[%s3559 + $0x140] sm:$0xff]
                  %3572 = vst [vmem:[%s3560 + $0x2a8] sm:$0xff] %v3571
                  %v3573 = vld [vmem:[%s3559 + $0x180] sm:$0xff]
                  %3574 = vst [vmem:[%s3560 + $0x330] sm:$0xff] %v3573
                  %s3575 = sadd.s32 1, %s3558
                  %p3576 = scmp.ge.s32.totalorder %s3575, %s3542
                  %s3577 = scalar_select %p3576, 0, %s3575
                  %s3578 = smul.u32 %s3577, 8
                  %s3579 = smul.u32 %s3577, 8
                  %s3580 = scalar_lea.vmem %s3546, %s3578 [#allocation3]
                  %s3581 = scalar_lea.vmem %s3549, %s3579
                $region145: #{model_forward.1} parent=132 // loop_footer
                  %s3555 = sadd.s32 %s3553, 1
                $region146: #{model_forward.1} parent=132 // loop_footer_branch
                  %3552 = sbr.rel target = $region142
                $region147: #{model_forward.1} parent=132 // loop_exit
                  _
              $region133: #{model_forward.1} parent=117 // pred_fallthru
                _
              %p3582 = pneg %p3348
              // Predicated region
              $region148: #{model_forward.1} parent=117 // pred_check
                _
              $region149: #{model_forward.1} parent=117 // pred_check_branch
                %3584 = sbr.rel (%p3348) target = $region151
              $region150: #{model_forward.1} parent=117 // pred_region
                %s3585 = sand.u32 %s3312, 7
                %s3586 = ssub.s32 %s3312, %s3585
                %s3587 = scalar_lea.vmem %s3300, %s3586 [#allocation3]
                %s3588 = ssub.s32 %s3312, %s3585
                %s3589 = scalar_lea.vmem %s3311, %s3588
                %s3590 = sshrl.u32 %s3312, 3
                %s3591 = sdiv.u32.pop %s3590, 12
                %s3592 = srem.u32.pop %s3590, 12
                // While loop
                $region152: #{model_forward.1} parent=150 // loop_pre_header
                  _
                $region153: #{model_forward.1} parent=150 // loop_header
                  %s3596 = sphi 0, %s3598
                  %p3597 = scmp.ge.s32.totalorder %s3596, %s3591
                  %s3601 = sphi 0, %s3774
                  %s3602 = sphi %s3300, %s3777
                  %s3603 = sphi %s3311, %s3778
                $region154: #{model_forward.1} parent=150 // loop_header_branch
                  %3600 = sbr.rel (%p3597) target = $region158
                $region155: #{model_forward.1} parent=150 // loop_body
                  %v3604 = vld [vmem:[%s3602] sm:$0xff]
                  %3605 = vst [vmem:[%s3603] sm:$0xff] %v3604
                  %v3606 = vld [vmem:[%s3602 + $0x8] sm:$0xff]
                  %3607 = vst [vmem:[%s3603 + $0x8] sm:$0xff] %v3606
                  %v3608 = vld [vmem:[%s3602 + $0x10] sm:$0xff]
                  %3609 = vst [vmem:[%s3603 + $0x10] sm:$0xff] %v3608
                  %v3610 = vld [vmem:[%s3602 + $0x18] sm:$0xff]
                  %3611 = vst [vmem:[%s3603 + $0x18] sm:$0xff] %v3610
                  %v3612 = vld [vmem:[%s3602 + $0x20] sm:$0xff]
                  %3613 = vst [vmem:[%s3603 + $0x20] sm:$0xff] %v3612
                  %v3614 = vld [vmem:[%s3602 + $0x28] sm:$0xff]
                  %3615 = vst [vmem:[%s3603 + $0x28] sm:$0xff] %v3614
                  %v3616 = vld [vmem:[%s3602 + $0x30] sm:$0xff]
                  %3617 = vst [vmem:[%s3603 + $0x30] sm:$0xff] %v3616
                  %v3618 = vld [vmem:[%s3602 + $0x38] sm:$0xff]
                  %3619 = vst [vmem:[%s3603 + $0x38] sm:$0xff] %v3618
                  %v3620 = vld [vmem:[%s3602 + $0x40] sm:$0xff]
                  %3621 = vst [vmem:[%s3603 + $0x40] sm:$0xff] %v3620
                  %v3622 = vld [vmem:[%s3602 + $0x48] sm:$0xff]
                  %3623 = vst [vmem:[%s3603 + $0x48] sm:$0xff] %v3622
                  %v3624 = vld [vmem:[%s3602 + $0x50] sm:$0xff]
                  %3625 = vst [vmem:[%s3603 + $0x50] sm:$0xff] %v3624
                  %v3626 = vld [vmem:[%s3602 + $0x58] sm:$0xff]
                  %3627 = vst [vmem:[%s3603 + $0x58] sm:$0xff] %v3626
                  %v3628 = vld [vmem:[%s3602 + $0x40] sm:$0xff]
                  %3629 = vst [vmem:[%s3603 + $0x88] sm:$0xff] %v3628
                  %v3630 = vld [vmem:[%s3602 + $0x48] sm:$0xff]
                  %3631 = vst [vmem:[%s3603 + $0x90] sm:$0xff] %v3630
                  %v3632 = vld [vmem:[%s3602 + $0x50] sm:$0xff]
                  %3633 = vst [vmem:[%s3603 + $0x98] sm:$0xff] %v3632
                  %v3634 = vld [vmem:[%s3602 + $0x58] sm:$0xff]
                  %3635 = vst [vmem:[%s3603 + $0xa0] sm:$0xff] %v3634
                  %v3636 = vld [vmem:[%s3602 + $0x60] sm:$0xff]
                  %3637 = vst [vmem:[%s3603 + $0xa8] sm:$0xff] %v3636
                  %v3638 = vld [vmem:[%s3602 + $0x68] sm:$0xff]
                  %3639 = vst [vmem:[%s3603 + $0xb0] sm:$0xff] %v3638
                  %v3640 = vld [vmem:[%s3602 + $0x70] sm:$0xff]
                  %3641 = vst [vmem:[%s3603 + $0xb8] sm:$0xff] %v3640
                  %v3642 = vld [vmem:[%s3602 + $0x78] sm:$0xff]
                  %3643 = vst [vmem:[%s3603 + $0xc0] sm:$0xff] %v3642
                  %v3644 = vld [vmem:[%s3602 + $0x80] sm:$0xff]
                  %3645 = vst [vmem:[%s3603 + $0xc8] sm:$0xff] %v3644
                  %v3646 = vld [vmem:[%s3602 + $0x88] sm:$0xff]
                  %3647 = vst [vmem:[%s3603 + $0xd0] sm:$0xff] %v3646
                  %v3648 = vld [vmem:[%s3602 + $0x90] sm:$0xff]
                  %3649 = vst [vmem:[%s3603 + $0xd8] sm:$0xff] %v3648
                  %v3650 = vld [vmem:[%s3602 + $0x98] sm:$0xff]
                  %3651 = vst [vmem:[%s3603 + $0xe0] sm:$0xff] %v3650
                  %v3652 = vld [vmem:[%s3602 + $0x80] sm:$0xff]
                  %3653 = vst [vmem:[%s3603 + $0x110] sm:$0xff] %v3652
                  %v3654 = vld [vmem:[%s3602 + $0x88] sm:$0xff]
                  %3655 = vst [vmem:[%s3603 + $0x118] sm:$0xff] %v3654
                  %v3656 = vld [vmem:[%s3602 + $0x90] sm:$0xff]
                  %3657 = vst [vmem:[%s3603 + $0x120] sm:$0xff] %v3656
                  %v3658 = vld [vmem:[%s3602 + $0x98] sm:$0xff]
                  %3659 = vst [vmem:[%s3603 + $0x128] sm:$0xff] %v3658
                  %v3660 = vld [vmem:[%s3602 + $0xa0] sm:$0xff]
                  %3661 = vst [vmem:[%s3603 + $0x130] sm:$0xff] %v3660
                  %v3662 = vld [vmem:[%s3602 + $0xa8] sm:$0xff]
                  %3663 = vst [vmem:[%s3603 + $0x138] sm:$0xff] %v3662
                  %v3664 = vld [vmem:[%s3602 + $0xb0] sm:$0xff]
                  %3665 = vst [vmem:[%s3603 + $0x140] sm:$0xff] %v3664
                  %v3666 = vld [vmem:[%s3602 + $0xb8] sm:$0xff]
                  %3667 = vst [vmem:[%s3603 + $0x148] sm:$0xff] %v3666
                  %v3668 = vld [vmem:[%s3602 + $0xc0] sm:$0xff]
                  %3669 = vst [vmem:[%s3603 + $0x150] sm:$0xff] %v3668
                  %v3670 = vld [vmem:[%s3602 + $0xc8] sm:$0xff]
                  %3671 = vst [vmem:[%s3603 + $0x158] sm:$0xff] %v3670
                  %v3672 = vld [vmem:[%s3602 + $0xd0] sm:$0xff]
                  %3673 = vst [vmem:[%s3603 + $0x160] sm:$0xff] %v3672
                  %v3674 = vld [vmem:[%s3602 + $0xd8] sm:$0xff]
                  %3675 = vst [vmem:[%s3603 + $0x168] sm:$0xff] %v3674
                  %v3676 = vld [vmem:[%s3602 + $0xc0] sm:$0xff]
                  %3677 = vst [vmem:[%s3603 + $0x198] sm:$0xff] %v3676
                  %v3678 = vld [vmem:[%s3602 + $0xc8] sm:$0xff]
                  %3679 = vst [vmem:[%s3603 + $0x1a0] sm:$0xff] %v3678
                  %v3680 = vld [vmem:[%s3602 + $0xd0] sm:$0xff]
                  %3681 = vst [vmem:[%s3603 + $0x1a8] sm:$0xff] %v3680
                  %v3682 = vld [vmem:[%s3602 + $0xd8] sm:$0xff]
                  %3683 = vst [vmem:[%s3603 + $0x1b0] sm:$0xff] %v3682
                  %v3684 = vld [vmem:[%s3602 + $0xe0] sm:$0xff]
                  %3685 = vst [vmem:[%s3603 + $0x1b8] sm:$0xff] %v3684
                  %v3686 = vld [vmem:[%s3602 + $0xe8] sm:$0xff]
                  %3687 = vst [vmem:[%s3603 + $0x1c0] sm:$0xff] %v3686
                  %v3688 = vld [vmem:[%s3602 + $0xf0] sm:$0xff]
                  %3689 = vst [vmem:[%s3603 + $0x1c8] sm:$0xff] %v3688
                  %v3690 = vld [vmem:[%s3602 + $0xf8] sm:$0xff]
                  %3691 = vst [vmem:[%s3603 + $0x1d0] sm:$0xff] %v3690
                  %v3692 = vld [vmem:[%s3602 + $0x100] sm:$0xff]
                  %3693 = vst [vmem:[%s3603 + $0x1d8] sm:$0xff] %v3692
                  %v3694 = vld [vmem:[%s3602 + $0x108] sm:$0xff]
                  %3695 = vst [vmem:[%s3603 + $0x1e0] sm:$0xff] %v3694
                  %v3696 = vld [vmem:[%s3602 + $0x110] sm:$0xff]
                  %3697 = vst [vmem:[%s3603 + $0x1e8] sm:$0xff] %v3696
                  %v3698 = vld [vmem:[%s3602 + $0x118] sm:$0xff]
                  %3699 = vst [vmem:[%s3603 + $0x1f0] sm:$0xff] %v3698
                  %v3700 = vld [vmem:[%s3602 + $0x100] sm:$0xff]
                  %3701 = vst [vmem:[%s3603 + $0x220] sm:$0xff] %v3700
                  %v3702 = vld [vmem:[%s3602 + $0x108] sm:$0xff]
                  %3703 = vst [vmem:[%s3603 + $0x228] sm:$0xff] %v3702
                  %v3704 = vld [vmem:[%s3602 + $0x110] sm:$0xff]
                  %3705 = vst [vmem:[%s3603 + $0x230] sm:$0xff] %v3704
                  %v3706 = vld [vmem:[%s3602 + $0x118] sm:$0xff]
                  %3707 = vst [vmem:[%s3603 + $0x238] sm:$0xff] %v3706
                  %v3708 = vld [vmem:[%s3602 + $0x120] sm:$0xff]
                  %3709 = vst [vmem:[%s3603 + $0x240] sm:$0xff] %v3708
                  %v3710 = vld [vmem:[%s3602 + $0x128] sm:$0xff]
                  %3711 = vst [vmem:[%s3603 + $0x248] sm:$0xff] %v3710
                  %v3712 = vld [vmem:[%s3602 + $0x130] sm:$0xff]
                  %3713 = vst [vmem:[%s3603 + $0x250] sm:$0xff] %v3712
                  %v3714 = vld [vmem:[%s3602 + $0x138] sm:$0xff]
                  %3715 = vst [vmem:[%s3603 + $0x258] sm:$0xff] %v3714
                  %v3716 = vld [vmem:[%s3602 + $0x140] sm:$0xff]
                  %3717 = vst [vmem:[%s3603 + $0x260] sm:$0xff] %v3716
                  %v3718 = vld [vmem:[%s3602 + $0x148] sm:$0xff]
                  %3719 = vst [vmem:[%s3603 + $0x268] sm:$0xff] %v3718
                  %v3720 = vld [vmem:[%s3602 + $0x150] sm:$0xff]
                  %3721 = vst [vmem:[%s3603 + $0x270] sm:$0xff] %v3720
                  %v3722 = vld [vmem:[%s3602 + $0x158] sm:$0xff]
                  %3723 = vst [vmem:[%s3603 + $0x278] sm:$0xff] %v3722
                  %v3724 = vld [vmem:[%s3602 + $0x140] sm:$0xff]
                  %3725 = vst [vmem:[%s3603 + $0x2a8] sm:$0xff] %v3724
                  %v3726 = vld [vmem:[%s3602 + $0x148] sm:$0xff]
                  %3727 = vst [vmem:[%s3603 + $0x2b0] sm:$0xff] %v3726
                  %v3728 = vld [vmem:[%s3602 + $0x150] sm:$0xff]
                  %3729 = vst [vmem:[%s3603 + $0x2b8] sm:$0xff] %v3728
                  %v3730 = vld [vmem:[%s3602 + $0x158] sm:$0xff]
                  %3731 = vst [vmem:[%s3603 + $0x2c0] sm:$0xff] %v3730
                  %v3732 = vld [vmem:[%s3602 + $0x160] sm:$0xff]
                  %3733 = vst [vmem:[%s3603 + $0x2c8] sm:$0xff] %v3732
                  %v3734 = vld [vmem:[%s3602 + $0x168] sm:$0xff]
                  %3735 = vst [vmem:[%s3603 + $0x2d0] sm:$0xff] %v3734
                  %v3736 = vld [vmem:[%s3602 + $0x170] sm:$0xff]
                  %3737 = vst [vmem:[%s3603 + $0x2d8] sm:$0xff] %v3736
                  %v3738 = vld [vmem:[%s3602 + $0x178] sm:$0xff]
                  %3739 = vst [vmem:[%s3603 + $0x2e0] sm:$0xff] %v3738
                  %v3740 = vld [vmem:[%s3602 + $0x180] sm:$0xff]
                  %3741 = vst [vmem:[%s3603 + $0x2e8] sm:$0xff] %v3740
                  %v3742 = vld [vmem:[%s3602 + $0x188] sm:$0xff]
                  %3743 = vst [vmem:[%s3603 + $0x2f0] sm:$0xff] %v3742
                  %v3744 = vld [vmem:[%s3602 + $0x190] sm:$0xff]
                  %3745 = vst [vmem:[%s3603 + $0x2f8] sm:$0xff] %v3744
                  %v3746 = vld [vmem:[%s3602 + $0x198] sm:$0xff]
                  %3747 = vst [vmem:[%s3603 + $0x300] sm:$0xff] %v3746
                  %v3748 = vld [vmem:[%s3602 + $0x180] sm:$0xff]
                  %3749 = vst [vmem:[%s3603 + $0x330] sm:$0xff] %v3748
                  %v3750 = vld [vmem:[%s3602 + $0x188] sm:$0xff]
                  %3751 = vst [vmem:[%s3603 + $0x338] sm:$0xff] %v3750
                  %v3752 = vld [vmem:[%s3602 + $0x190] sm:$0xff]
                  %3753 = vst [vmem:[%s3603 + $0x340] sm:$0xff] %v3752
                  %v3754 = vld [vmem:[%s3602 + $0x198] sm:$0xff]
                  %3755 = vst [vmem:[%s3603 + $0x348] sm:$0xff] %v3754
                  %v3756 = vld [vmem:[%s3602 + $0x1a0] sm:$0xff]
                  %3757 = vst [vmem:[%s3603 + $0x350] sm:$0xff] %v3756
                  %v3758 = vld [vmem:[%s3602 + $0x1a8] sm:$0xff]
                  %3759 = vst [vmem:[%s3603 + $0x358] sm:$0xff] %v3758
                  %v3760 = vld [vmem:[%s3602 + $0x1b0] sm:$0xff]
                  %3761 = vst [vmem:[%s3603 + $0x360] sm:$0xff] %v3760
                  %v3762 = vld [vmem:[%s3602 + $0x1b8] sm:$0xff]
                  %3763 = vst [vmem:[%s3603 + $0x368] sm:$0xff] %v3762
                  %v3764 = vld [vmem:[%s3602 + $0x1c0] sm:$0xff]
                  %3765 = vst [vmem:[%s3603 + $0x370] sm:$0xff] %v3764
                  %v3766 = vld [vmem:[%s3602 + $0x1c8] sm:$0xff]
                  %3767 = vst [vmem:[%s3603 + $0x378] sm:$0xff] %v3766
                  %v3768 = vld [vmem:[%s3602 + $0x1d0] sm:$0xff]
                  %3769 = vst [vmem:[%s3603 + $0x380] sm:$0xff] %v3768
                  %v3770 = vld [vmem:[%s3602 + $0x1d8] sm:$0xff]
                  %3771 = vst [vmem:[%s3603 + $0x388] sm:$0xff] %v3770
                  %s3772 = sadd.s32 1, %s3601
                  %p3773 = scmp.ge.s32.totalorder %s3772, %s3591
                  %s3774 = scalar_select %p3773, 0, %s3772
                  %s3775 = smul.u32 %s3774, 96
                  %s3776 = smul.u32 %s3774, 96
                  %s3777 = scalar_lea.vmem %s3300, %s3775 [#allocation3]
                  %s3778 = scalar_lea.vmem %s3311, %s3776
                $region156: #{model_forward.1} parent=150 // loop_footer
                  %s3598 = sadd.s32 %s3596, 1
                $region157: #{model_forward.1} parent=150 // loop_footer_branch
                  %3595 = sbr.rel target = $region153
                $region158: #{model_forward.1} parent=150 // loop_exit
                  _
                %s3779 = sdiv.u32.pop %s3590, 12
                %s3780 = srem.u32.pop %s3590, 12
                %s3781 = smul.u32 %s3779, 12
                %s3782 = smul.u32 128, %s3781
                %s3783 = sshra.s32 %s3782, 4
                %s3784 = scalar_lea.vmem %s3300, %s3783 [#allocation3]
                %s3785 = smul.u32 128, %s3781
                %s3786 = sshra.s32 %s3785, 4
                %s3787 = scalar_lea.vmem %s3311, %s3786
                // While loop
                $region159: #{model_forward.1} parent=150 // loop_pre_header
                  _
                $region160: #{model_forward.1} parent=150 // loop_header
                  %s3791 = sphi 0, %s3793
                  %p3792 = scmp.ge.s32.totalorder %s3791, %s3780
                  %s3796 = sphi 0, %s3815
                  %s3797 = sphi %s3784, %s3818
                  %s3798 = sphi %s3787, %s3819
                $region161: #{model_forward.1} parent=150 // loop_header_branch
                  %3795 = sbr.rel (%p3792) target = $region165
                $region162: #{model_forward.1} parent=150 // loop_body
                  %v3799 = vld [vmem:[%s3797] sm:$0xff]
                  %3800 = vst [vmem:[%s3798] sm:$0xff] %v3799
                  %v3801 = vld [vmem:[%s3797 + $0x40] sm:$0xff]
                  %3802 = vst [vmem:[%s3798 + $0x88] sm:$0xff] %v3801
                  %v3803 = vld [vmem:[%s3797 + $0x80] sm:$0xff]
                  %3804 = vst [vmem:[%s3798 + $0x110] sm:$0xff] %v3803
                  %v3805 = vld [vmem:[%s3797 + $0xc0] sm:$0xff]
                  %3806 = vst [vmem:[%s3798 + $0x198] sm:$0xff] %v3805
                  %v3807 = vld [vmem:[%s3797 + $0x100] sm:$0xff]
                  %3808 = vst [vmem:[%s3798 + $0x220] sm:$0xff] %v3807
                  %v3809 = vld [vmem:[%s3797 + $0x140] sm:$0xff]
                  %3810 = vst [vmem:[%s3798 + $0x2a8] sm:$0xff] %v3809
                  %v3811 = vld [vmem:[%s3797 + $0x180] sm:$0xff]
                  %3812 = vst [vmem:[%s3798 + $0x330] sm:$0xff] %v3811
                  %s3813 = sadd.s32 1, %s3796
                  %p3814 = scmp.ge.s32.totalorder %s3813, %s3780
                  %s3815 = scalar_select %p3814, 0, %s3813
                  %s3816 = smul.u32 %s3815, 8
                  %s3817 = smul.u32 %s3815, 8
                  %s3818 = scalar_lea.vmem %s3784, %s3816 [#allocation3]
                  %s3819 = scalar_lea.vmem %s3787, %s3817
                $region163: #{model_forward.1} parent=150 // loop_footer
                  %s3793 = sadd.s32 %s3791, 1
                $region164: #{model_forward.1} parent=150 // loop_footer_branch
                  %3790 = sbr.rel target = $region160
                $region165: #{model_forward.1} parent=150 // loop_exit
                  _
                %s3820 = sshll.u32 1, %s3585
                %s3821 = ssub.s32 %s3820, 1
                loop: start=0, step=1, limit=1
                $region166: #{model_forward.1} parent=150 // loop_pre_header
                  _
                $region167: #{model_forward.1} parent=150 // loop_header
                  %s3823 = sphi 0, %s3827
                  %p3824 = scmp.ge.s32.totalorder %s3823, 1
                  %s3828 = sphi %s3587, %s3587
                  %s3829 = sphi %s3589, %s3589
                $region168: #{model_forward.1} parent=150 // loop_header_branch
                  %3826 = sbr.rel (%p3824) target = $region172
                $region169: #{model_forward.1} parent=150 // loop_body
                  %v3830 = vld [vmem:[%s3828] sm:%s3821]
                  %3831 = vst [vmem:[%s3829] sm:%s3821] %v3830
                  %v3832 = vld [vmem:[%s3828 + $0x40] sm:%s3821]
                  %3833 = vst [vmem:[%s3829 + $0x88] sm:%s3821] %v3832
                  %v3834 = vld [vmem:[%s3828 + $0x80] sm:%s3821]
                  %3835 = vst [vmem:[%s3829 + $0x110] sm:%s3821] %v3834
                  %v3836 = vld [vmem:[%s3828 + $0xc0] sm:%s3821]
                  %3837 = vst [vmem:[%s3829 + $0x198] sm:%s3821] %v3836
                  %v3838 = vld [vmem:[%s3828 + $0x100] sm:%s3821]
                  %3839 = vst [vmem:[%s3829 + $0x220] sm:%s3821] %v3838
                  %v3840 = vld [vmem:[%s3828 + $0x140] sm:%s3821]
                  %3841 = vst [vmem:[%s3829 + $0x2a8] sm:%s3821] %v3840
                  %v3842 = vld [vmem:[%s3828 + $0x180] sm:%s3821]
                  %3843 = vst [vmem:[%s3829 + $0x330] sm:%s3821] %v3842
                $region170: #{model_forward.1} parent=150 // loop_footer
                  %s3827 = sadd.s32 1, %s3823
                $region171: #{model_forward.1} parent=150 // loop_footer_branch
                  %3822 = sbr.rel target = $region167
                $region172: #{model_forward.1} parent=150 // loop_exit
                  _
              $region151: #{model_forward.1} parent=117 // pred_fallthru
                _
            $region118: #{model_forward.1} parent=113 // pred_fallthru
              _
            // Predicated region
            $region119: #{model_forward.1} parent=113 // pred_check
              %p3320 = pneg %p3316
            $region120: #{model_forward.1} parent=113 // pred_check_branch
              %3322 = sbr.rel (%p3320) target = $region122
            $region121: #{model_forward.1} parent=113 // pred_region
              %s3323 = sshll.u32 1, %s3312
              %s3324 = ssub.s32 %s3323, 1
              loop: start=0, step=1, limit=1
              $region123: #{model_forward.1} parent=121 // loop_pre_header
                _
              $region124: #{model_forward.1} parent=121 // loop_header
                %s3326 = sphi 0, %s3330
                %p3327 = scmp.ge.s32.totalorder %s3326, 1
                %s3331 = sphi %s3300, %s3300
                %s3332 = sphi %s3311, %s3311
              $region125: #{model_forward.1} parent=121 // loop_header_branch
                %3329 = sbr.rel (%p3327) target = $region129
              $region126: #{model_forward.1} parent=121 // loop_body
                %v3333 = vld [vmem:[%s3331] sm:%s3324]
                %3334 = vst [vmem:[%s3332] sm:%s3324] %v3333
                %v3335 = vld [vmem:[%s3331 + $0x40] sm:%s3324]
                %3336 = vst [vmem:[%s3332 + $0x88] sm:%s3324] %v3335
                %v3337 = vld [vmem:[%s3331 + $0x80] sm:%s3324]
                %3338 = vst [vmem:[%s3332 + $0x110] sm:%s3324] %v3337
                %v3339 = vld [vmem:[%s3331 + $0xc0] sm:%s3324]
                %3340 = vst [vmem:[%s3332 + $0x198] sm:%s3324] %v3339
                %v3341 = vld [vmem:[%s3331 + $0x100] sm:%s3324]
                %3342 = vst [vmem:[%s3332 + $0x220] sm:%s3324] %v3341
                %v3343 = vld [vmem:[%s3331 + $0x140] sm:%s3324]
                %3344 = vst [vmem:[%s3332 + $0x2a8] sm:%s3324] %v3343
                %v3345 = vld [vmem:[%s3331 + $0x180] sm:%s3324]
                %3346 = vst [vmem:[%s3332 + $0x330] sm:%s3324] %v3345
              $region127: #{model_forward.1} parent=121 // loop_footer
                %s3330 = sadd.s32 1, %s3326
              $region128: #{model_forward.1} parent=121 // loop_footer_branch
                %3325 = sbr.rel target = $region124
              $region129: #{model_forward.1} parent=121 // loop_exit
                _
            $region122: #{model_forward.1} parent=113 // pred_fallthru
              _
          $region114: #{model_forward.1} parent=109 // pred_fallthru
            _
          %3844 = vnop
        $region110: #{model_forward.1} parent=101 // pred_fallthru
          _
      $region102: #{model_forward.1} parent=5 // pred_fallthru
        _
      %p3845 = scmp.le.s32.totalorder 2, %s11
      // Predicated region
      $region173: #{model_forward.1} parent=5 // pred_check
        %p3846 = pneg %p3845
      $region174: #{model_forward.1} parent=5 // pred_check_branch
        %3848 = sbr.rel (%p3846) target = $region176
      $region175: #{model_forward.1} parent=5 // pred_region
        %s3849 = ssub.s32 %s11, 2
        // Predicated region
        $region177: #{model_forward.1} parent=175 // pred_check
          %p3850 = pneg %p155
        $region178: #{model_forward.1} parent=175 // pred_check_branch
          %3852 = sbr.rel (%p3850) target = $region180
        $region179: #{model_forward.1} parent=175 // pred_region
          %s3853 = sand.u32 %s140, 1
          %s3854 = sand.u32 %s140, 1
          %s3855 = smul.addr %s3854, 448
          %s3856 = scalar_lea.vmem [#allocation3], %s3855
        $region180: #{model_forward.1} parent=175 // pred_fallthru
          _
      $region176: #{model_forward.1} parent=5 // pred_fallthru
        _
    $region6: #{model_forward.1} parent=1 // loop_footer
      %s15 = sadd.s32 1, %s11
    $region7: #{model_forward.1} parent=1 // loop_footer_branch
      %10 = sbr.rel target = $region3
    $region8: #{model_forward.1} parent=1 // loop_exit
      _

</llo_original>
